<compile_context>
chip_gen: v7x
topology: tpu7x:2x2x1
jax: 0.10.0
libtpu: 0.0.40
codegen_flags: <defaults>
</compile_context>

<pallas_src>
import jax
import jax.numpy as jnp
from jax import lax
from jax.experimental import pallas as pl
from jax.experimental.pallas import tpu as pltpu

NHEAD = 2
LN_EPS = 1e-5
BN_EPS = 1e-5
PROJ_HID = 256
PROJ_OUT = 128
SEG = 128                       # lane-tile width of each packed per-head Q/K/V segment

# vec-slab row layout (per transformer layer, then projector tail)
_RV_BQKV, _RV_BO, _RV_G1, _RV_B1, _RV_BFF1, _RV_BFF2, _RV_G2, _RV_B2 = range(8)
_ROWS_PER_LAYER = 8
_RP_PB1, _RP_BNS, _RP_BNB, _RP_PB2 = range(4)


# ----------------------------------------------------------------------------
# Fused kernel: both branches' 2-layer encoder + projector.
# Refs carry a leading branch-block dim `nb` (2 = both branches unrolled in one
# invocation; 1 = one branch per grid step, sharded across TCs on v7x).
# ----------------------------------------------------------------------------
def tfc_kernel(x_ref, wqkv_ref, wo_ref, wff1_ref, wff2_ref,
               pw1_ref, pw2_ref, vec_ref, out_ref):
    nb = x_ref.shape[0]
    B = x_ref.shape[1]
    L = x_ref.shape[2]
    hd = L // NHEAD
    num_layers = wqkv_ref.shape[1]
    qkv_w = wqkv_ref.shape[-1]                     # 3 * NHEAD * SEG

    for bi in range(nb):                           # static unroll over branches
        x = x_ref[bi].astype(jnp.float32)          # (B, L) f32 activation carry

        # ---- transformer encoder: static unroll over layers (num_layers == 2) ----
        for l in range(num_layers):
            r0 = l * _ROWS_PER_LAYER
            bqkv = vec_ref[bi, r0 + _RV_BQKV:r0 + _RV_BQKV + 1, :qkv_w]     # (1, qkv_w)
            bo   = vec_ref[bi, r0 + _RV_BO:r0 + _RV_BO + 1, :L]
            g1   = vec_ref[bi, r0 + _RV_G1:r0 + _RV_G1 + 1, :L]
            b1   = vec_ref[bi, r0 + _RV_B1:r0 + _RV_B1 + 1, :L]
            bff1 = vec_ref[bi, r0 + _RV_BFF1:r0 + _RV_BFF1 + 1, :2 * L]
            bff2 = vec_ref[bi, r0 + _RV_BFF2:r0 + _RV_BFF2 + 1, :L]
            g2   = vec_ref[bi, r0 + _RV_G2:r0 + _RV_G2 + 1, :L]
            b2   = vec_ref[bi, r0 + _RV_B2:r0 + _RV_B2 + 1, :L]

            # fused QKV projection (bf16 MXU, f32 acc); per-head segments are
            # 128-lane aligned, 1/sqrt(hd) already folded into the Q columns/bias
            qkv = jnp.dot(x.astype(jnp.bfloat16), wqkv_ref[bi, l],
                          preferred_element_type=jnp.float32) + bqkv        # (B, qkv_w)

            heads = []
            for h in range(NHEAD):                 # static unroll over 2 heads
                qh = qkv[:, h * SEG:h * SEG + hd].astype(jnp.bfloat16)
                kh = qkv[:, (NHEAD + h) * SEG:(NHEAD + h) * SEG + hd].astype(jnp.bfloat16)
                vh = qkv[:, (2 * NHEAD + h) * SEG:(2 * NHEAD + h) * SEG + hd].astype(jnp.bfloat16)
                # scores: contract last dims of q/k (no explicit transpose)
                s = lax.dot_general(qh, kh, (((1,), (1,)), ((), ())),
                                    preferred_element_type=jnp.float32)     # (B, B)
                s = s - jnp.max(s, axis=-1, keepdims=True)
                p = jnp.exp(s)
                p = p * pl.reciprocal(jnp.sum(p, axis=-1, keepdims=True), approx=True)
                heads.append(jnp.dot(p.astype(jnp.bfloat16), vh,
                                     preferred_element_type=jnp.float32))   # (B, hd)
            # head concat -> single output projection matmul
            o_cat = jnp.concatenate(heads, axis=-1).astype(jnp.bfloat16)    # (B, L)
            attn = jnp.dot(o_cat, wo_ref[bi, l],
                           preferred_element_type=jnp.float32) + bo

            # residual + LayerNorm1 (post-norm)
            y = x + attn
            mu = jnp.mean(y, axis=-1, keepdims=True)
            var = jnp.mean((y - mu) ** 2, axis=-1, keepdims=True)
            y = (y - mu) * lax.rsqrt(var + LN_EPS) * g1 + b1

            # feed-forward (L -> 2L -> L, relu), bf16 MXU / f32 acc
            ff = jnp.dot(y.astype(jnp.bfloat16), wff1_ref[bi, l],
                         preferred_element_type=jnp.float32) + bff1
            ff = jnp.maximum(ff, 0.0)
            ff = jnp.dot(ff.astype(jnp.bfloat16), wff2_ref[bi, l],
                         preferred_element_type=jnp.float32) + bff2

            # residual + LayerNorm2
            z = y + ff
            mu2 = jnp.mean(z, axis=-1, keepdims=True)
            var2 = jnp.mean((z - mu2) ** 2, axis=-1, keepdims=True)
            x = (z - mu2) * lax.rsqrt(var2 + LN_EPS) * g2 + b2

        # ---- projector: Linear(L,256) -> BN(eval, folded) -> ReLU -> Linear(256,128)
        pr = num_layers * _ROWS_PER_LAYER
        pb1 = vec_ref[bi, pr + _RP_PB1:pr + _RP_PB1 + 1, :PROJ_HID]
        bns = vec_ref[bi, pr + _RP_BNS:pr + _RP_BNS + 1, :PROJ_HID]
        bnb = vec_ref[bi, pr + _RP_BNB:pr + _RP_BNB + 1, :PROJ_HID]
        pb2 = vec_ref[bi, pr + _RP_PB2:pr + _RP_PB2 + 1, :PROJ_OUT]

        y = jnp.dot(x.astype(jnp.bfloat16), pw1_ref[bi],
                    preferred_element_type=jnp.float32) + pb1
        y = y * bns + bnb
        y = jnp.maximum(y, 0.0)
        z = jnp.dot(y.astype(jnp.bfloat16), pw2_ref[bi],
                    preferred_element_type=jnp.float32) + pb2
        # lane-dense write of this branch's 128-wide half of the output slab
        out_ref[:, bi * PROJ_OUT:(bi + 1) * PROJ_OUT] = z.astype(out_ref.dtype)


# ----------------------------------------------------------------------------
# Wrapper: one pallas_call; all weights VMEM-resident, 8 inputs total.
# ----------------------------------------------------------------------------
def _branch_block() -> int:
    """2 => unroll both branches in one invocation (single-TC v5e/v6e).
       1 => one branch per grid step with 'parallel' semantics (v7x: 2 TCs)."""
    try:
        kind = jax.devices()[0].device_kind.lower()
    except Exception:
        kind = ""
    return 1 if "v7" in kind else 2


def _vmem_spec(arr, nb):
    block = (nb,) + tuple(arr.shape[1:])
    nrest = arr.ndim - 1
    return pl.BlockSpec(block, lambda b, _n=nrest: (b,) + (0,) * _n)


_PARAM_ORDER = ["wqkv", "wo", "wff1", "wff2", "pw1", "pw2", "vec"]


@jax.jit
def tfc_forward(params, x_in_t, x_in_f):
    B = x_in_t.shape[0]
    L = x_in_t.shape[-1]
    nb = _branch_block()                           # static (host-side) decision
    # stack branches: branch 0 = time (cols [0,128)), branch 1 = freq ([128,256))
    x = jnp.stack([x_in_t.reshape(B, L), x_in_f.reshape(B, L)], axis=0)     # (2, B, L)

    args = [x] + [params[n] for n in _PARAM_ORDER]
    in_specs = [_vmem_spec(a, nb) for a in args]

    return pl.pallas_call(
        tfc_kernel,
        out_shape=jax.ShapeDtypeStruct((B, 2 * PROJ_OUT), jnp.float32),
        grid=(2 // nb,),
        in_specs=in_specs,
        out_specs=pl.BlockSpec((B, nb * PROJ_OUT), lambda b: (0, b)),
        compiler_params=pltpu.CompilerParams(
            dimension_semantics=("parallel",)),    # v7x: branches across 2 TCs
    )(*args)


# ----------------------------------------------------------------------------
# Deterministic synthetic parameters, pre-packed/stacked for the fused kernel.
#   * matmul weights pre-transposed to (in, out), stored bf16
#   * wqkv packed (L, 3*NHEAD*SEG): every per-head Q/K/V segment starts at a
#     128-lane boundary; 1/sqrt(hd) folded into Q columns/bias
#   * all bias / gamma-beta / folded-BN vectors packed into one f32 slab per
#     branch (rows padded to the slab lane width)
# ----------------------------------------------------------------------------
def _nrm(k, shape, scale=0.05):
    return jax.random.normal(k, shape, dtype=jnp.float32) * scale


def init_tfc_params(key, L, num_layers=2):
    NB = 2                                         # time / freq branches
    assert L % NHEAD == 0
    hd = L // NHEAD
    assert hd <= SEG
    qscale = 1.0 / (hd ** 0.5)
    qkv_w = 3 * NHEAD * SEG
    vw = max(qkv_w, 2 * L, PROJ_HID)
    ks = jax.random.split(key, 16)

    wq = _nrm(ks[0], (NB, num_layers, L, L))
    wk = _nrm(ks[1], (NB, num_layers, L, L))
    wv = _nrm(ks[2], (NB, num_layers, L, L))
    bq = _nrm(ks[3], (NB, num_layers, L))
    bk = _nrm(ks[4], (NB, num_layers, L))
    bv = _nrm(ks[5], (NB, num_layers, L))

    wqkv = jnp.zeros((NB, num_layers, L, qkv_w), jnp.float32)
    bqkv = jnp.zeros((NB, num_layers, vw), jnp.float32)
    for h in range(NHEAD):
        hs = slice(h * hd, (h + 1) * hd)
        wqkv = wqkv.at[..., h * SEG:h * SEG + hd].set(wq[..., hs] * qscale)
        wqkv = wqkv.at[..., (NHEAD + h) * SEG:(NHEAD + h) * SEG + hd].set(wk[..., hs])
        wqkv = wqkv.at[..., (2 * NHEAD + h) * SEG:(2 * NHEAD + h) * SEG + hd].set(wv[..., hs])
        bqkv = bqkv.at[..., h * SEG:h * SEG + hd].set(bq[..., hs] * qscale)
        bqkv = bqkv.at[..., (NHEAD + h) * SEG:(NHEAD + h) * SEG + hd].set(bk[..., hs])
        bqkv = bqkv.at[..., (2 * NHEAD + h) * SEG:(2 * NHEAD + h) * SEG + hd].set(bv[..., hs])

    wo = _nrm(ks[6], (NB, num_layers, L, L))
    bo = _nrm(ks[7], (NB, num_layers, L))
    wff1 = _nrm(ks[8], (NB, num_layers, L, 2 * L))
    wff2 = _nrm(ks[9], (NB, num_layers, 2 * L, L))
    bff1 = jnp.zeros((NB, num_layers, 2 * L), jnp.float32)
    bff2 = jnp.zeros((NB, num_layers, L), jnp.float32)
    g1 = jnp.ones((NB, num_layers, L), jnp.float32)
    b1 = jnp.zeros((NB, num_layers, L), jnp.float32)
    g2 = jnp.ones((NB, num_layers, L), jnp.float32)
    b2 = jnp.zeros((NB, num_layers, L), jnp.float32)

    pw1 = _nrm(ks[10], (NB, L, PROJ_HID))
    pb1 = _nrm(ks[11], (NB, PROJ_HID))
    pw2 = _nrm(ks[12], (NB, PROJ_HID, PROJ_OUT))
    pb2 = _nrm(ks[13], (NB, PROJ_OUT))

    # eval-mode BatchNorm1d(256): gamma=1, beta=0, running_mean=0, running_var=1
    bn_scale = jnp.ones((NB, PROJ_HID), jnp.float32) / jnp.sqrt(1.0 + BN_EPS)
    bn_shift = jnp.zeros((NB, PROJ_HID), jnp.float32)

    n_rows = num_layers * _ROWS_PER_LAYER + 4
    n_rows_pad = ((n_rows + 7) // 8) * 8
    vec = jnp.zeros((NB, n_rows_pad, vw), jnp.float32)
    for l in range(num_layers):
        r0 = l * _ROWS_PER_LAYER
        vec = vec.at[:, r0 + _RV_BQKV, :vw].set(bqkv[:, l])
        vec = vec.at[:, r0 + _RV_BO, :L].set(bo[:, l])
        vec = vec.at[:, r0 + _RV_G1, :L].set(g1[:, l])
        vec = vec.at[:, r0 + _RV_B1, :L].set(b1[:, l])
        vec = vec.at[:, r0 + _RV_BFF1, :2 * L].set(bff1[:, l])
        vec = vec.at[:, r0 + _RV_BFF2, :L].set(bff2[:, l])
        vec = vec.at[:, r0 + _RV_G2, :L].set(g2[:, l])
        vec = vec.at[:, r0 + _RV_B2, :L].set(b2[:, l])
    pr = num_layers * _ROWS_PER_LAYER
    vec = vec.at[:, pr + _RP_PB1, :PROJ_HID].set(pb1)
    vec = vec.at[:, pr + _RP_BNS, :PROJ_HID].set(bn_scale)
    vec = vec.at[:, pr + _RP_BNB, :PROJ_HID].set(bn_shift)
    vec = vec.at[:, pr + _RP_PB2, :PROJ_OUT].set(pb2)

    bf = jnp.bfloat16
    return {
        "wqkv": wqkv.astype(bf),                   # (2, NL, L, 3*NHEAD*128)
        "wo": wo.astype(bf),                       # (2, NL, L, L)
        "wff1": wff1.astype(bf),                   # (2, NL, L, 2L)
        "wff2": wff2.astype(bf),                   # (2, NL, 2L, L)
        "pw1": pw1.astype(bf),                     # (2, L, 256)
        "pw2": pw2.astype(bf),                     # (2, 256, 128)
        "vec": vec,                                # (2, rows_pad, vw) f32 slab
    }


if __name__ == "__main__":
    key = jax.random.PRNGKey(0)
    B, L = 8, 64                      # TSlength_aligned = 64, batch = 8
    kx, kf, kp = jax.random.split(key, 3)
    x_in_t = jax.random.normal(kx, (B, 1, L), dtype=jnp.float32)
    x_in_f = jax.random.normal(kf, (B, 1, L), dtype=jnp.float32)

    params = init_tfc_params(kp, L)
    out = tfc_forward(params, x_in_t, x_in_f)
    out = jax.block_until_ready(out)

    assert out.shape == (B, 256), out.shape
    assert jnp.all(jnp.isfinite(out))
    print("KERNEL_OK")
</pallas_src>

<mosaic_0001>
module attributes {stable_mosaic.version = 11 : i64} {
  func.func @tfc_kernel(%arg0: i32, %arg1: memref<2x8x64xf32, #tpu.memory_space<vmem>>, %arg2: memref<2x2x64x768xbf16, #tpu.memory_space<vmem>>, %arg3: memref<2x2x64x64xbf16, #tpu.memory_space<vmem>>, %arg4: memref<2x2x64x128xbf16, #tpu.memory_space<vmem>>, %arg5: memref<2x2x128x64xbf16, #tpu.memory_space<vmem>>, %arg6: memref<2x64x256xbf16, #tpu.memory_space<vmem>>, %arg7: memref<2x256x128xbf16, #tpu.memory_space<vmem>>, %arg8: memref<2x24x768xf32, #tpu.memory_space<vmem>>, %arg9: memref<8x256xf32, #tpu.memory_space<vmem>>) attributes {dimension_semantics = [#tpu.dimension_semantics<parallel>], iteration_bounds = array<i64: 1>, scalar_prefetch = 0 : i64, scratch_operands = 0 : i64, tpu.core_type = #tpu.core_type<tc>, window_params = [{transform_indices = @transform_0, window_bounds = array<i64: 2, 8, 64>}, {transform_indices = @transform_1, window_bounds = array<i64: 2, 2, 64, 768>}, {transform_indices = @transform_2, window_bounds = array<i64: 2, 2, 64, 64>}, {transform_indices = @transform_3, window_bounds = array<i64: 2, 2, 64, 128>}, {transform_indices = @transform_4, window_bounds = array<i64: 2, 2, 128, 64>}, {transform_indices = @transform_5, window_bounds = array<i64: 2, 64, 256>}, {transform_indices = @transform_6, window_bounds = array<i64: 2, 256, 128>}, {transform_indices = @transform_7, window_bounds = array<i64: 2, 24, 768>}, {transform_indices = @transform_8, window_bounds = array<i64: 8, 256>}]} {
    %c0 = arith.constant 0 : index
    %c0_0 = arith.constant 0 : index
    %c0_1 = arith.constant 0 : index
    %0 = vector.load %arg1[%c0, %c0_0, %c0_1] : memref<2x8x64xf32, #tpu.memory_space<vmem>>, vector<1x8x64xf32>
    %1 = vector.shape_cast %0 : vector<1x8x64xf32> to vector<8x64xf32>
    %c0_2 = arith.constant 0 : index
    %c0_3 = arith.constant 0 : index
    %c0_4 = arith.constant 0 : index
    %2 = vector.load %arg8[%c0_2, %c0_3, %c0_4] : memref<2x24x768xf32, #tpu.memory_space<vmem>>, vector<1x1x768xf32>
    %3 = vector.shape_cast %2 : vector<1x1x768xf32> to vector<1x768xf32>
    %c0_5 = arith.constant 0 : index
    %c1 = arith.constant 1 : index
    %c0_6 = arith.constant 0 : index
    %4 = vector.load %arg8[%c0_5, %c1, %c0_6] : memref<2x24x768xf32, #tpu.memory_space<vmem>>, vector<1x1x64xf32>
    %5 = vector.shape_cast %4 : vector<1x1x64xf32> to vector<1x64xf32>
    %c0_7 = arith.constant 0 : index
    %c2 = arith.constant 2 : index
    %c0_8 = arith.constant 0 : index
    %6 = vector.load %arg8[%c0_7, %c2, %c0_8] : memref<2x24x768xf32, #tpu.memory_space<vmem>>, vector<1x1x64xf32>
    %7 = vector.shape_cast %6 : vector<1x1x64xf32> to vector<1x64xf32>
    %c0_9 = arith.constant 0 : index
    %c3 = arith.constant 3 : index
    %c0_10 = arith.constant 0 : index
    %8 = vector.load %arg8[%c0_9, %c3, %c0_10] : memref<2x24x768xf32, #tpu.memory_space<vmem>>, vector<1x1x64xf32>
    %9 = vector.shape_cast %8 : vector<1x1x64xf32> to vector<1x64xf32>
    %c0_11 = arith.constant 0 : index
    %c4 = arith.constant 4 : index
    %c0_12 = arith.constant 0 : index
    %10 = vector.load %arg8[%c0_11, %c4, %c0_12] : memref<2x24x768xf32, #tpu.memory_space<vmem>>, vector<1x1x128xf32>
    %11 = vector.shape_cast %10 : vector<1x1x128xf32> to vector<1x128xf32>
    %c0_13 = arith.constant 0 : index
    %c5 = arith.constant 5 : index
    %c0_14 = arith.constant 0 : index
    %12 = vector.load %arg8[%c0_13, %c5, %c0_14] : memref<2x24x768xf32, #tpu.memory_space<vmem>>, vector<1x1x64xf32>
    %13 = vector.shape_cast %12 : vector<1x1x64xf32> to vector<1x64xf32>
    %c0_15 = arith.constant 0 : index
    %c6 = arith.constant 6 : index
    %c0_16 = arith.constant 0 : index
    %14 = vector.load %arg8[%c0_15, %c6, %c0_16] : memref<2x24x768xf32, #tpu.memory_space<vmem>>, vector<1x1x64xf32>
    %15 = vector.shape_cast %14 : vector<1x1x64xf32> to vector<1x64xf32>
    %c0_17 = arith.constant 0 : index
    %c7 = arith.constant 7 : index
    %c0_18 = arith.constant 0 : index
    %16 = vector.load %arg8[%c0_17, %c7, %c0_18] : memref<2x24x768xf32, #tpu.memory_space<vmem>>, vector<1x1x64xf32>
    %17 = vector.shape_cast %16 : vector<1x1x64xf32> to vector<1x64xf32>
    %18 = arith.truncf %1 : vector<8x64xf32> to vector<8x64xbf16>
    %c0_19 = arith.constant 0 : index
    %c0_20 = arith.constant 0 : index
    %c0_21 = arith.constant 0 : index
    %c0_22 = arith.constant 0 : index
    %19 = vector.load %arg2[%c0_19, %c0_20, %c0_21, %c0_22] : memref<2x2x64x768xbf16, #tpu.memory_space<vmem>>, vector<1x1x64x768xbf16>
    %20 = vector.shape_cast %19 : vector<1x1x64x768xbf16> to vector<64x768xbf16>
    %cst = arith.constant dense<0.000000e+00> : vector<8x768xf32>
    %21 = tpu.matmul %18, %20, %cst {dimension_numbers = #tpu.dot_dimension_numbers<[1], [0], [0], [1], [0, 0, 1, 1], [], []>} : vector<8x64xbf16>, vector<64x768xbf16>, vector<8x768xf32> -> vector<8x768xf32>
    %22 = vector.broadcast %3 : vector<1x768xf32> to vector<8x768xf32>
    %23 = arith.addf %21, %22 : vector<8x768xf32>
    %24 = vector.extract_strided_slice %23 {offsets = [0, 0], sizes = [8, 32], strides = [1, 1]} : vector<8x768xf32> to vector<8x32xf32>
    %25 = arith.truncf %24 : vector<8x32xf32> to vector<8x32xbf16>
    %26 = vector.extract_strided_slice %23 {offsets = [0, 256], sizes = [8, 32], strides = [1, 1]} : vector<8x768xf32> to vector<8x32xf32>
    %27 = arith.truncf %26 : vector<8x32xf32> to vector<8x32xbf16>
    %28 = vector.extract_strided_slice %23 {offsets = [0, 512], sizes = [8, 32], strides = [1, 1]} : vector<8x768xf32> to vector<8x32xf32>
    %29 = arith.truncf %28 : vector<8x32xf32> to vector<8x32xbf16>
    %cst_23 = arith.constant dense<0.000000e+00> : vector<8x8xf32>
    %30 = tpu.matmul %25, %27, %cst_23 {dimension_numbers = #tpu.dot_dimension_numbers<[1], [1], [0], [0], [0, 0, 1, 0], [], []>} : vector<8x32xbf16>, vector<8x32xbf16>, vector<8x8xf32> -> vector<8x8xf32>
    %cst_24 = arith.constant dense<0xFF800000> : vector<8xf32>
    %31 = vector.multi_reduction <maximumf>, %30, %cst_24 [1] : vector<8x8xf32> to vector<8xf32>
    %32 = vector.shape_cast %31 : vector<8xf32> to vector<8x1xf32>
    %33 = vector.broadcast %32 : vector<8x1xf32> to vector<8x8xf32>
    %34 = arith.subf %30, %33 : vector<8x8xf32>
    %35 = math.exp %34 : vector<8x8xf32>
    %cst_25 = arith.constant dense<0.000000e+00> : vector<8xf32>
    %36 = vector.multi_reduction <add>, %35, %cst_25 [1] : vector<8x8xf32> to vector<8xf32>
    %37 = vector.shape_cast %36 : vector<8xf32> to vector<8x1xf32>
    %38 = tpu.reciprocal %37 {approx = true} : vector<8x1xf32> -> vector<8x1xf32>
    %39 = vector.broadcast %38 : vector<8x1xf32> to vector<8x8xf32>
    %40 = arith.mulf %35, %39 : vector<8x8xf32>
    %41 = arith.truncf %40 : vector<8x8xf32> to vector<8x8xbf16>
    %cst_26 = arith.constant dense<0.000000e+00> : vector<8x32xf32>
    %42 = tpu.matmul %41, %29, %cst_26 {dimension_numbers = #tpu.dot_dimension_numbers<[1], [0], [0], [1], [0, 0, 1, 1], [], []>} : vector<8x8xbf16>, vector<8x32xbf16>, vector<8x32xf32> -> vector<8x32xf32>
    %43 = vector.extract_strided_slice %23 {offsets = [0, 128], sizes = [8, 32], strides = [1, 1]} : vector<8x768xf32> to vector<8x32xf32>
    %44 = arith.truncf %43 : vector<8x32xf32> to vector<8x32xbf16>
    %45 = vector.extract_strided_slice %23 {offsets = [0, 384], sizes = [8, 32], strides = [1, 1]} : vector<8x768xf32> to vector<8x32xf32>
    %46 = arith.truncf %45 : vector<8x32xf32> to vector<8x32xbf16>
    %47 = vector.extract_strided_slice %23 {offsets = [0, 640], sizes = [8, 32], strides = [1, 1]} : vector<8x768xf32> to vector<8x32xf32>
    %48 = arith.truncf %47 : vector<8x32xf32> to vector<8x32xbf16>
    %cst_27 = arith.constant dense<0.000000e+00> : vector<8x8xf32>
    %49 = tpu.matmul %44, %46, %cst_27 {dimension_numbers = #tpu.dot_dimension_numbers<[1], [1], [0], [0], [0, 0, 1, 0], [], []>} : vector<8x32xbf16>, vector<8x32xbf16>, vector<8x8xf32> -> vector<8x8xf32>
    %cst_28 = arith.constant dense<0xFF800000> : vector<8xf32>
    %50 = vector.multi_reduction <maximumf>, %49, %cst_28 [1] : vector<8x8xf32> to vector<8xf32>
    %51 = vector.shape_cast %50 : vector<8xf32> to vector<8x1xf32>
    %52 = vector.broadcast %51 : vector<8x1xf32> to vector<8x8xf32>
    %53 = arith.subf %49, %52 : vector<8x8xf32>
    %54 = math.exp %53 : vector<8x8xf32>
    %cst_29 = arith.constant dense<0.000000e+00> : vector<8xf32>
    %55 = vector.multi_reduction <add>, %54, %cst_29 [1] : vector<8x8xf32> to vector<8xf32>
    %56 = vector.shape_cast %55 : vector<8xf32> to vector<8x1xf32>
    %57 = tpu.reciprocal %56 {approx = true} : vector<8x1xf32> -> vector<8x1xf32>
    %58 = vector.broadcast %57 : vector<8x1xf32> to vector<8x8xf32>
    %59 = arith.mulf %54, %58 : vector<8x8xf32>
    %60 = arith.truncf %59 : vector<8x8xf32> to vector<8x8xbf16>
    %cst_30 = arith.constant dense<0.000000e+00> : vector<8x32xf32>
    %61 = tpu.matmul %60, %48, %cst_30 {dimension_numbers = #tpu.dot_dimension_numbers<[1], [0], [0], [1], [0, 0, 1, 1], [], []>} : vector<8x8xbf16>, vector<8x32xbf16>, vector<8x32xf32> -> vector<8x32xf32>
    %62 = tpu.concatenate %42, %61 in 1 : vector<8x32xf32>, vector<8x32xf32> -> vector<8x64xf32>
    %63 = arith.truncf %62 : vector<8x64xf32> to vector<8x64xbf16>
    %c0_31 = arith.constant 0 : index
    %c0_32 = arith.constant 0 : index
    %c0_33 = arith.constant 0 : index
    %c0_34 = arith.constant 0 : index
    %64 = vector.load %arg3[%c0_31, %c0_32, %c0_33, %c0_34] : memref<2x2x64x64xbf16, #tpu.memory_space<vmem>>, vector<1x1x64x64xbf16>
    %65 = vector.shape_cast %64 : vector<1x1x64x64xbf16> to vector<64x64xbf16>
    %cst_35 = arith.constant dense<0.000000e+00> : vector<8x64xf32>
    %66 = tpu.matmul %63, %65, %cst_35 {dimension_numbers = #tpu.dot_dimension_numbers<[1], [0], [0], [1], [0, 0, 1, 1], [], []>} : vector<8x64xbf16>, vector<64x64xbf16>, vector<8x64xf32> -> vector<8x64xf32>
    %67 = vector.broadcast %5 : vector<1x64xf32> to vector<8x64xf32>
    %68 = arith.addf %66, %67 : vector<8x64xf32>
    %69 = arith.addf %1, %68 : vector<8x64xf32>
    %cst_36 = arith.constant dense<0.000000e+00> : vector<8xf32>
    %70 = vector.multi_reduction <add>, %69, %cst_36 [1] : vector<8x64xf32> to vector<8xf32>
    %71 = vector.shape_cast %70 : vector<8xf32> to vector<8x1xf32>
    %cst_37 = arith.constant 6.400000e+01 : f32
    %72 = vector.broadcast %cst_37 : f32 to vector<8x1xf32>
    %73 = arith.divf %71, %72 : vector<8x1xf32>
    %74 = vector.broadcast %73 : vector<8x1xf32> to vector<8x64xf32>
    %75 = arith.subf %69, %74 : vector<8x64xf32>
    %76 = arith.mulf %75, %75 : vector<8x64xf32>
    %cst_38 = arith.constant dense<0.000000e+00> : vector<8xf32>
    %77 = vector.multi_reduction <add>, %76, %cst_38 [1] : vector<8x64xf32> to vector<8xf32>
    %78 = vector.shape_cast %77 : vector<8xf32> to vector<8x1xf32>
    %cst_39 = arith.constant 6.400000e+01 : f32
    %79 = vector.broadcast %cst_39 : f32 to vector<8x1xf32>
    %80 = arith.divf %78, %79 : vector<8x1xf32>
    %81 = vector.broadcast %73 : vector<8x1xf32> to vector<8x64xf32>
    %82 = arith.subf %69, %81 : vector<8x64xf32>
    %cst_40 = arith.constant 9.99999974E-6 : f32
    %83 = vector.broadcast %cst_40 : f32 to vector<8x1xf32>
    %84 = arith.addf %80, %83 : vector<8x1xf32>
    %85 = math.rsqrt %84 : vector<8x1xf32>
    %86 = vector.broadcast %85 : vector<8x1xf32> to vector<8x64xf32>
    %87 = arith.mulf %82, %86 : vector<8x64xf32>
    %88 = vector.broadcast %7 : vector<1x64xf32> to vector<8x64xf32>
    %89 = arith.mulf %87, %88 : vector<8x64xf32>
    %90 = vector.broadcast %9 : vector<1x64xf32> to vector<8x64xf32>
    %91 = arith.addf %89, %90 : vector<8x64xf32>
    %92 = arith.truncf %91 : vector<8x64xf32> to vector<8x64xbf16>
    %c0_41 = arith.constant 0 : index
    %c0_42 = arith.constant 0 : index
    %c0_43 = arith.constant 0 : index
    %c0_44 = arith.constant 0 : index
    %93 = vector.load %arg4[%c0_41, %c0_42, %c0_43, %c0_44] : memref<2x2x64x128xbf16, #tpu.memory_space<vmem>>, vector<1x1x64x128xbf16>
    %94 = vector.shape_cast %93 : vector<1x1x64x128xbf16> to vector<64x128xbf16>
    %cst_45 = arith.constant dense<0.000000e+00> : vector<8x128xf32>
    %95 = tpu.matmul %92, %94, %cst_45 {dimension_numbers = #tpu.dot_dimension_numbers<[1], [0], [0], [1], [0, 0, 1, 1], [], []>} : vector<8x64xbf16>, vector<64x128xbf16>, vector<8x128xf32> -> vector<8x128xf32>
    %96 = vector.broadcast %11 : vector<1x128xf32> to vector<8x128xf32>
    %97 = arith.addf %95, %96 : vector<8x128xf32>
    %cst_46 = arith.constant 0.000000e+00 : f32
    %98 = vector.broadcast %cst_46 : f32 to vector<8x128xf32>
    %99 = arith.maximumf %97, %98 : vector<8x128xf32>
    %100 = arith.truncf %99 : vector<8x128xf32> to vector<8x128xbf16>
    %c0_47 = arith.constant 0 : index
    %c0_48 = arith.constant 0 : index
    %c0_49 = arith.constant 0 : index
    %c0_50 = arith.constant 0 : index
    %101 = vector.load %arg5[%c0_47, %c0_48, %c0_49, %c0_50] : memref<2x2x128x64xbf16, #tpu.memory_space<vmem>>, vector<1x1x128x64xbf16>
    %102 = vector.shape_cast %101 : vector<1x1x128x64xbf16> to vector<128x64xbf16>
    %cst_51 = arith.constant dense<0.000000e+00> : vector<8x64xf32>
    %103 = tpu.matmul %100, %102, %cst_51 {dimension_numbers = #tpu.dot_dimension_numbers<[1], [0], [0], [1], [0, 0, 1, 1], [], []>} : vector<8x128xbf16>, vector<128x64xbf16>, vector<8x64xf32> -> vector<8x64xf32>
    %104 = vector.broadcast %13 : vector<1x64xf32> to vector<8x64xf32>
    %105 = arith.addf %103, %104 : vector<8x64xf32>
    %106 = arith.addf %91, %105 : vector<8x64xf32>
    %cst_52 = arith.constant dense<0.000000e+00> : vector<8xf32>
    %107 = vector.multi_reduction <add>, %106, %cst_52 [1] : vector<8x64xf32> to vector<8xf32>
    %108 = vector.shape_cast %107 : vector<8xf32> to vector<8x1xf32>
    %cst_53 = arith.constant 6.400000e+01 : f32
    %109 = vector.broadcast %cst_53 : f32 to vector<8x1xf32>
    %110 = arith.divf %108, %109 : vector<8x1xf32>
    %111 = vector.broadcast %110 : vector<8x1xf32> to vector<8x64xf32>
    %112 = arith.subf %106, %111 : vector<8x64xf32>
    %113 = arith.mulf %112, %112 : vector<8x64xf32>
    %cst_54 = arith.constant dense<0.000000e+00> : vector<8xf32>
    %114 = vector.multi_reduction <add>, %113, %cst_54 [1] : vector<8x64xf32> to vector<8xf32>
    %115 = vector.shape_cast %114 : vector<8xf32> to vector<8x1xf32>
    %cst_55 = arith.constant 6.400000e+01 : f32
    %116 = vector.broadcast %cst_55 : f32 to vector<8x1xf32>
    %117 = arith.divf %115, %116 : vector<8x1xf32>
    %118 = vector.broadcast %110 : vector<8x1xf32> to vector<8x64xf32>
    %119 = arith.subf %106, %118 : vector<8x64xf32>
    %cst_56 = arith.constant 9.99999974E-6 : f32
    %120 = vector.broadcast %cst_56 : f32 to vector<8x1xf32>
    %121 = arith.addf %117, %120 : vector<8x1xf32>
    %122 = math.rsqrt %121 : vector<8x1xf32>
    %123 = vector.broadcast %122 : vector<8x1xf32> to vector<8x64xf32>
    %124 = arith.mulf %119, %123 : vector<8x64xf32>
    %125 = vector.broadcast %15 : vector<1x64xf32> to vector<8x64xf32>
    %126 = arith.mulf %124, %125 : vector<8x64xf32>
    %127 = vector.broadcast %17 : vector<1x64xf32> to vector<8x64xf32>
    %128 = arith.addf %126, %127 : vector<8x64xf32>
    %c0_57 = arith.constant 0 : index
    %c8 = arith.constant 8 : index
    %c0_58 = arith.constant 0 : index
    %129 = vector.load %arg8[%c0_57, %c8, %c0_58] : memref<2x24x768xf32, #tpu.memory_space<vmem>>, vector<1x1x768xf32>
    %130 = vector.shape_cast %129 : vector<1x1x768xf32> to vector<1x768xf32>
    %c0_59 = arith.constant 0 : index
    %c9 = arith.constant 9 : index
    %c0_60 = arith.constant 0 : index
    %131 = vector.load %arg8[%c0_59, %c9, %c0_60] : memref<2x24x768xf32, #tpu.memory_space<vmem>>, vector<1x1x64xf32>
    %132 = vector.shape_cast %131 : vector<1x1x64xf32> to vector<1x64xf32>
    %c0_61 = arith.constant 0 : index
    %c10 = arith.constant 10 : index
    %c0_62 = arith.constant 0 : index
    %133 = vector.load %arg8[%c0_61, %c10, %c0_62] : memref<2x24x768xf32, #tpu.memory_space<vmem>>, vector<1x1x64xf32>
    %134 = vector.shape_cast %133 : vector<1x1x64xf32> to vector<1x64xf32>
    %c0_63 = arith.constant 0 : index
    %c11 = arith.constant 11 : index
    %c0_64 = arith.constant 0 : index
    %135 = vector.load %arg8[%c0_63, %c11, %c0_64] : memref<2x24x768xf32, #tpu.memory_space<vmem>>, vector<1x1x64xf32>
    %136 = vector.shape_cast %135 : vector<1x1x64xf32> to vector<1x64xf32>
    %c0_65 = arith.constant 0 : index
    %c12 = arith.constant 12 : index
    %c0_66 = arith.constant 0 : index
    %137 = vector.load %arg8[%c0_65, %c12, %c0_66] : memref<2x24x768xf32, #tpu.memory_space<vmem>>, vector<1x1x128xf32>
    %138 = vector.shape_cast %137 : vector<1x1x128xf32> to vector<1x128xf32>
    %c0_67 = arith.constant 0 : index
    %c13 = arith.constant 13 : index
    %c0_68 = arith.constant 0 : index
    %139 = vector.load %arg8[%c0_67, %c13, %c0_68] : memref<2x24x768xf32, #tpu.memory_space<vmem>>, vector<1x1x64xf32>
    %140 = vector.shape_cast %139 : vector<1x1x64xf32> to vector<1x64xf32>
    %c0_69 = arith.constant 0 : index
    %c14 = arith.constant 14 : index
    %c0_70 = arith.constant 0 : index
    %141 = vector.load %arg8[%c0_69, %c14, %c0_70] : memref<2x24x768xf32, #tpu.memory_space<vmem>>, vector<1x1x64xf32>
    %142 = vector.shape_cast %141 : vector<1x1x64xf32> to vector<1x64xf32>
    %c0_71 = arith.constant 0 : index
    %c15 = arith.constant 15 : index
    %c0_72 = arith.constant 0 : index
    %143 = vector.load %arg8[%c0_71, %c15, %c0_72] : memref<2x24x768xf32, #tpu.memory_space<vmem>>, vector<1x1x64xf32>
    %144 = vector.shape_cast %143 : vector<1x1x64xf32> to vector<1x64xf32>
    %145 = arith.truncf %128 : vector<8x64xf32> to vector<8x64xbf16>
    %c0_73 = arith.constant 0 : index
    %c1_74 = arith.constant 1 : index
    %c0_75 = arith.constant 0 : index
    %c0_76 = arith.constant 0 : index
    %146 = vector.load %arg2[%c0_73, %c1_74, %c0_75, %c0_76] : memref<2x2x64x768xbf16, #tpu.memory_space<vmem>>, vector<1x1x64x768xbf16>
    %147 = vector.shape_cast %146 : vector<1x1x64x768xbf16> to vector<64x768xbf16>
    %cst_77 = arith.constant dense<0.000000e+00> : vector<8x768xf32>
    %148 = tpu.matmul %145, %147, %cst_77 {dimension_numbers = #tpu.dot_dimension_numbers<[1], [0], [0], [1], [0, 0, 1, 1], [], []>} : vector<8x64xbf16>, vector<64x768xbf16>, vector<8x768xf32> -> vector<8x768xf32>
    %149 = vector.broadcast %130 : vector<1x768xf32> to vector<8x768xf32>
    %150 = arith.addf %148, %149 : vector<8x768xf32>
    %151 = vector.extract_strided_slice %150 {offsets = [0, 0], sizes = [8, 32], strides = [1, 1]} : vector<8x768xf32> to vector<8x32xf32>
    %152 = arith.truncf %151 : vector<8x32xf32> to vector<8x32xbf16>
    %153 = vector.extract_strided_slice %150 {offsets = [0, 256], sizes = [8, 32], strides = [1, 1]} : vector<8x768xf32> to vector<8x32xf32>
    %154 = arith.truncf %153 : vector<8x32xf32> to vector<8x32xbf16>
    %155 = vector.extract_strided_slice %150 {offsets = [0, 512], sizes = [8, 32], strides = [1, 1]} : vector<8x768xf32> to vector<8x32xf32>
    %156 = arith.truncf %155 : vector<8x32xf32> to vector<8x32xbf16>
    %cst_78 = arith.constant dense<0.000000e+00> : vector<8x8xf32>
    %157 = tpu.matmul %152, %154, %cst_78 {dimension_numbers = #tpu.dot_dimension_numbers<[1], [1], [0], [0], [0, 0, 1, 0], [], []>} : vector<8x32xbf16>, vector<8x32xbf16>, vector<8x8xf32> -> vector<8x8xf32>
    %cst_79 = arith.constant dense<0xFF800000> : vector<8xf32>
    %158 = vector.multi_reduction <maximumf>, %157, %cst_79 [1] : vector<8x8xf32> to vector<8xf32>
    %159 = vector.shape_cast %158 : vector<8xf32> to vector<8x1xf32>
    %160 = vector.broadcast %159 : vector<8x1xf32> to vector<8x8xf32>
    %161 = arith.subf %157, %160 : vector<8x8xf32>
    %162 = math.exp %161 : vector<8x8xf32>
    %cst_80 = arith.constant dense<0.000000e+00> : vector<8xf32>
    %163 = vector.multi_reduction <add>, %162, %cst_80 [1] : vector<8x8xf32> to vector<8xf32>
    %164 = vector.shape_cast %163 : vector<8xf32> to vector<8x1xf32>
    %165 = tpu.reciprocal %164 {approx = true} : vector<8x1xf32> -> vector<8x1xf32>
    %166 = vector.broadcast %165 : vector<8x1xf32> to vector<8x8xf32>
    %167 = arith.mulf %162, %166 : vector<8x8xf32>
    %168 = arith.truncf %167 : vector<8x8xf32> to vector<8x8xbf16>
    %cst_81 = arith.constant dense<0.000000e+00> : vector<8x32xf32>
    %169 = tpu.matmul %168, %156, %cst_81 {dimension_numbers = #tpu.dot_dimension_numbers<[1], [0], [0], [1], [0, 0, 1, 1], [], []>} : vector<8x8xbf16>, vector<8x32xbf16>, vector<8x32xf32> -> vector<8x32xf32>
    %170 = vector.extract_strided_slice %150 {offsets = [0, 128], sizes = [8, 32], strides = [1, 1]} : vector<8x768xf32> to vector<8x32xf32>
    %171 = arith.truncf %170 : vector<8x32xf32> to vector<8x32xbf16>
    %172 = vector.extract_strided_slice %150 {offsets = [0, 384], sizes = [8, 32], strides = [1, 1]} : vector<8x768xf32> to vector<8x32xf32>
    %173 = arith.truncf %172 : vector<8x32xf32> to vector<8x32xbf16>
    %174 = vector.extract_strided_slice %150 {offsets = [0, 640], sizes = [8, 32], strides = [1, 1]} : vector<8x768xf32> to vector<8x32xf32>
    %175 = arith.truncf %174 : vector<8x32xf32> to vector<8x32xbf16>
    %cst_82 = arith.constant dense<0.000000e+00> : vector<8x8xf32>
    %176 = tpu.matmul %171, %173, %cst_82 {dimension_numbers = #tpu.dot_dimension_numbers<[1], [1], [0], [0], [0, 0, 1, 0], [], []>} : vector<8x32xbf16>, vector<8x32xbf16>, vector<8x8xf32> -> vector<8x8xf32>
    %cst_83 = arith.constant dense<0xFF800000> : vector<8xf32>
    %177 = vector.multi_reduction <maximumf>, %176, %cst_83 [1] : vector<8x8xf32> to vector<8xf32>
    %178 = vector.shape_cast %177 : vector<8xf32> to vector<8x1xf32>
    %179 = vector.broadcast %178 : vector<8x1xf32> to vector<8x8xf32>
    %180 = arith.subf %176, %179 : vector<8x8xf32>
    %181 = math.exp %180 : vector<8x8xf32>
    %cst_84 = arith.constant dense<0.000000e+00> : vector<8xf32>
    %182 = vector.multi_reduction <add>, %181, %cst_84 [1] : vector<8x8xf32> to vector<8xf32>
    %183 = vector.shape_cast %182 : vector<8xf32> to vector<8x1xf32>
    %184 = tpu.reciprocal %183 {approx = true} : vector<8x1xf32> -> vector<8x1xf32>
    %185 = vector.broadcast %184 : vector<8x1xf32> to vector<8x8xf32>
    %186 = arith.mulf %181, %185 : vector<8x8xf32>
    %187 = arith.truncf %186 : vector<8x8xf32> to vector<8x8xbf16>
    %cst_85 = arith.constant dense<0.000000e+00> : vector<8x32xf32>
    %188 = tpu.matmul %187, %175, %cst_85 {dimension_numbers = #tpu.dot_dimension_numbers<[1], [0], [0], [1], [0, 0, 1, 1], [], []>} : vector<8x8xbf16>, vector<8x32xbf16>, vector<8x32xf32> -> vector<8x32xf32>
    %189 = tpu.concatenate %169, %188 in 1 : vector<8x32xf32>, vector<8x32xf32> -> vector<8x64xf32>
    %190 = arith.truncf %189 : vector<8x64xf32> to vector<8x64xbf16>
    %c0_86 = arith.constant 0 : index
    %c1_87 = arith.constant 1 : index
    %c0_88 = arith.constant 0 : index
    %c0_89 = arith.constant 0 : index
    %191 = vector.load %arg3[%c0_86, %c1_87, %c0_88, %c0_89] : memref<2x2x64x64xbf16, #tpu.memory_space<vmem>>, vector<1x1x64x64xbf16>
    %192 = vector.shape_cast %191 : vector<1x1x64x64xbf16> to vector<64x64xbf16>
    %cst_90 = arith.constant dense<0.000000e+00> : vector<8x64xf32>
    %193 = tpu.matmul %190, %192, %cst_90 {dimension_numbers = #tpu.dot_dimension_numbers<[1], [0], [0], [1], [0, 0, 1, 1], [], []>} : vector<8x64xbf16>, vector<64x64xbf16>, vector<8x64xf32> -> vector<8x64xf32>
    %194 = vector.broadcast %132 : vector<1x64xf32> to vector<8x64xf32>
    %195 = arith.addf %193, %194 : vector<8x64xf32>
    %196 = arith.addf %128, %195 : vector<8x64xf32>
    %cst_91 = arith.constant dense<0.000000e+00> : vector<8xf32>
    %197 = vector.multi_reduction <add>, %196, %cst_91 [1] : vector<8x64xf32> to vector<8xf32>
    %198 = vector.shape_cast %197 : vector<8xf32> to vector<8x1xf32>
    %cst_92 = arith.constant 6.400000e+01 : f32
    %199 = vector.broadcast %cst_92 : f32 to vector<8x1xf32>
    %200 = arith.divf %198, %199 : vector<8x1xf32>
    %201 = vector.broadcast %200 : vector<8x1xf32> to vector<8x64xf32>
    %202 = arith.subf %196, %201 : vector<8x64xf32>
    %203 = arith.mulf %202, %202 : vector<8x64xf32>
    %cst_93 = arith.constant dense<0.000000e+00> : vector<8xf32>
    %204 = vector.multi_reduction <add>, %203, %cst_93 [1] : vector<8x64xf32> to vector<8xf32>
    %205 = vector.shape_cast %204 : vector<8xf32> to vector<8x1xf32>
    %cst_94 = arith.constant 6.400000e+01 : f32
    %206 = vector.broadcast %cst_94 : f32 to vector<8x1xf32>
    %207 = arith.divf %205, %206 : vector<8x1xf32>
    %208 = vector.broadcast %200 : vector<8x1xf32> to vector<8x64xf32>
    %209 = arith.subf %196, %208 : vector<8x64xf32>
    %cst_95 = arith.constant 9.99999974E-6 : f32
    %210 = vector.broadcast %cst_95 : f32 to vector<8x1xf32>
    %211 = arith.addf %207, %210 : vector<8x1xf32>
    %212 = math.rsqrt %211 : vector<8x1xf32>
    %213 = vector.broadcast %212 : vector<8x1xf32> to vector<8x64xf32>
    %214 = arith.mulf %209, %213 : vector<8x64xf32>
    %215 = vector.broadcast %134 : vector<1x64xf32> to vector<8x64xf32>
    %216 = arith.mulf %214, %215 : vector<8x64xf32>
    %217 = vector.broadcast %136 : vector<1x64xf32> to vector<8x64xf32>
    %218 = arith.addf %216, %217 : vector<8x64xf32>
    %219 = arith.truncf %218 : vector<8x64xf32> to vector<8x64xbf16>
    %c0_96 = arith.constant 0 : index
    %c1_97 = arith.constant 1 : index
    %c0_98 = arith.constant 0 : index
    %c0_99 = arith.constant 0 : index
    %220 = vector.load %arg4[%c0_96, %c1_97, %c0_98, %c0_99] : memref<2x2x64x128xbf16, #tpu.memory_space<vmem>>, vector<1x1x64x128xbf16>
    %221 = vector.shape_cast %220 : vector<1x1x64x128xbf16> to vector<64x128xbf16>
    %cst_100 = arith.constant dense<0.000000e+00> : vector<8x128xf32>
    %222 = tpu.matmul %219, %221, %cst_100 {dimension_numbers = #tpu.dot_dimension_numbers<[1], [0], [0], [1], [0, 0, 1, 1], [], []>} : vector<8x64xbf16>, vector<64x128xbf16>, vector<8x128xf32> -> vector<8x128xf32>
    %223 = vector.broadcast %138 : vector<1x128xf32> to vector<8x128xf32>
    %224 = arith.addf %222, %223 : vector<8x128xf32>
    %cst_101 = arith.constant 0.000000e+00 : f32
    %225 = vector.broadcast %cst_101 : f32 to vector<8x128xf32>
    %226 = arith.maximumf %224, %225 : vector<8x128xf32>
    %227 = arith.truncf %226 : vector<8x128xf32> to vector<8x128xbf16>
    %c0_102 = arith.constant 0 : index
    %c1_103 = arith.constant 1 : index
    %c0_104 = arith.constant 0 : index
    %c0_105 = arith.constant 0 : index
    %228 = vector.load %arg5[%c0_102, %c1_103, %c0_104, %c0_105] : memref<2x2x128x64xbf16, #tpu.memory_space<vmem>>, vector<1x1x128x64xbf16>
    %229 = vector.shape_cast %228 : vector<1x1x128x64xbf16> to vector<128x64xbf16>
    %cst_106 = arith.constant dense<0.000000e+00> : vector<8x64xf32>
    %230 = tpu.matmul %227, %229, %cst_106 {dimension_numbers = #tpu.dot_dimension_numbers<[1], [0], [0], [1], [0, 0, 1, 1], [], []>} : vector<8x128xbf16>, vector<128x64xbf16>, vector<8x64xf32> -> vector<8x64xf32>
    %231 = vector.broadcast %140 : vector<1x64xf32> to vector<8x64xf32>
    %232 = arith.addf %230, %231 : vector<8x64xf32>
    %233 = arith.addf %218, %232 : vector<8x64xf32>
    %cst_107 = arith.constant dense<0.000000e+00> : vector<8xf32>
    %234 = vector.multi_reduction <add>, %233, %cst_107 [1] : vector<8x64xf32> to vector<8xf32>
    %235 = vector.shape_cast %234 : vector<8xf32> to vector<8x1xf32>
    %cst_108 = arith.constant 6.400000e+01 : f32
    %236 = vector.broadcast %cst_108 : f32 to vector<8x1xf32>
    %237 = arith.divf %235, %236 : vector<8x1xf32>
    %238 = vector.broadcast %237 : vector<8x1xf32> to vector<8x64xf32>
    %239 = arith.subf %233, %238 : vector<8x64xf32>
    %240 = arith.mulf %239, %239 : vector<8x64xf32>
    %cst_109 = arith.constant dense<0.000000e+00> : vector<8xf32>
    %241 = vector.multi_reduction <add>, %240, %cst_109 [1] : vector<8x64xf32> to vector<8xf32>
    %242 = vector.shape_cast %241 : vector<8xf32> to vector<8x1xf32>
    %cst_110 = arith.constant 6.400000e+01 : f32
    %243 = vector.broadcast %cst_110 : f32 to vector<8x1xf32>
    %244 = arith.divf %242, %243 : vector<8x1xf32>
    %245 = vector.broadcast %237 : vector<8x1xf32> to vector<8x64xf32>
    %246 = arith.subf %233, %245 : vector<8x64xf32>
    %cst_111 = arith.constant 9.99999974E-6 : f32
    %247 = vector.broadcast %cst_111 : f32 to vector<8x1xf32>
    %248 = arith.addf %244, %247 : vector<8x1xf32>
    %249 = math.rsqrt %248 : vector<8x1xf32>
    %250 = vector.broadcast %249 : vector<8x1xf32> to vector<8x64xf32>
    %251 = arith.mulf %246, %250 : vector<8x64xf32>
    %252 = vector.broadcast %142 : vector<1x64xf32> to vector<8x64xf32>
    %253 = arith.mulf %251, %252 : vector<8x64xf32>
    %254 = vector.broadcast %144 : vector<1x64xf32> to vector<8x64xf32>
    %255 = arith.addf %253, %254 : vector<8x64xf32>
    %c0_112 = arith.constant 0 : index
    %c16 = arith.constant 16 : index
    %c0_113 = arith.constant 0 : index
    %256 = vector.load %arg8[%c0_112, %c16, %c0_113] : memref<2x24x768xf32, #tpu.memory_space<vmem>>, vector<1x1x256xf32>
    %257 = vector.shape_cast %256 : vector<1x1x256xf32> to vector<1x256xf32>
    %c0_114 = arith.constant 0 : index
    %c17 = arith.constant 17 : index
    %c0_115 = arith.constant 0 : index
    %258 = vector.load %arg8[%c0_114, %c17, %c0_115] : memref<2x24x768xf32, #tpu.memory_space<vmem>>, vector<1x1x256xf32>
    %259 = vector.shape_cast %258 : vector<1x1x256xf32> to vector<1x256xf32>
    %c0_116 = arith.constant 0 : index
    %c18 = arith.constant 18 : index
    %c0_117 = arith.constant 0 : index
    %260 = vector.load %arg8[%c0_116, %c18, %c0_117] : memref<2x24x768xf32, #tpu.memory_space<vmem>>, vector<1x1x256xf32>
    %261 = vector.shape_cast %260 : vector<1x1x256xf32> to vector<1x256xf32>
    %c0_118 = arith.constant 0 : index
    %c19 = arith.constant 19 : index
    %c0_119 = arith.constant 0 : index
    %262 = vector.load %arg8[%c0_118, %c19, %c0_119] : memref<2x24x768xf32, #tpu.memory_space<vmem>>, vector<1x1x128xf32>
    %263 = vector.shape_cast %262 : vector<1x1x128xf32> to vector<1x128xf32>
    %264 = arith.truncf %255 : vector<8x64xf32> to vector<8x64xbf16>
    %c0_120 = arith.constant 0 : index
    %c0_121 = arith.constant 0 : index
    %c0_122 = arith.constant 0 : index
    %265 = vector.load %arg6[%c0_120, %c0_121, %c0_122] : memref<2x64x256xbf16, #tpu.memory_space<vmem>>, vector<1x64x256xbf16>
    %266 = vector.shape_cast %265 : vector<1x64x256xbf16> to vector<64x256xbf16>
    %cst_123 = arith.constant dense<0.000000e+00> : vector<8x256xf32>
    %267 = tpu.matmul %264, %266, %cst_123 {dimension_numbers = #tpu.dot_dimension_numbers<[1], [0], [0], [1], [0, 0, 1, 1], [], []>} : vector<8x64xbf16>, vector<64x256xbf16>, vector<8x256xf32> -> vector<8x256xf32>
    %268 = vector.broadcast %257 : vector<1x256xf32> to vector<8x256xf32>
    %269 = arith.addf %267, %268 : vector<8x256xf32>
    %270 = vector.broadcast %259 : vector<1x256xf32> to vector<8x256xf32>
    %271 = arith.mulf %269, %270 : vector<8x256xf32>
    %272 = vector.broadcast %261 : vector<1x256xf32> to vector<8x256xf32>
    %273 = arith.addf %271, %272 : vector<8x256xf32>
    %cst_124 = arith.constant 0.000000e+00 : f32
    %274 = vector.broadcast %cst_124 : f32 to vector<8x256xf32>
    %275 = arith.maximumf %273, %274 : vector<8x256xf32>
    %276 = arith.truncf %275 : vector<8x256xf32> to vector<8x256xbf16>
    %c0_125 = arith.constant 0 : index
    %c0_126 = arith.constant 0 : index
    %c0_127 = arith.constant 0 : index
    %277 = vector.load %arg7[%c0_125, %c0_126, %c0_127] : memref<2x256x128xbf16, #tpu.memory_space<vmem>>, vector<1x256x128xbf16>
    %278 = vector.shape_cast %277 : vector<1x256x128xbf16> to vector<256x128xbf16>
    %cst_128 = arith.constant dense<0.000000e+00> : vector<8x128xf32>
    %279 = tpu.matmul %276, %278, %cst_128 {dimension_numbers = #tpu.dot_dimension_numbers<[1], [0], [0], [1], [0, 0, 1, 1], [], []>} : vector<8x256xbf16>, vector<256x128xbf16>, vector<8x128xf32> -> vector<8x128xf32>
    %280 = vector.broadcast %263 : vector<1x128xf32> to vector<8x128xf32>
    %281 = arith.addf %279, %280 : vector<8x128xf32>
    %c0_129 = arith.constant 0 : index
    %c0_130 = arith.constant 0 : index
    %282 = vector.load %arg9[%c0_129, %c0_130] : memref<8x256xf32, #tpu.memory_space<vmem>>, vector<8x128xf32>
    tpu.vector_store %arg9[%c0_129, %c0_130], %281 {strides = array<i32>} : memref<8x256xf32, #tpu.memory_space<vmem>>, vector<8x128xf32>,
    %c1_131 = arith.constant 1 : index
    %c0_132 = arith.constant 0 : index
    %c0_133 = arith.constant 0 : index
    %283 = vector.load %arg1[%c1_131, %c0_132, %c0_133] : memref<2x8x64xf32, #tpu.memory_space<vmem>>, vector<1x8x64xf32>
    %284 = vector.shape_cast %283 : vector<1x8x64xf32> to vector<8x64xf32>
    %c1_134 = arith.constant 1 : index
    %c0_135 = arith.constant 0 : index
    %c0_136 = arith.constant 0 : index
    %285 = vector.load %arg8[%c1_134, %c0_135, %c0_136] : memref<2x24x768xf32, #tpu.memory_space<vmem>>, vector<1x1x768xf32>
    %286 = vector.shape_cast %285 : vector<1x1x768xf32> to vector<1x768xf32>
    %c1_137 = arith.constant 1 : index
    %c1_138 = arith.constant 1 : index
    %c0_139 = arith.constant 0 : index
    %287 = vector.load %arg8[%c1_137, %c1_138, %c0_139] : memref<2x24x768xf32, #tpu.memory_space<vmem>>, vector<1x1x64xf32>
    %288 = vector.shape_cast %287 : vector<1x1x64xf32> to vector<1x64xf32>
    %c1_140 = arith.constant 1 : index
    %c2_141 = arith.constant 2 : index
    %c0_142 = arith.constant 0 : index
    %289 = vector.load %arg8[%c1_140, %c2_141, %c0_142] : memref<2x24x768xf32, #tpu.memory_space<vmem>>, vector<1x1x64xf32>
    %290 = vector.shape_cast %289 : vector<1x1x64xf32> to vector<1x64xf32>
    %c1_143 = arith.constant 1 : index
    %c3_144 = arith.constant 3 : index
    %c0_145 = arith.constant 0 : index
    %291 = vector.load %arg8[%c1_143, %c3_144, %c0_145] : memref<2x24x768xf32, #tpu.memory_space<vmem>>, vector<1x1x64xf32>
    %292 = vector.shape_cast %291 : vector<1x1x64xf32> to vector<1x64xf32>
    %c1_146 = arith.constant 1 : index
    %c4_147 = arith.constant 4 : index
    %c0_148 = arith.constant 0 : index
    %293 = vector.load %arg8[%c1_146, %c4_147, %c0_148] : memref<2x24x768xf32, #tpu.memory_space<vmem>>, vector<1x1x128xf32>
    %294 = vector.shape_cast %293 : vector<1x1x128xf32> to vector<1x128xf32>
    %c1_149 = arith.constant 1 : index
    %c5_150 = arith.constant 5 : index
    %c0_151 = arith.constant 0 : index
    %295 = vector.load %arg8[%c1_149, %c5_150, %c0_151] : memref<2x24x768xf32, #tpu.memory_space<vmem>>, vector<1x1x64xf32>
    %296 = vector.shape_cast %295 : vector<1x1x64xf32> to vector<1x64xf32>
    %c1_152 = arith.constant 1 : index
    %c6_153 = arith.constant 6 : index
    %c0_154 = arith.constant 0 : index
    %297 = vector.load %arg8[%c1_152, %c6_153, %c0_154] : memref<2x24x768xf32, #tpu.memory_space<vmem>>, vector<1x1x64xf32>
    %298 = vector.shape_cast %297 : vector<1x1x64xf32> to vector<1x64xf32>
    %c1_155 = arith.constant 1 : index
    %c7_156 = arith.constant 7 : index
    %c0_157 = arith.constant 0 : index
    %299 = vector.load %arg8[%c1_155, %c7_156, %c0_157] : memref<2x24x768xf32, #tpu.memory_space<vmem>>, vector<1x1x64xf32>
    %300 = vector.shape_cast %299 : vector<1x1x64xf32> to vector<1x64xf32>
    %301 = arith.truncf %284 : vector<8x64xf32> to vector<8x64xbf16>
    %c1_158 = arith.constant 1 : index
    %c0_159 = arith.constant 0 : index
    %c0_160 = arith.constant 0 : index
    %c0_161 = arith.constant 0 : index
    %302 = vector.load %arg2[%c1_158, %c0_159, %c0_160, %c0_161] : memref<2x2x64x768xbf16, #tpu.memory_space<vmem>>, vector<1x1x64x768xbf16>
    %303 = vector.shape_cast %302 : vector<1x1x64x768xbf16> to vector<64x768xbf16>
    %cst_162 = arith.constant dense<0.000000e+00> : vector<8x768xf32>
    %304 = tpu.matmul %301, %303, %cst_162 {dimension_numbers = #tpu.dot_dimension_numbers<[1], [0], [0], [1], [0, 0, 1, 1], [], []>} : vector<8x64xbf16>, vector<64x768xbf16>, vector<8x768xf32> -> vector<8x768xf32>
    %305 = vector.broadcast %286 : vector<1x768xf32> to vector<8x768xf32>
    %306 = arith.addf %304, %305 : vector<8x768xf32>
    %307 = vector.extract_strided_slice %306 {offsets = [0, 0], sizes = [8, 32], strides = [1, 1]} : vector<8x768xf32> to vector<8x32xf32>
    %308 = arith.truncf %307 : vector<8x32xf32> to vector<8x32xbf16>
    %309 = vector.extract_strided_slice %306 {offsets = [0, 256], sizes = [8, 32], strides = [1, 1]} : vector<8x768xf32> to vector<8x32xf32>
    %310 = arith.truncf %309 : vector<8x32xf32> to vector<8x32xbf16>
    %311 = vector.extract_strided_slice %306 {offsets = [0, 512], sizes = [8, 32], strides = [1, 1]} : vector<8x768xf32> to vector<8x32xf32>
    %312 = arith.truncf %311 : vector<8x32xf32> to vector<8x32xbf16>
    %cst_163 = arith.constant dense<0.000000e+00> : vector<8x8xf32>
    %313 = tpu.matmul %308, %310, %cst_163 {dimension_numbers = #tpu.dot_dimension_numbers<[1], [1], [0], [0], [0, 0, 1, 0], [], []>} : vector<8x32xbf16>, vector<8x32xbf16>, vector<8x8xf32> -> vector<8x8xf32>
    %cst_164 = arith.constant dense<0xFF800000> : vector<8xf32>
    %314 = vector.multi_reduction <maximumf>, %313, %cst_164 [1] : vector<8x8xf32> to vector<8xf32>
    %315 = vector.shape_cast %314 : vector<8xf32> to vector<8x1xf32>
    %316 = vector.broadcast %315 : vector<8x1xf32> to vector<8x8xf32>
    %317 = arith.subf %313, %316 : vector<8x8xf32>
    %318 = math.exp %317 : vector<8x8xf32>
    %cst_165 = arith.constant dense<0.000000e+00> : vector<8xf32>
    %319 = vector.multi_reduction <add>, %318, %cst_165 [1] : vector<8x8xf32> to vector<8xf32>
    %320 = vector.shape_cast %319 : vector<8xf32> to vector<8x1xf32>
    %321 = tpu.reciprocal %320 {approx = true} : vector<8x1xf32> -> vector<8x1xf32>
    %322 = vector.broadcast %321 : vector<8x1xf32> to vector<8x8xf32>
    %323 = arith.mulf %318, %322 : vector<8x8xf32>
    %324 = arith.truncf %323 : vector<8x8xf32> to vector<8x8xbf16>
    %cst_166 = arith.constant dense<0.000000e+00> : vector<8x32xf32>
    %325 = tpu.matmul %324, %312, %cst_166 {dimension_numbers = #tpu.dot_dimension_numbers<[1], [0], [0], [1], [0, 0, 1, 1], [], []>} : vector<8x8xbf16>, vector<8x32xbf16>, vector<8x32xf32> -> vector<8x32xf32>
    %326 = vector.extract_strided_slice %306 {offsets = [0, 128], sizes = [8, 32], strides = [1, 1]} : vector<8x768xf32> to vector<8x32xf32>
    %327 = arith.truncf %326 : vector<8x32xf32> to vector<8x32xbf16>
    %328 = vector.extract_strided_slice %306 {offsets = [0, 384], sizes = [8, 32], strides = [1, 1]} : vector<8x768xf32> to vector<8x32xf32>
    %329 = arith.truncf %328 : vector<8x32xf32> to vector<8x32xbf16>
    %330 = vector.extract_strided_slice %306 {offsets = [0, 640], sizes = [8, 32], strides = [1, 1]} : vector<8x768xf32> to vector<8x32xf32>
    %331 = arith.truncf %330 : vector<8x32xf32> to vector<8x32xbf16>
    %cst_167 = arith.constant dense<0.000000e+00> : vector<8x8xf32>
    %332 = tpu.matmul %327, %329, %cst_167 {dimension_numbers = #tpu.dot_dimension_numbers<[1], [1], [0], [0], [0, 0, 1, 0], [], []>} : vector<8x32xbf16>, vector<8x32xbf16>, vector<8x8xf32> -> vector<8x8xf32>
    %cst_168 = arith.constant dense<0xFF800000> : vector<8xf32>
    %333 = vector.multi_reduction <maximumf>, %332, %cst_168 [1] : vector<8x8xf32> to vector<8xf32>
    %334 = vector.shape_cast %333 : vector<8xf32> to vector<8x1xf32>
    %335 = vector.broadcast %334 : vector<8x1xf32> to vector<8x8xf32>
    %336 = arith.subf %332, %335 : vector<8x8xf32>
    %337 = math.exp %336 : vector<8x8xf32>
    %cst_169 = arith.constant dense<0.000000e+00> : vector<8xf32>
    %338 = vector.multi_reduction <add>, %337, %cst_169 [1] : vector<8x8xf32> to vector<8xf32>
    %339 = vector.shape_cast %338 : vector<8xf32> to vector<8x1xf32>
    %340 = tpu.reciprocal %339 {approx = true} : vector<8x1xf32> -> vector<8x1xf32>
    %341 = vector.broadcast %340 : vector<8x1xf32> to vector<8x8xf32>
    %342 = arith.mulf %337, %341 : vector<8x8xf32>
    %343 = arith.truncf %342 : vector<8x8xf32> to vector<8x8xbf16>
    %cst_170 = arith.constant dense<0.000000e+00> : vector<8x32xf32>
    %344 = tpu.matmul %343, %331, %cst_170 {dimension_numbers = #tpu.dot_dimension_numbers<[1], [0], [0], [1], [0, 0, 1, 1], [], []>} : vector<8x8xbf16>, vector<8x32xbf16>, vector<8x32xf32> -> vector<8x32xf32>
    %345 = tpu.concatenate %325, %344 in 1 : vector<8x32xf32>, vector<8x32xf32> -> vector<8x64xf32>
    %346 = arith.truncf %345 : vector<8x64xf32> to vector<8x64xbf16>
    %c1_171 = arith.constant 1 : index
    %c0_172 = arith.constant 0 : index
    %c0_173 = arith.constant 0 : index
    %c0_174 = arith.constant 0 : index
    %347 = vector.load %arg3[%c1_171, %c0_172, %c0_173, %c0_174] : memref<2x2x64x64xbf16, #tpu.memory_space<vmem>>, vector<1x1x64x64xbf16>
    %348 = vector.shape_cast %347 : vector<1x1x64x64xbf16> to vector<64x64xbf16>
    %cst_175 = arith.constant dense<0.000000e+00> : vector<8x64xf32>
    %349 = tpu.matmul %346, %348, %cst_175 {dimension_numbers = #tpu.dot_dimension_numbers<[1], [0], [0], [1], [0, 0, 1, 1], [], []>} : vector<8x64xbf16>, vector<64x64xbf16>, vector<8x64xf32> -> vector<8x64xf32>
    %350 = vector.broadcast %288 : vector<1x64xf32> to vector<8x64xf32>
    %351 = arith.addf %349, %350 : vector<8x64xf32>
    %352 = arith.addf %284, %351 : vector<8x64xf32>
    %cst_176 = arith.constant dense<0.000000e+00> : vector<8xf32>
    %353 = vector.multi_reduction <add>, %352, %cst_176 [1] : vector<8x64xf32> to vector<8xf32>
    %354 = vector.shape_cast %353 : vector<8xf32> to vector<8x1xf32>
    %cst_177 = arith.constant 6.400000e+01 : f32
    %355 = vector.broadcast %cst_177 : f32 to vector<8x1xf32>
    %356 = arith.divf %354, %355 : vector<8x1xf32>
    %357 = vector.broadcast %356 : vector<8x1xf32> to vector<8x64xf32>
    %358 = arith.subf %352, %357 : vector<8x64xf32>
    %359 = arith.mulf %358, %358 : vector<8x64xf32>
    %cst_178 = arith.constant dense<0.000000e+00> : vector<8xf32>
    %360 = vector.multi_reduction <add>, %359, %cst_178 [1] : vector<8x64xf32> to vector<8xf32>
    %361 = vector.shape_cast %360 : vector<8xf32> to vector<8x1xf32>
    %cst_179 = arith.constant 6.400000e+01 : f32
    %362 = vector.broadcast %cst_179 : f32 to vector<8x1xf32>
    %363 = arith.divf %361, %362 : vector<8x1xf32>
    %364 = vector.broadcast %356 : vector<8x1xf32> to vector<8x64xf32>
    %365 = arith.subf %352, %364 : vector<8x64xf32>
    %cst_180 = arith.constant 9.99999974E-6 : f32
    %366 = vector.broadcast %cst_180 : f32 to vector<8x1xf32>
    %367 = arith.addf %363, %366 : vector<8x1xf32>
    %368 = math.rsqrt %367 : vector<8x1xf32>
    %369 = vector.broadcast %368 : vector<8x1xf32> to vector<8x64xf32>
    %370 = arith.mulf %365, %369 : vector<8x64xf32>
    %371 = vector.broadcast %290 : vector<1x64xf32> to vector<8x64xf32>
    %372 = arith.mulf %370, %371 : vector<8x64xf32>
    %373 = vector.broadcast %292 : vector<1x64xf32> to vector<8x64xf32>
    %374 = arith.addf %372, %373 : vector<8x64xf32>
    %375 = arith.truncf %374 : vector<8x64xf32> to vector<8x64xbf16>
    %c1_181 = arith.constant 1 : index
    %c0_182 = arith.constant 0 : index
    %c0_183 = arith.constant 0 : index
    %c0_184 = arith.constant 0 : index
    %376 = vector.load %arg4[%c1_181, %c0_182, %c0_183, %c0_184] : memref<2x2x64x128xbf16, #tpu.memory_space<vmem>>, vector<1x1x64x128xbf16>
    %377 = vector.shape_cast %376 : vector<1x1x64x128xbf16> to vector<64x128xbf16>
    %cst_185 = arith.constant dense<0.000000e+00> : vector<8x128xf32>
    %378 = tpu.matmul %375, %377, %cst_185 {dimension_numbers = #tpu.dot_dimension_numbers<[1], [0], [0], [1], [0, 0, 1, 1], [], []>} : vector<8x64xbf16>, vector<64x128xbf16>, vector<8x128xf32> -> vector<8x128xf32>
    %379 = vector.broadcast %294 : vector<1x128xf32> to vector<8x128xf32>
    %380 = arith.addf %378, %379 : vector<8x128xf32>
    %cst_186 = arith.constant 0.000000e+00 : f32
    %381 = vector.broadcast %cst_186 : f32 to vector<8x128xf32>
    %382 = arith.maximumf %380, %381 : vector<8x128xf32>
    %383 = arith.truncf %382 : vector<8x128xf32> to vector<8x128xbf16>
    %c1_187 = arith.constant 1 : index
    %c0_188 = arith.constant 0 : index
    %c0_189 = arith.constant 0 : index
    %c0_190 = arith.constant 0 : index
    %384 = vector.load %arg5[%c1_187, %c0_188, %c0_189, %c0_190] : memref<2x2x128x64xbf16, #tpu.memory_space<vmem>>, vector<1x1x128x64xbf16>
    %385 = vector.shape_cast %384 : vector<1x1x128x64xbf16> to vector<128x64xbf16>
    %cst_191 = arith.constant dense<0.000000e+00> : vector<8x64xf32>
    %386 = tpu.matmul %383, %385, %cst_191 {dimension_numbers = #tpu.dot_dimension_numbers<[1], [0], [0], [1], [0, 0, 1, 1], [], []>} : vector<8x128xbf16>, vector<128x64xbf16>, vector<8x64xf32> -> vector<8x64xf32>
    %387 = vector.broadcast %296 : vector<1x64xf32> to vector<8x64xf32>
    %388 = arith.addf %386, %387 : vector<8x64xf32>
    %389 = arith.addf %374, %388 : vector<8x64xf32>
    %cst_192 = arith.constant dense<0.000000e+00> : vector<8xf32>
    %390 = vector.multi_reduction <add>, %389, %cst_192 [1] : vector<8x64xf32> to vector<8xf32>
    %391 = vector.shape_cast %390 : vector<8xf32> to vector<8x1xf32>
    %cst_193 = arith.constant 6.400000e+01 : f32
    %392 = vector.broadcast %cst_193 : f32 to vector<8x1xf32>
    %393 = arith.divf %391, %392 : vector<8x1xf32>
    %394 = vector.broadcast %393 : vector<8x1xf32> to vector<8x64xf32>
    %395 = arith.subf %389, %394 : vector<8x64xf32>
    %396 = arith.mulf %395, %395 : vector<8x64xf32>
    %cst_194 = arith.constant dense<0.000000e+00> : vector<8xf32>
    %397 = vector.multi_reduction <add>, %396, %cst_194 [1] : vector<8x64xf32> to vector<8xf32>
    %398 = vector.shape_cast %397 : vector<8xf32> to vector<8x1xf32>
    %cst_195 = arith.constant 6.400000e+01 : f32
    %399 = vector.broadcast %cst_195 : f32 to vector<8x1xf32>
    %400 = arith.divf %398, %399 : vector<8x1xf32>
    %401 = vector.broadcast %393 : vector<8x1xf32> to vector<8x64xf32>
    %402 = arith.subf %389, %401 : vector<8x64xf32>
    %cst_196 = arith.constant 9.99999974E-6 : f32
    %403 = vector.broadcast %cst_196 : f32 to vector<8x1xf32>
    %404 = arith.addf %400, %403 : vector<8x1xf32>
    %405 = math.rsqrt %404 : vector<8x1xf32>
    %406 = vector.broadcast %405 : vector<8x1xf32> to vector<8x64xf32>
    %407 = arith.mulf %402, %406 : vector<8x64xf32>
    %408 = vector.broadcast %298 : vector<1x64xf32> to vector<8x64xf32>
    %409 = arith.mulf %407, %408 : vector<8x64xf32>
    %410 = vector.broadcast %300 : vector<1x64xf32> to vector<8x64xf32>
    %411 = arith.addf %409, %410 : vector<8x64xf32>
    %c1_197 = arith.constant 1 : index
    %c8_198 = arith.constant 8 : index
    %c0_199 = arith.constant 0 : index
    %412 = vector.load %arg8[%c1_197, %c8_198, %c0_199] : memref<2x24x768xf32, #tpu.memory_space<vmem>>, vector<1x1x768xf32>
    %413 = vector.shape_cast %412 : vector<1x1x768xf32> to vector<1x768xf32>
    %c1_200 = arith.constant 1 : index
    %c9_201 = arith.constant 9 : index
    %c0_202 = arith.constant 0 : index
    %414 = vector.load %arg8[%c1_200, %c9_201, %c0_202] : memref<2x24x768xf32, #tpu.memory_space<vmem>>, vector<1x1x64xf32>
    %415 = vector.shape_cast %414 : vector<1x1x64xf32> to vector<1x64xf32>
    %c1_203 = arith.constant 1 : index
    %c10_204 = arith.constant 10 : index
    %c0_205 = arith.constant 0 : index
    %416 = vector.load %arg8[%c1_203, %c10_204, %c0_205] : memref<2x24x768xf32, #tpu.memory_space<vmem>>, vector<1x1x64xf32>
    %417 = vector.shape_cast %416 : vector<1x1x64xf32> to vector<1x64xf32>
    %c1_206 = arith.constant 1 : index
    %c11_207 = arith.constant 11 : index
    %c0_208 = arith.constant 0 : index
    %418 = vector.load %arg8[%c1_206, %c11_207, %c0_208] : memref<2x24x768xf32, #tpu.memory_space<vmem>>, vector<1x1x64xf32>
    %419 = vector.shape_cast %418 : vector<1x1x64xf32> to vector<1x64xf32>
    %c1_209 = arith.constant 1 : index
    %c12_210 = arith.constant 12 : index
    %c0_211 = arith.constant 0 : index
    %420 = vector.load %arg8[%c1_209, %c12_210, %c0_211] : memref<2x24x768xf32, #tpu.memory_space<vmem>>, vector<1x1x128xf32>
    %421 = vector.shape_cast %420 : vector<1x1x128xf32> to vector<1x128xf32>
    %c1_212 = arith.constant 1 : index
    %c13_213 = arith.constant 13 : index
    %c0_214 = arith.constant 0 : index
    %422 = vector.load %arg8[%c1_212, %c13_213, %c0_214] : memref<2x24x768xf32, #tpu.memory_space<vmem>>, vector<1x1x64xf32>
    %423 = vector.shape_cast %422 : vector<1x1x64xf32> to vector<1x64xf32>
    %c1_215 = arith.constant 1 : index
    %c14_216 = arith.constant 14 : index
    %c0_217 = arith.constant 0 : index
    %424 = vector.load %arg8[%c1_215, %c14_216, %c0_217] : memref<2x24x768xf32, #tpu.memory_space<vmem>>, vector<1x1x64xf32>
    %425 = vector.shape_cast %424 : vector<1x1x64xf32> to vector<1x64xf32>
    %c1_218 = arith.constant 1 : index
    %c15_219 = arith.constant 15 : index
    %c0_220 = arith.constant 0 : index
    %426 = vector.load %arg8[%c1_218, %c15_219, %c0_220] : memref<2x24x768xf32, #tpu.memory_space<vmem>>, vector<1x1x64xf32>
    %427 = vector.shape_cast %426 : vector<1x1x64xf32> to vector<1x64xf32>
    %428 = arith.truncf %411 : vector<8x64xf32> to vector<8x64xbf16>
    %c1_221 = arith.constant 1 : index
    %c1_222 = arith.constant 1 : index
    %c0_223 = arith.constant 0 : index
    %c0_224 = arith.constant 0 : index
    %429 = vector.load %arg2[%c1_221, %c1_222, %c0_223, %c0_224] : memref<2x2x64x768xbf16, #tpu.memory_space<vmem>>, vector<1x1x64x768xbf16>
    %430 = vector.shape_cast %429 : vector<1x1x64x768xbf16> to vector<64x768xbf16>
    %cst_225 = arith.constant dense<0.000000e+00> : vector<8x768xf32>
    %431 = tpu.matmul %428, %430, %cst_225 {dimension_numbers = #tpu.dot_dimension_numbers<[1], [0], [0], [1], [0, 0, 1, 1], [], []>} : vector<8x64xbf16>, vector<64x768xbf16>, vector<8x768xf32> -> vector<8x768xf32>
    %432 = vector.broadcast %413 : vector<1x768xf32> to vector<8x768xf32>
    %433 = arith.addf %431, %432 : vector<8x768xf32>
    %434 = vector.extract_strided_slice %433 {offsets = [0, 0], sizes = [8, 32], strides = [1, 1]} : vector<8x768xf32> to vector<8x32xf32>
    %435 = arith.truncf %434 : vector<8x32xf32> to vector<8x32xbf16>
    %436 = vector.extract_strided_slice %433 {offsets = [0, 256], sizes = [8, 32], strides = [1, 1]} : vector<8x768xf32> to vector<8x32xf32>
    %437 = arith.truncf %436 : vector<8x32xf32> to vector<8x32xbf16>
    %438 = vector.extract_strided_slice %433 {offsets = [0, 512], sizes = [8, 32], strides = [1, 1]} : vector<8x768xf32> to vector<8x32xf32>
    %439 = arith.truncf %438 : vector<8x32xf32> to vector<8x32xbf16>
    %cst_226 = arith.constant dense<0.000000e+00> : vector<8x8xf32>
    %440 = tpu.matmul %435, %437, %cst_226 {dimension_numbers = #tpu.dot_dimension_numbers<[1], [1], [0], [0], [0, 0, 1, 0], [], []>} : vector<8x32xbf16>, vector<8x32xbf16>, vector<8x8xf32> -> vector<8x8xf32>
    %cst_227 = arith.constant dense<0xFF800000> : vector<8xf32>
    %441 = vector.multi_reduction <maximumf>, %440, %cst_227 [1] : vector<8x8xf32> to vector<8xf32>
    %442 = vector.shape_cast %441 : vector<8xf32> to vector<8x1xf32>
    %443 = vector.broadcast %442 : vector<8x1xf32> to vector<8x8xf32>
    %444 = arith.subf %440, %443 : vector<8x8xf32>
    %445 = math.exp %444 : vector<8x8xf32>
    %cst_228 = arith.constant dense<0.000000e+00> : vector<8xf32>
    %446 = vector.multi_reduction <add>, %445, %cst_228 [1] : vector<8x8xf32> to vector<8xf32>
    %447 = vector.shape_cast %446 : vector<8xf32> to vector<8x1xf32>
    %448 = tpu.reciprocal %447 {approx = true} : vector<8x1xf32> -> vector<8x1xf32>
    %449 = vector.broadcast %448 : vector<8x1xf32> to vector<8x8xf32>
    %450 = arith.mulf %445, %449 : vector<8x8xf32>
    %451 = arith.truncf %450 : vector<8x8xf32> to vector<8x8xbf16>
    %cst_229 = arith.constant dense<0.000000e+00> : vector<8x32xf32>
    %452 = tpu.matmul %451, %439, %cst_229 {dimension_numbers = #tpu.dot_dimension_numbers<[1], [0], [0], [1], [0, 0, 1, 1], [], []>} : vector<8x8xbf16>, vector<8x32xbf16>, vector<8x32xf32> -> vector<8x32xf32>
    %453 = vector.extract_strided_slice %433 {offsets = [0, 128], sizes = [8, 32], strides = [1, 1]} : vector<8x768xf32> to vector<8x32xf32>
    %454 = arith.truncf %453 : vector<8x32xf32> to vector<8x32xbf16>
    %455 = vector.extract_strided_slice %433 {offsets = [0, 384], sizes = [8, 32], strides = [1, 1]} : vector<8x768xf32> to vector<8x32xf32>
    %456 = arith.truncf %455 : vector<8x32xf32> to vector<8x32xbf16>
    %457 = vector.extract_strided_slice %433 {offsets = [0, 640], sizes = [8, 32], strides = [1, 1]} : vector<8x768xf32> to vector<8x32xf32>
    %458 = arith.truncf %457 : vector<8x32xf32> to vector<8x32xbf16>
    %cst_230 = arith.constant dense<0.000000e+00> : vector<8x8xf32>
    %459 = tpu.matmul %454, %456, %cst_230 {dimension_numbers = #tpu.dot_dimension_numbers<[1], [1], [0], [0], [0, 0, 1, 0], [], []>} : vector<8x32xbf16>, vector<8x32xbf16>, vector<8x8xf32> -> vector<8x8xf32>
    %cst_231 = arith.constant dense<0xFF800000> : vector<8xf32>
    %460 = vector.multi_reduction <maximumf>, %459, %cst_231 [1] : vector<8x8xf32> to vector<8xf32>
    %461 = vector.shape_cast %460 : vector<8xf32> to vector<8x1xf32>
    %462 = vector.broadcast %461 : vector<8x1xf32> to vector<8x8xf32>
    %463 = arith.subf %459, %462 : vector<8x8xf32>
    %464 = math.exp %463 : vector<8x8xf32>
    %cst_232 = arith.constant dense<0.000000e+00> : vector<8xf32>
    %465 = vector.multi_reduction <add>, %464, %cst_232 [1] : vector<8x8xf32> to vector<8xf32>
    %466 = vector.shape_cast %465 : vector<8xf32> to vector<8x1xf32>
    %467 = tpu.reciprocal %466 {approx = true} : vector<8x1xf32> -> vector<8x1xf32>
    %468 = vector.broadcast %467 : vector<8x1xf32> to vector<8x8xf32>
    %469 = arith.mulf %464, %468 : vector<8x8xf32>
    %470 = arith.truncf %469 : vector<8x8xf32> to vector<8x8xbf16>
    %cst_233 = arith.constant dense<0.000000e+00> : vector<8x32xf32>
    %471 = tpu.matmul %470, %458, %cst_233 {dimension_numbers = #tpu.dot_dimension_numbers<[1], [0], [0], [1], [0, 0, 1, 1], [], []>} : vector<8x8xbf16>, vector<8x32xbf16>, vector<8x32xf32> -> vector<8x32xf32>
    %472 = tpu.concatenate %452, %471 in 1 : vector<8x32xf32>, vector<8x32xf32> -> vector<8x64xf32>
    %473 = arith.truncf %472 : vector<8x64xf32> to vector<8x64xbf16>
    %c1_234 = arith.constant 1 : index
    %c1_235 = arith.constant 1 : index
    %c0_236 = arith.constant 0 : index
    %c0_237 = arith.constant 0 : index
    %474 = vector.load %arg3[%c1_234, %c1_235, %c0_236, %c0_237] : memref<2x2x64x64xbf16, #tpu.memory_space<vmem>>, vector<1x1x64x64xbf16>
    %475 = vector.shape_cast %474 : vector<1x1x64x64xbf16> to vector<64x64xbf16>
    %cst_238 = arith.constant dense<0.000000e+00> : vector<8x64xf32>
    %476 = tpu.matmul %473, %475, %cst_238 {dimension_numbers = #tpu.dot_dimension_numbers<[1], [0], [0], [1], [0, 0, 1, 1], [], []>} : vector<8x64xbf16>, vector<64x64xbf16>, vector<8x64xf32> -> vector<8x64xf32>
    %477 = vector.broadcast %415 : vector<1x64xf32> to vector<8x64xf32>
    %478 = arith.addf %476, %477 : vector<8x64xf32>
    %479 = arith.addf %411, %478 : vector<8x64xf32>
    %cst_239 = arith.constant dense<0.000000e+00> : vector<8xf32>
    %480 = vector.multi_reduction <add>, %479, %cst_239 [1] : vector<8x64xf32> to vector<8xf32>
    %481 = vector.shape_cast %480 : vector<8xf32> to vector<8x1xf32>
    %cst_240 = arith.constant 6.400000e+01 : f32
    %482 = vector.broadcast %cst_240 : f32 to vector<8x1xf32>
    %483 = arith.divf %481, %482 : vector<8x1xf32>
    %484 = vector.broadcast %483 : vector<8x1xf32> to vector<8x64xf32>
    %485 = arith.subf %479, %484 : vector<8x64xf32>
    %486 = arith.mulf %485, %485 : vector<8x64xf32>
    %cst_241 = arith.constant dense<0.000000e+00> : vector<8xf32>
    %487 = vector.multi_reduction <add>, %486, %cst_241 [1] : vector<8x64xf32> to vector<8xf32>
    %488 = vector.shape_cast %487 : vector<8xf32> to vector<8x1xf32>
    %cst_242 = arith.constant 6.400000e+01 : f32
    %489 = vector.broadcast %cst_242 : f32 to vector<8x1xf32>
    %490 = arith.divf %488, %489 : vector<8x1xf32>
    %491 = vector.broadcast %483 : vector<8x1xf32> to vector<8x64xf32>
    %492 = arith.subf %479, %491 : vector<8x64xf32>
    %cst_243 = arith.constant 9.99999974E-6 : f32
    %493 = vector.broadcast %cst_243 : f32 to vector<8x1xf32>
    %494 = arith.addf %490, %493 : vector<8x1xf32>
    %495 = math.rsqrt %494 : vector<8x1xf32>
    %496 = vector.broadcast %495 : vector<8x1xf32> to vector<8x64xf32>
    %497 = arith.mulf %492, %496 : vector<8x64xf32>
    %498 = vector.broadcast %417 : vector<1x64xf32> to vector<8x64xf32>
    %499 = arith.mulf %497, %498 : vector<8x64xf32>
    %500 = vector.broadcast %419 : vector<1x64xf32> to vector<8x64xf32>
    %501 = arith.addf %499, %500 : vector<8x64xf32>
    %502 = arith.truncf %501 : vector<8x64xf32> to vector<8x64xbf16>
    %c1_244 = arith.constant 1 : index
    %c1_245 = arith.constant 1 : index
    %c0_246 = arith.constant 0 : index
    %c0_247 = arith.constant 0 : index
    %503 = vector.load %arg4[%c1_244, %c1_245, %c0_246, %c0_247] : memref<2x2x64x128xbf16, #tpu.memory_space<vmem>>, vector<1x1x64x128xbf16>
    %504 = vector.shape_cast %503 : vector<1x1x64x128xbf16> to vector<64x128xbf16>
    %cst_248 = arith.constant dense<0.000000e+00> : vector<8x128xf32>
    %505 = tpu.matmul %502, %504, %cst_248 {dimension_numbers = #tpu.dot_dimension_numbers<[1], [0], [0], [1], [0, 0, 1, 1], [], []>} : vector<8x64xbf16>, vector<64x128xbf16>, vector<8x128xf32> -> vector<8x128xf32>
    %506 = vector.broadcast %421 : vector<1x128xf32> to vector<8x128xf32>
    %507 = arith.addf %505, %506 : vector<8x128xf32>
    %cst_249 = arith.constant 0.000000e+00 : f32
    %508 = vector.broadcast %cst_249 : f32 to vector<8x128xf32>
    %509 = arith.maximumf %507, %508 : vector<8x128xf32>
    %510 = arith.truncf %509 : vector<8x128xf32> to vector<8x128xbf16>
    %c1_250 = arith.constant 1 : index
    %c1_251 = arith.constant 1 : index
    %c0_252 = arith.constant 0 : index
    %c0_253 = arith.constant 0 : index
    %511 = vector.load %arg5[%c1_250, %c1_251, %c0_252, %c0_253] : memref<2x2x128x64xbf16, #tpu.memory_space<vmem>>, vector<1x1x128x64xbf16>
    %512 = vector.shape_cast %511 : vector<1x1x128x64xbf16> to vector<128x64xbf16>
    %cst_254 = arith.constant dense<0.000000e+00> : vector<8x64xf32>
    %513 = tpu.matmul %510, %512, %cst_254 {dimension_numbers = #tpu.dot_dimension_numbers<[1], [0], [0], [1], [0, 0, 1, 1], [], []>} : vector<8x128xbf16>, vector<128x64xbf16>, vector<8x64xf32> -> vector<8x64xf32>
    %514 = vector.broadcast %423 : vector<1x64xf32> to vector<8x64xf32>
    %515 = arith.addf %513, %514 : vector<8x64xf32>
    %516 = arith.addf %501, %515 : vector<8x64xf32>
    %cst_255 = arith.constant dense<0.000000e+00> : vector<8xf32>
    %517 = vector.multi_reduction <add>, %516, %cst_255 [1] : vector<8x64xf32> to vector<8xf32>
    %518 = vector.shape_cast %517 : vector<8xf32> to vector<8x1xf32>
    %cst_256 = arith.constant 6.400000e+01 : f32
    %519 = vector.broadcast %cst_256 : f32 to vector<8x1xf32>
    %520 = arith.divf %518, %519 : vector<8x1xf32>
    %521 = vector.broadcast %520 : vector<8x1xf32> to vector<8x64xf32>
    %522 = arith.subf %516, %521 : vector<8x64xf32>
    %523 = arith.mulf %522, %522 : vector<8x64xf32>
    %cst_257 = arith.constant dense<0.000000e+00> : vector<8xf32>
    %524 = vector.multi_reduction <add>, %523, %cst_257 [1] : vector<8x64xf32> to vector<8xf32>
    %525 = vector.shape_cast %524 : vector<8xf32> to vector<8x1xf32>
    %cst_258 = arith.constant 6.400000e+01 : f32
    %526 = vector.broadcast %cst_258 : f32 to vector<8x1xf32>
    %527 = arith.divf %525, %526 : vector<8x1xf32>
    %528 = vector.broadcast %520 : vector<8x1xf32> to vector<8x64xf32>
    %529 = arith.subf %516, %528 : vector<8x64xf32>
    %cst_259 = arith.constant 9.99999974E-6 : f32
    %530 = vector.broadcast %cst_259 : f32 to vector<8x1xf32>
    %531 = arith.addf %527, %530 : vector<8x1xf32>
    %532 = math.rsqrt %531 : vector<8x1xf32>
    %533 = vector.broadcast %532 : vector<8x1xf32> to vector<8x64xf32>
    %534 = arith.mulf %529, %533 : vector<8x64xf32>
    %535 = vector.broadcast %425 : vector<1x64xf32> to vector<8x64xf32>
    %536 = arith.mulf %534, %535 : vector<8x64xf32>
    %537 = vector.broadcast %427 : vector<1x64xf32> to vector<8x64xf32>
    %538 = arith.addf %536, %537 : vector<8x64xf32>
    %c1_260 = arith.constant 1 : index
    %c16_261 = arith.constant 16 : index
    %c0_262 = arith.constant 0 : index
    %539 = vector.load %arg8[%c1_260, %c16_261, %c0_262] : memref<2x24x768xf32, #tpu.memory_space<vmem>>, vector<1x1x256xf32>
    %540 = vector.shape_cast %539 : vector<1x1x256xf32> to vector<1x256xf32>
    %c1_263 = arith.constant 1 : index
    %c17_264 = arith.constant 17 : index
    %c0_265 = arith.constant 0 : index
    %541 = vector.load %arg8[%c1_263, %c17_264, %c0_265] : memref<2x24x768xf32, #tpu.memory_space<vmem>>, vector<1x1x256xf32>
    %542 = vector.shape_cast %541 : vector<1x1x256xf32> to vector<1x256xf32>
    %c1_266 = arith.constant 1 : index
    %c18_267 = arith.constant 18 : index
    %c0_268 = arith.constant 0 : index
    %543 = vector.load %arg8[%c1_266, %c18_267, %c0_268] : memref<2x24x768xf32, #tpu.memory_space<vmem>>, vector<1x1x256xf32>
    %544 = vector.shape_cast %543 : vector<1x1x256xf32> to vector<1x256xf32>
    %c1_269 = arith.constant 1 : index
    %c19_270 = arith.constant 19 : index
    %c0_271 = arith.constant 0 : index
    %545 = vector.load %arg8[%c1_269, %c19_270, %c0_271] : memref<2x24x768xf32, #tpu.memory_space<vmem>>, vector<1x1x128xf32>
    %546 = vector.shape_cast %545 : vector<1x1x128xf32> to vector<1x128xf32>
    %547 = arith.truncf %538 : vector<8x64xf32> to vector<8x64xbf16>
    %c1_272 = arith.constant 1 : index
    %c0_273 = arith.constant 0 : index
    %c0_274 = arith.constant 0 : index
    %548 = vector.load %arg6[%c1_272, %c0_273, %c0_274] : memref<2x64x256xbf16, #tpu.memory_space<vmem>>, vector<1x64x256xbf16>
    %549 = vector.shape_cast %548 : vector<1x64x256xbf16> to vector<64x256xbf16>
    %cst_275 = arith.constant dense<0.000000e+00> : vector<8x256xf32>
    %550 = tpu.matmul %547, %549, %cst_275 {dimension_numbers = #tpu.dot_dimension_numbers<[1], [0], [0], [1], [0, 0, 1, 1], [], []>} : vector<8x64xbf16>, vector<64x256xbf16>, vector<8x256xf32> -> vector<8x256xf32>
    %551 = vector.broadcast %540 : vector<1x256xf32> to vector<8x256xf32>
    %552 = arith.addf %550, %551 : vector<8x256xf32>
    %553 = vector.broadcast %542 : vector<1x256xf32> to vector<8x256xf32>
    %554 = arith.mulf %552, %553 : vector<8x256xf32>
    %555 = vector.broadcast %544 : vector<1x256xf32> to vector<8x256xf32>
    %556 = arith.addf %554, %555 : vector<8x256xf32>
    %cst_276 = arith.constant 0.000000e+00 : f32
    %557 = vector.broadcast %cst_276 : f32 to vector<8x256xf32>
    %558 = arith.maximumf %556, %557 : vector<8x256xf32>
    %559 = arith.truncf %558 : vector<8x256xf32> to vector<8x256xbf16>
    %c1_277 = arith.constant 1 : index
    %c0_278 = arith.constant 0 : index
    %c0_279 = arith.constant 0 : index
    %560 = vector.load %arg7[%c1_277, %c0_278, %c0_279] : memref<2x256x128xbf16, #tpu.memory_space<vmem>>, vector<1x256x128xbf16>
    %561 = vector.shape_cast %560 : vector<1x256x128xbf16> to vector<256x128xbf16>
    %cst_280 = arith.constant dense<0.000000e+00> : vector<8x128xf32>
    %562 = tpu.matmul %559, %561, %cst_280 {dimension_numbers = #tpu.dot_dimension_numbers<[1], [0], [0], [1], [0, 0, 1, 1], [], []>} : vector<8x256xbf16>, vector<256x128xbf16>, vector<8x128xf32> -> vector<8x128xf32>
    %563 = vector.broadcast %546 : vector<1x128xf32> to vector<8x128xf32>
    %564 = arith.addf %562, %563 : vector<8x128xf32>
    %c0_281 = arith.constant 0 : index
    %c128 = arith.constant 128 : index
    %565 = vector.load %arg9[%c0_281, %c128] : memref<8x256xf32, #tpu.memory_space<vmem>>, vector<8x128xf32>
    tpu.vector_store %arg9[%c0_281, %c128], %564 {strides = array<i32>} : memref<8x256xf32, #tpu.memory_space<vmem>>, vector<8x128xf32>,
    return
  }
  func.func @transform_0(%arg0: i32) -> (i32, i32, i32) {
    %c0_i32 = arith.constant 0 : i32
    %c0_i32_0 = arith.constant 0 : i32
    %c0_i32_1 = arith.constant 0 : i32
    return %arg0, %c0_i32, %c0_i32_0 : i32, i32, i32
  }
  func.func @transform_1(%arg0: i32) -> (i32, i32, i32, i32) {
    %c0_i32 = arith.constant 0 : i32
    %c0_i32_0 = arith.constant 0 : i32
    %c0_i32_1 = arith.constant 0 : i32
    %c0_i32_2 = arith.constant 0 : i32
    return %arg0, %c0_i32, %c0_i32_0, %c0_i32_1 : i32, i32, i32, i32
  }
  func.func @transform_2(%arg0: i32) -> (i32, i32, i32, i32) {
    %c0_i32 = arith.constant 0 : i32
    %c0_i32_0 = arith.constant 0 : i32
    %c0_i32_1 = arith.constant 0 : i32
    %c0_i32_2 = arith.constant 0 : i32
    return %arg0, %c0_i32, %c0_i32_0, %c0_i32_1 : i32, i32, i32, i32
  }
  func.func @transform_3(%arg0: i32) -> (i32, i32, i32, i32) {
    %c0_i32 = arith.constant 0 : i32
    %c0_i32_0 = arith.constant 0 : i32
    %c0_i32_1 = arith.constant 0 : i32
    %c0_i32_2 = arith.constant 0 : i32
    return %arg0, %c0_i32, %c0_i32_0, %c0_i32_1 : i32, i32, i32, i32
  }
  func.func @transform_4(%arg0: i32) -> (i32, i32, i32, i32) {
    %c0_i32 = arith.constant 0 : i32
    %c0_i32_0 = arith.constant 0 : i32
    %c0_i32_1 = arith.constant 0 : i32
    %c0_i32_2 = arith.constant 0 : i32
    return %arg0, %c0_i32, %c0_i32_0, %c0_i32_1 : i32, i32, i32, i32
  }
  func.func @transform_5(%arg0: i32) -> (i32, i32, i32) {
    %c0_i32 = arith.constant 0 : i32
    %c0_i32_0 = arith.constant 0 : i32
    %c0_i32_1 = arith.constant 0 : i32
    return %arg0, %c0_i32, %c0_i32_0 : i32, i32, i32
  }
  func.func @transform_6(%arg0: i32) -> (i32, i32, i32) {
    %c0_i32 = arith.constant 0 : i32
    %c0_i32_0 = arith.constant 0 : i32
    %c0_i32_1 = arith.constant 0 : i32
    return %arg0, %c0_i32, %c0_i32_0 : i32, i32, i32
  }
  func.func @transform_7(%arg0: i32) -> (i32, i32, i32) {
    %c0_i32 = arith.constant 0 : i32
    %c0_i32_0 = arith.constant 0 : i32
    %c0_i32_1 = arith.constant 0 : i32
    return %arg0, %c0_i32, %c0_i32_0 : i32, i32, i32
  }
  func.func @transform_8(%arg0: i32) -> (i32, i32) {
    %c0_i32 = arith.constant 0 : i32
    %c0_i32_0 = arith.constant 0 : i32
    return %c0_i32, %arg0 : i32, i32
  }
}

</mosaic_0001>

<llo_original>
// kernel: tfc_forward.1
$region0: #{tfc_forward.1}
  #allocation0 [shape = 'u32[]', space=smem, size = 0x4, offset = 0x4, fixed_abs, tag = 'smem constant byte address 0x4 - core index']
  #allocation1 [shape = 'u32[144,128]{1,0:T(1,128)}', space=vmem, size = 0x12000, scoped, tag = 'internal scratch']
  %s0 = inlined_call_operand.vmem [shape: f32[2,8,64], index: 0, kind: input, shape index: {}]
  %s1 = inlined_call_operand.hbm [shape: bf16[2,2,64,768], index: 1, kind: input, shape index: {}]
  %s2 = inlined_call_operand.vmem [shape: bf16[2,2,64,64], index: 2, kind: input, shape index: {}]
  %s3 = inlined_call_operand.hbm [shape: bf16[2,2,64,128], index: 3, kind: input, shape index: {}]
  %s4 = inlined_call_operand.vmem [shape: bf16[2,2,128,64], index: 4, kind: input, shape index: {}]
  %s5 = inlined_call_operand.hbm [shape: bf16[2,64,256], index: 5, kind: input, shape index: {}]
  %s6 = inlined_call_operand.hbm [shape: bf16[2,256,128], index: 6, kind: input, shape index: {}]
  %s7 = inlined_call_operand.vmem [shape: f32[2,24,768], index: 7, kind: input, shape index: {}]
  %s8 = inlined_call_operand.hbm [shape: f32[8,256], index: 8, kind: output, shape index: {}]
  %s9 = sld [smem:[#allocation0]]
  $region58: #{tfc_forward.1} parent=0
    _
  %s11 = ssub.s32 1, %s9
  %s12 = scalar_select 0, %s11, %s9
  $region1: #{tfc_forward.1} parent=0
    #allocation2 [shape = 'u8[393216]{0}', space=vmem, size = 0x60000, scoped, tag = 'input window, operand 1, single buffered']
    #allocation3 [shape = 's32[1]{0}', space=sflag, size = 0x4, scoped, tag = 'scoped memory for tfc_forward.1']
    #allocation4 [shape = 's32[1]{0}', space=sflag, size = 0x4, scoped, tag = 'scoped memory for tfc_forward.1']
    #allocation5 [shape = 'u8[65536]{0}', space=vmem, size = 0x10000, scoped, tag = 'input window, operand 3, single buffered']
    #allocation6 [shape = 's32[1]{0}', space=sflag, size = 0x4, scoped, tag = 'scoped memory for tfc_forward.1']
    #allocation7 [shape = 'u8[65536]{0}', space=vmem, size = 0x10000, scoped, tag = 'input window, operand 5, single buffered']
    #allocation8 [shape = 'u8[131072]{0}', space=vmem, size = 0x20000, scoped, tag = 'input window, operand 6, single buffered']
    #allocation9 [shape = 's32[1]{0}', space=sflag, size = 0x4, scoped, tag = 'scoped memory for tfc_forward.1']
    #allocation10 [shape = 'u8[8192]{0}', space=vmem, size = 0x2000, scoped, tag = 'output window, operand 0, single buffered']
    %13 = vsyncpa [#allocation3], 0
    %14 = vsyncpa [#allocation6], 0
    %15 = vsyncpa [#allocation9], 0
    %16 = vsyncpa [#allocation4], 0
    // Predicated region
    $region2: #{tfc_forward.1} parent=1 // pred_check
      _
    $region3: #{tfc_forward.1} parent=1 // pred_check_branch
      %18 = sbr.rel (0) target = $region5
    $region4: #{tfc_forward.1} parent=1 // pred_region
      _
    $region5: #{tfc_forward.1} parent=1 // pred_fallthru
      _
    // Predicated region
    $region6: #{tfc_forward.1} parent=1 // pred_check
      _
    $region7: #{tfc_forward.1} parent=1 // pred_check_branch
      %20 = sbr.rel (0) target = $region9
    $region8: #{tfc_forward.1} parent=1 // pred_region
      %s22 = ssub.s32 12288, 12288
      %23 = vsyncadd [#allocation3], %s22
      %s24 = sshll.u32 [#allocation2], 4
      %s25 = int_to_ptr.vmem [resolvable:$true] %s24
      %30 = dma.hbm_to_vmem [thread:$0]  %s1, 12288, %s25, [#allocation3], 384, 384, 24
    $region9: #{tfc_forward.1} parent=1 // pred_fallthru
      _
    // Predicated region
    $region10: #{tfc_forward.1} parent=1 // pred_check
      _
    $region11: #{tfc_forward.1} parent=1 // pred_check_branch
      %32 = sbr.rel (0) target = $region13
    $region12: #{tfc_forward.1} parent=1 // pred_region
      _
    $region13: #{tfc_forward.1} parent=1 // pred_fallthru
      _
    // Predicated region
    $region14: #{tfc_forward.1} parent=1 // pred_check
      _
    $region15: #{tfc_forward.1} parent=1 // pred_check_branch
      %34 = sbr.rel (0) target = $region17
    $region16: #{tfc_forward.1} parent=1 // pred_region
      %s36 = ssub.s32 2048, 2048
      %37 = vsyncadd [#allocation6], %s36
      %s38 = sshll.u32 [#allocation5], 4
      %s39 = int_to_ptr.vmem [resolvable:$true] %s38
      %44 = dma.hbm_to_vmem [thread:$0]  %s3, 2048, %s39, [#allocation6], 64, 64, 4
    $region17: #{tfc_forward.1} parent=1 // pred_fallthru
      _
    // Predicated region
    $region18: #{tfc_forward.1} parent=1 // pred_check
      _
    $region19: #{tfc_forward.1} parent=1 // pred_check_branch
      %46 = sbr.rel (0) target = $region21
    $region20: #{tfc_forward.1} parent=1 // pred_region
      _
    $region21: #{tfc_forward.1} parent=1 // pred_fallthru
      _
    // Predicated region
    $region22: #{tfc_forward.1} parent=1 // pred_check
      _
    $region23: #{tfc_forward.1} parent=1 // pred_check_branch
      %48 = sbr.rel (0) target = $region25
    $region24: #{tfc_forward.1} parent=1 // pred_region
      %s50 = ssub.s32 2048, 2048
      %51 = vsyncadd [#allocation6], %s50
      %s52 = sshll.u32 [#allocation7], 4
      %s53 = int_to_ptr.vmem [resolvable:$true] %s52
      %58 = dma.hbm_to_vmem [thread:$0]  %s5, 2048, %s53, [#allocation6], 128, 128, 8
    $region25: #{tfc_forward.1} parent=1 // pred_fallthru
      _
    // Predicated region
    $region26: #{tfc_forward.1} parent=1 // pred_check
      _
    $region27: #{tfc_forward.1} parent=1 // pred_check_branch
      %60 = sbr.rel (0) target = $region29
    $region28: #{tfc_forward.1} parent=1 // pred_region
      %s62 = ssub.s32 4096, 4096
      %63 = vsyncadd [#allocation9], %s62
      %s64 = sshll.u32 [#allocation8], 4
      %s65 = int_to_ptr.vmem [resolvable:$true] %s64
      %70 = dma.hbm_to_vmem [thread:$0]  %s6, 4096, %s65, [#allocation9], 64, 64, 4
    $region29: #{tfc_forward.1} parent=1 // pred_fallthru
      _
    // Predicated region
    $region30: #{tfc_forward.1} parent=1 // pred_check
      _
    $region31: #{tfc_forward.1} parent=1 // pred_check_branch
      %72 = sbr.rel (0) target = $region33
    $region32: #{tfc_forward.1} parent=1 // pred_region
      _
    $region33: #{tfc_forward.1} parent=1 // pred_fallthru
      _
    // Predicated region
    $region34: #{tfc_forward.1} parent=1 // pred_check
      _
    $region35: #{tfc_forward.1} parent=1 // pred_check_branch
      %74 = sbr.rel (0) target = $region37
    $region36: #{tfc_forward.1} parent=1 // pred_region
      %75 = dma.done [#allocation3], 12288
    $region37: #{tfc_forward.1} parent=1 // pred_fallthru
      _
    // Predicated region
    $region38: #{tfc_forward.1} parent=1 // pred_check
      _
    $region39: #{tfc_forward.1} parent=1 // pred_check_branch
      %77 = sbr.rel (0) target = $region41
    $region40: #{tfc_forward.1} parent=1 // pred_region
      %78 = dma.done [#allocation6], 2048
    $region41: #{tfc_forward.1} parent=1 // pred_fallthru
      _
    // Predicated region
    $region42: #{tfc_forward.1} parent=1 // pred_check
      _
    $region43: #{tfc_forward.1} parent=1 // pred_check_branch
      %80 = sbr.rel (0) target = $region45
    $region44: #{tfc_forward.1} parent=1 // pred_region
      %81 = dma.done [#allocation6], 2048
    $region45: #{tfc_forward.1} parent=1 // pred_fallthru
      _
    // Predicated region
    $region46: #{tfc_forward.1} parent=1 // pred_check
      _
    $region47: #{tfc_forward.1} parent=1 // pred_check_branch
      %83 = sbr.rel (0) target = $region49
    $region48: #{tfc_forward.1} parent=1 // pred_region
      %84 = dma.done [#allocation9], 4096
    $region49: #{tfc_forward.1} parent=1 // pred_fallthru
      _
    %v86 = vld [vmem:[%s0] sm:$0xff]
    %v87 = vld [vmem:[%s7] ss:$8 sm:$0xf]
    %v88 = vld [vmem:[%s7] ss:$8 sm:$0x30]
    %v89 = vor.u32 %v87, %v88
    %v90 = vld [vmem:[%s7 + $0x1] ss:$0 sm:$0xff]
    %v91 = vld [vmem:[%s7 + $0x2] ss:$0 sm:$0xff]
    %v92 = vld [vmem:[%s7 + $0x3] ss:$0 sm:$0xff]
    %v93 = vld [vmem:[%s7 + $0x4] ss:$0 sm:$0xff]
    %v94 = vld [vmem:[%s7 + $0x5] ss:$0 sm:$0xff]
    %v95 = vld [vmem:[%s7 + $0x6] ss:$0 sm:$0xff]
    %v96 = vld [vmem:[%s7 + $0x7] ss:$0 sm:$0xff]
    %v97 = vpack.c.bf16 %v86, %v86
    %v98 = vld [vmem:[#allocation2] sm:$0xff]
    %v99 = vld [vmem:[#allocation2 + $0x8] sm:$0xff]
    %v100 = vld [vmem:[#allocation2 + $0x10] sm:$0xff]
    %v101 = vld [vmem:[#allocation2 + $0x18] sm:$0xff]
    %v102 = vld [vmem:[#allocation2 + $0x20] sm:$0xff]
    %v103 = vld [vmem:[#allocation2 + $0x28] sm:$0xff]
    %v104 = vld [vmem:[#allocation2 + $0x30] sm:$0xff]
    %v105 = vld [vmem:[#allocation2 + $0x38] sm:$0xff]
    %v106 = vld [vmem:[#allocation2 + $0x40] sm:$0xff]
    %v107 = vld [vmem:[#allocation2 + $0x48] sm:$0xff]
    %v108 = vld [vmem:[#allocation2 + $0x50] sm:$0xff]
    %v109 = vld [vmem:[#allocation2 + $0x58] sm:$0xff]
    %v110 = vld [vmem:[#allocation2 + $0x60] sm:$0xff]
    %v111 = vld [vmem:[#allocation2 + $0x68] sm:$0xff]
    %v112 = vld [vmem:[#allocation2 + $0x70] sm:$0xff]
    %v113 = vld [vmem:[#allocation2 + $0x78] sm:$0xff]
    %v114 = vld [vmem:[#allocation2 + $0x80] sm:$0xff]
    %v115 = vld [vmem:[#allocation2 + $0x88] sm:$0xff]
    %v116 = vld [vmem:[#allocation2 + $0x90] sm:$0xff]
    %v117 = vld [vmem:[#allocation2 + $0x98] sm:$0xff]
    %v118 = vld [vmem:[#allocation2 + $0xa0] sm:$0xff]
    %v119 = vld [vmem:[#allocation2 + $0xa8] sm:$0xff]
    %v120 = vld [vmem:[#allocation2 + $0xb0] sm:$0xff]
    %v121 = vld [vmem:[#allocation2 + $0xb8] sm:$0xff]
    %v123 = vlaneseq
    %v124 = vshrl.u32 %v123, 7
    %v125 = vsub.s32 0, %v124
    %v126 = vrot.slane %v89, %v125
    %v127 = vlaneseq
    %v128 = vshrl.u32 %v127, 7
    %v129 = vsub.s32 1, %v128
    %v130 = vrot.slane %v89, %v129
    %v131 = vlaneseq
    %v132 = vshrl.u32 %v131, 7
    %v133 = vsub.s32 2, %v132
    %v134 = vrot.slane %v89, %v133
    %v135 = vlaneseq
    %v136 = vshrl.u32 %v135, 7
    %v137 = vsub.s32 3, %v136
    %v138 = vrot.slane %v89, %v137
    %v139 = vlaneseq
    %v140 = vshrl.u32 %v139, 7
    %v141 = vsub.s32 4, %v140
    %v142 = vrot.slane %v89, %v141
    %v143 = vlaneseq
    %v144 = vshrl.u32 %v143, 7
    %v145 = vsub.s32 5, %v144
    %v146 = vrot.slane %v89, %v145
    %v177 = vunpack.c.l.b16 %v98
    %v178 = vunpack.c.h.b16 %v98
    %v179 = vunpack.c.l.b16 %v99
    %v180 = vunpack.c.h.b16 %v99
    %v181 = vunpack.c.l.b16 %v100
    %v182 = vunpack.c.h.b16 %v100
    %v183 = vunpack.c.l.b16 %v101
    %v184 = vunpack.c.h.b16 %v101
    %v185 = vunpack.c.l.b16 %v102
    %v186 = vunpack.c.h.b16 %v102
    %v187 = vunpack.c.l.b16 %v103
    %v188 = vunpack.c.h.b16 %v103
    %v189 = vunpack.c.l.b16 %v104
    %v190 = vunpack.c.h.b16 %v104
    %v191 = vunpack.c.l.b16 %v105
    %v192 = vunpack.c.h.b16 %v105
    %v193 = vunpack.c.l.b16 %v106
    %v194 = vunpack.c.h.b16 %v106
    %v195 = vunpack.c.l.b16 %v107
    %v196 = vunpack.c.h.b16 %v107
    %v197 = vunpack.c.l.b16 %v108
    %v198 = vunpack.c.h.b16 %v108
    %v199 = vunpack.c.l.b16 %v109
    %v200 = vunpack.c.h.b16 %v109
    %v201 = vunpack.c.l.b16 %v110
    %v202 = vunpack.c.h.b16 %v110
    %v203 = vunpack.c.l.b16 %v111
    %v204 = vunpack.c.h.b16 %v111
    %v205 = vunpack.c.l.b16 %v112
    %v206 = vunpack.c.h.b16 %v112
    %v207 = vunpack.c.l.b16 %v113
    %v208 = vunpack.c.h.b16 %v113
    %v209 = vunpack.c.l.b16 %v114
    %v210 = vunpack.c.h.b16 %v114
    %v211 = vunpack.c.l.b16 %v115
    %v212 = vunpack.c.h.b16 %v115
    %v213 = vunpack.c.l.b16 %v116
    %v214 = vunpack.c.h.b16 %v116
    %v215 = vunpack.c.l.b16 %v117
    %v216 = vunpack.c.h.b16 %v117
    %v217 = vunpack.c.l.b16 %v118
    %v218 = vunpack.c.h.b16 %v118
    %v219 = vunpack.c.l.b16 %v119
    %v220 = vunpack.c.h.b16 %v119
    %v221 = vunpack.c.l.b16 %v120
    %v222 = vunpack.c.h.b16 %v120
    %v223 = vunpack.c.l.b16 %v121
    %v224 = vunpack.c.h.b16 %v121
    %v225 = vpack.c.b16 %v183, %v177
    %v226 = vpack.c.b16 %v184, %v178
    %v227 = vpack.c.b16 %v185, %v179
    %v228 = vpack.c.b16 %v186, %v180
    %v229 = vpack.c.b16 %v187, %v181
    %v230 = vpack.c.b16 %v188, %v182
    %v231 = vpack.c.b16 %v195, %v189
    %v232 = vpack.c.b16 %v196, %v190
    %v233 = vpack.c.b16 %v197, %v191
    %v234 = vpack.c.b16 %v198, %v192
    %v235 = vpack.c.b16 %v199, %v193
    %v236 = vpack.c.b16 %v200, %v194
    %v237 = vpack.c.b16 %v207, %v201
    %v238 = vpack.c.b16 %v208, %v202
    %v239 = vpack.c.b16 %v209, %v203
    %v240 = vpack.c.b16 %v210, %v204
    %v241 = vpack.c.b16 %v211, %v205
    %v242 = vpack.c.b16 %v212, %v206
    %v243 = vpack.c.b16 %v219, %v213
    %v244 = vpack.c.b16 %v220, %v214
    %v245 = vpack.c.b16 %v221, %v215
    %v246 = vpack.c.b16 %v222, %v216
    %v247 = vpack.c.b16 %v223, %v217
    %v248 = vpack.c.b16 %v224, %v218
    %vm273 = vcmask 523264
    %v275 = vsel %vm273, %v97, 0
    %277 = vmatprep.subr.bf16.mxu0 %v226
    %278 = vmatpush1.bf16.msra.mxu0 %v225
    %279 = vmatprep.subr.bf16.mxu0 %v232
    %280 = vmatpush1.bf16.msra.mxu0 %v231
    %281 = vmatprep.subr.bf16.mxu0 %v238
    %282 = vmatpush1.bf16.msra.mxu0 %v237
    %283 = vmatprep.subr.bf16.mxu0 %v244
    %284 = vmatpush1.bf16.msra.mxu0 %v243
    %285 = vmatprep.subr.bf16.mxu0 0
    %286 = vmatpush1.bf16.msra.mxu0 0
    %287 = vmatprep.subr.bf16.mxu0 0
    %288 = vmatpush1.bf16.msra.mxu0 0
    %289 = vmatprep.subr.bf16.mxu0 0
    %290 = vmatpush1.bf16.msra.mxu0 0
    %291 = vmatprep.subr.bf16.mxu0 0
    %292 = vmatpush1.bf16.msra.mxu0 0
    %293 = vmatprep.subr.bf16.mxu0 0
    %294 = vmatpush1.bf16.msra.mxu0 0
    %295 = vmatprep.subr.bf16.mxu0 0
    %296 = vmatpush1.bf16.msra.mxu0 0
    %297 = vmatprep.subr.bf16.mxu0 0
    %298 = vmatpush1.bf16.msra.mxu0 0
    %299 = vmatprep.subr.bf16.mxu0 0
    %300 = vmatpush1.bf16.msra.mxu0 0
    %301 = vmatprep.subr.bf16.mxu0 0
    %302 = vmatpush1.bf16.msra.mxu0 0
    %303 = vmatprep.subr.bf16.mxu0 0
    %304 = vmatpush1.bf16.msra.mxu0 0
    %305 = vmatprep.subr.bf16.mxu0 0
    %306 = vmatpush1.bf16.msra.mxu0 0
    %307 = vmatprep.subr.bf16.mxu0 0
    %308 = vmatpush1.bf16.msra.mxu0 0
    %309 = vmatprep.mubr.bf16.mxu0 0
    %310 = vmatmul.mubr.bf16.gmra.mrb[0].mxu0 %v275
    %v311 = vpop.f32.mrb[0].mxu0
    %v312 = vadd.f32 %v126, %v311
    %v313 = vpop.f32.mrb[0].mxu0
    %v314 = vadd.f32 %v130, %v313
    %v315 = vpop.f32.mrb[0].mxu0
    %v316 = vpop.f32.mrb[0].mxu0
    %317 = vdwg.mxu0
    %318 = vmatprep.subr.bf16.mxu0 %v228
    %319 = vmatpush1.bf16.msra.mxu0 %v227
    %320 = vmatprep.subr.bf16.mxu0 %v234
    %321 = vmatpush1.bf16.msra.mxu0 %v233
    %322 = vmatprep.subr.bf16.mxu0 %v240
    %323 = vmatpush1.bf16.msra.mxu0 %v239
    %324 = vmatprep.subr.bf16.mxu0 %v246
    %325 = vmatpush1.bf16.msra.mxu0 %v245
    %326 = vmatprep.subr.bf16.mxu0 0
    %327 = vmatpush1.bf16.msra.mxu0 0
    %328 = vmatprep.subr.bf16.mxu0 0
    %329 = vmatpush1.bf16.msra.mxu0 0
    %330 = vmatprep.subr.bf16.mxu0 0
    %331 = vmatpush1.bf16.msra.mxu0 0
    %332 = vmatprep.subr.bf16.mxu0 0
    %333 = vmatpush1.bf16.msra.mxu0 0
    %334 = vmatprep.subr.bf16.mxu0 0
    %335 = vmatpush1.bf16.msra.mxu0 0
    %336 = vmatprep.subr.bf16.mxu0 0
    %337 = vmatpush1.bf16.msra.mxu0 0
    %338 = vmatprep.subr.bf16.mxu0 0
    %339 = vmatpush1.bf16.msra.mxu0 0
    %340 = vmatprep.subr.bf16.mxu0 0
    %341 = vmatpush1.bf16.msra.mxu0 0
    %342 = vmatprep.subr.bf16.mxu0 0
    %343 = vmatpush1.bf16.msra.mxu0 0
    %344 = vmatprep.subr.bf16.mxu0 0
    %345 = vmatpush1.bf16.msra.mxu0 0
    %346 = vmatprep.subr.bf16.mxu0 0
    %347 = vmatpush1.bf16.msra.mxu0 0
    %348 = vmatprep.subr.bf16.mxu0 0
    %349 = vmatpush1.bf16.msra.mxu0 0
    %350 = vmatprep.mubr.bf16.mxu0 0
    %351 = vmatmul.mubr.bf16.gmra.mrb[0].mxu0 %v275
    %v352 = vpop.f32.mrb[0].mxu0
    %v353 = vadd.f32 %v134, %v352
    %v354 = vpop.f32.mrb[0].mxu0
    %v355 = vadd.f32 %v138, %v354
    %v356 = vpop.f32.mrb[0].mxu0
    %v357 = vpop.f32.mrb[0].mxu0
    %358 = vdwg.mxu0
    %359 = vmatprep.subr.bf16.mxu0 %v230
    %360 = vmatpush1.bf16.msra.mxu0 %v229
    %361 = vmatprep.subr.bf16.mxu0 %v236
    %362 = vmatpush1.bf16.msra.mxu0 %v235
    %363 = vmatprep.subr.bf16.mxu0 %v242
    %364 = vmatpush1.bf16.msra.mxu0 %v241
    %365 = vmatprep.subr.bf16.mxu0 %v248
    %366 = vmatpush1.bf16.msra.mxu0 %v247
    %367 = vmatprep.subr.bf16.mxu0 0
    %368 = vmatpush1.bf16.msra.mxu0 0
    %369 = vmatprep.subr.bf16.mxu0 0
    %370 = vmatpush1.bf16.msra.mxu0 0
    %371 = vmatprep.subr.bf16.mxu0 0
    %372 = vmatpush1.bf16.msra.mxu0 0
    %373 = vmatprep.subr.bf16.mxu0 0
    %374 = vmatpush1.bf16.msra.mxu0 0
    %375 = vmatprep.subr.bf16.mxu0 0
    %376 = vmatpush1.bf16.msra.mxu0 0
    %377 = vmatprep.subr.bf16.mxu0 0
    %378 = vmatpush1.bf16.msra.mxu0 0
    %379 = vmatprep.subr.bf16.mxu0 0
    %380 = vmatpush1.bf16.msra.mxu0 0
    %381 = vmatprep.subr.bf16.mxu0 0
    %382 = vmatpush1.bf16.msra.mxu0 0
    %383 = vmatprep.subr.bf16.mxu0 0
    %384 = vmatpush1.bf16.msra.mxu0 0
    %385 = vmatprep.subr.bf16.mxu0 0
    %386 = vmatpush1.bf16.msra.mxu0 0
    %387 = vmatprep.subr.bf16.mxu0 0
    %388 = vmatpush1.bf16.msra.mxu0 0
    %389 = vmatprep.subr.bf16.mxu0 0
    %390 = vmatpush1.bf16.msra.mxu0 0
    %391 = vmatprep.mubr.bf16.mxu0 0
    %392 = vmatmul.mubr.bf16.gmra.mrb[0].mxu0 %v275
    %v393 = vpop.f32.mrb[0].mxu0
    %v394 = vadd.f32 %v142, %v393
    %v395 = vpop.f32.mrb[0].mxu0
    %v396 = vadd.f32 %v146, %v395
    %v397 = vpop.f32.mrb[0].mxu0
    %v398 = vpop.f32.mrb[0].mxu0
    %399 = vdwg.mxu0
    %v400 = vpack.c.bf16 %v312, %v312
    %v401 = vpack.c.bf16 %v353, %v353
    %v402 = vpack.c.bf16 %v394, %v394
    %vm403 = vcmask 261120
    %v405 = vsel %vm403, %v400, 0
    %v408 = vsel %vm403, %v401, 0
    %410 = vmatprep.subr.bf16.mxu0 0
    %411 = vmatpush1.bf16.xpose.msra.mxu0 %v408
    %412 = vmatprep.subr.bf16.mxu0 0
    %413 = vmatpush1.bf16.xpose.msra.mxu0 0
    %414 = vmatprep.subr.bf16.mxu0 0
    %415 = vmatpush1.bf16.xpose.msra.mxu0 0
    %416 = vmatprep.subr.bf16.mxu0 0
    %417 = vmatpush1.bf16.xpose.msra.mxu0 0
    %418 = vmatprep.subr.bf16.mxu0 0
    %419 = vmatpush1.bf16.xpose.msra.mxu0 0
    %420 = vmatprep.subr.bf16.mxu0 0
    %421 = vmatpush1.bf16.xpose.msra.mxu0 0
    %422 = vmatprep.subr.bf16.mxu0 0
    %423 = vmatpush1.bf16.xpose.msra.mxu0 0
    %424 = vmatprep.subr.bf16.mxu0 0
    %425 = vmatpush1.bf16.xpose.msra.mxu0 0
    %426 = vmatprep.subr.bf16.mxu0 0
    %427 = vmatpush1.bf16.xpose.msra.mxu0 0
    %428 = vmatprep.subr.bf16.mxu0 0
    %429 = vmatpush1.bf16.xpose.msra.mxu0 0
    %430 = vmatprep.subr.bf16.mxu0 0
    %431 = vmatpush1.bf16.xpose.msra.mxu0 0
    %432 = vmatprep.subr.bf16.mxu0 0
    %433 = vmatpush1.bf16.xpose.msra.mxu0 0
    %434 = vmatprep.subr.bf16.mxu0 0
    %435 = vmatpush1.bf16.xpose.msra.mxu0 0
    %436 = vmatprep.subr.bf16.mxu0 0
    %437 = vmatpush1.bf16.xpose.msra.mxu0 0
    %438 = vmatprep.subr.bf16.mxu0 0
    %439 = vmatpush1.bf16.xpose.msra.mxu0 0
    %440 = vmatprep.subr.bf16.mxu0 0
    %441 = vmatpush1.bf16.xpose.msra.mxu0 0
    %442 = vmatprep.mubr.bf16.mxu0 0
    %443 = vmatmul.mubr.bf16.gmra.mrb[0].mxu0 %v405
    %v444 = vpop.f32.mrb[0].mxu0
    %v445 = vadd.f32 0.0, %v444
    %v446 = vpop.f32.mrb[0].mxu0
    %v447 = vpop.f32.mrb[0].mxu0
    %v448 = vpop.f32.mrb[0].mxu0
    %449 = vdwg.mxu0
    %vm450 = vcmask 64512
    %v451 = vsel %vm450, %v445, -inf
    %452 = vmax.xlane.f32.xlu0 %v451
    %v453 = vpop.xlane.xlu0 %452
    %v454 = vsub.f32 %v445, %v453
    %v455 = vmul.f32 %v454, 1.442695
    %v456 = vpow.pop %v455
    %v457 = vsel %vm450, %v456, 0.0
    %458 = vadd.xlane.f32.xlu0 %v457
    %v459 = vpop.xlane.xlu0 %458
    %v460 = vrcp.pop %v459
    %v461 = vmul.f32 %v456, %v460
    %v462 = vpack.c.bf16 %v461, %v461
    %v464 = vsel %vm450, %v462, 0
    %vm466 = vcmask 1043456
    %v468 = vsel %vm466, %v402, 0
    %470 = vmatprep.subr.bf16.mxu0 0
    %471 = vmatpush1.bf16.msra.mxu0 %v468
    %472 = vmatprep.subr.bf16.mxu0 0
    %473 = vmatpush1.bf16.msra.mxu0 0
    %474 = vmatprep.subr.bf16.mxu0 0
    %475 = vmatpush1.bf16.msra.mxu0 0
    %476 = vmatprep.subr.bf16.mxu0 0
    %477 = vmatpush1.bf16.msra.mxu0 0
    %478 = vmatprep.subr.bf16.mxu0 0
    %479 = vmatpush1.bf16.msra.mxu0 0
    %480 = vmatprep.subr.bf16.mxu0 0
    %481 = vmatpush1.bf16.msra.mxu0 0
    %482 = vmatprep.subr.bf16.mxu0 0
    %483 = vmatpush1.bf16.msra.mxu0 0
    %484 = vmatprep.subr.bf16.mxu0 0
    %485 = vmatpush1.bf16.msra.mxu0 0
    %486 = vmatprep.subr.bf16.mxu0 0
    %487 = vmatpush1.bf16.msra.mxu0 0
    %488 = vmatprep.subr.bf16.mxu0 0
    %489 = vmatpush1.bf16.msra.mxu0 0
    %490 = vmatprep.subr.bf16.mxu0 0
    %491 = vmatpush1.bf16.msra.mxu0 0
    %492 = vmatprep.subr.bf16.mxu0 0
    %493 = vmatpush1.bf16.msra.mxu0 0
    %494 = vmatprep.subr.bf16.mxu0 0
    %495 = vmatpush1.bf16.msra.mxu0 0
    %496 = vmatprep.subr.bf16.mxu0 0
    %497 = vmatpush1.bf16.msra.mxu0 0
    %498 = vmatprep.subr.bf16.mxu0 0
    %499 = vmatpush1.bf16.msra.mxu0 0
    %500 = vmatprep.subr.bf16.mxu0 0
    %501 = vmatpush1.bf16.msra.mxu0 0
    %502 = vmatprep.mubr.bf16.mxu0 0
    %503 = vmatmul.mubr.bf16.gmra.mrb[0].mxu0 %v464
    %v504 = vpop.f32.mrb[0].mxu0
    %v505 = vadd.f32 0.0, %v504
    %v506 = vpop.f32.mrb[0].mxu0
    %v507 = vpop.f32.mrb[0].mxu0
    %v508 = vpop.f32.mrb[0].mxu0
    %509 = vdwg.mxu0
    %v510 = vpack.c.bf16 %v314, %v314
    %v511 = vpack.c.bf16 %v355, %v355
    %v512 = vpack.c.bf16 %v396, %v396
    %v514 = vsel %vm403, %v510, 0
    %v517 = vsel %vm403, %v511, 0
    %519 = vmatprep.subr.bf16.mxu0 0
    %520 = vmatpush1.bf16.xpose.msra.mxu0 %v517
    %521 = vmatprep.subr.bf16.mxu0 0
    %522 = vmatpush1.bf16.xpose.msra.mxu0 0
    %523 = vmatprep.subr.bf16.mxu0 0
    %524 = vmatpush1.bf16.xpose.msra.mxu0 0
    %525 = vmatprep.subr.bf16.mxu0 0
    %526 = vmatpush1.bf16.xpose.msra.mxu0 0
    %527 = vmatprep.subr.bf16.mxu0 0
    %528 = vmatpush1.bf16.xpose.msra.mxu0 0
    %529 = vmatprep.subr.bf16.mxu0 0
    %530 = vmatpush1.bf16.xpose.msra.mxu0 0
    %531 = vmatprep.subr.bf16.mxu0 0
    %532 = vmatpush1.bf16.xpose.msra.mxu0 0
    %533 = vmatprep.subr.bf16.mxu0 0
    %534 = vmatpush1.bf16.xpose.msra.mxu0 0
    %535 = vmatprep.subr.bf16.mxu0 0
    %536 = vmatpush1.bf16.xpose.msra.mxu0 0
    %537 = vmatprep.subr.bf16.mxu0 0
    %538 = vmatpush1.bf16.xpose.msra.mxu0 0
    %539 = vmatprep.subr.bf16.mxu0 0
    %540 = vmatpush1.bf16.xpose.msra.mxu0 0
    %541 = vmatprep.subr.bf16.mxu0 0
    %542 = vmatpush1.bf16.xpose.msra.mxu0 0
    %543 = vmatprep.subr.bf16.mxu0 0
    %544 = vmatpush1.bf16.xpose.msra.mxu0 0
    %545 = vmatprep.subr.bf16.mxu0 0
    %546 = vmatpush1.bf16.xpose.msra.mxu0 0
    %547 = vmatprep.subr.bf16.mxu0 0
    %548 = vmatpush1.bf16.xpose.msra.mxu0 0
    %549 = vmatprep.subr.bf16.mxu0 0
    %550 = vmatpush1.bf16.xpose.msra.mxu0 0
    %551 = vmatprep.mubr.bf16.mxu0 0
    %552 = vmatmul.mubr.bf16.gmra.mrb[0].mxu0 %v514
    %v553 = vpop.f32.mrb[0].mxu0
    %v554 = vadd.f32 0.0, %v553
    %v555 = vpop.f32.mrb[0].mxu0
    %v556 = vpop.f32.mrb[0].mxu0
    %v557 = vpop.f32.mrb[0].mxu0
    %558 = vdwg.mxu0
    %v559 = vsel %vm450, %v554, -inf
    %560 = vmax.xlane.f32.xlu0 %v559
    %v561 = vpop.xlane.xlu0 %560
    %v562 = vsub.f32 %v554, %v561
    %v563 = vmul.f32 %v562, 1.442695
    %v564 = vpow.pop %v563
    %v565 = vsel %vm450, %v564, 0.0
    %566 = vadd.xlane.f32.xlu0 %v565
    %v567 = vpop.xlane.xlu0 %566
    %v568 = vrcp.pop %v567
    %v569 = vmul.f32 %v564, %v568
    %v570 = vpack.c.bf16 %v569, %v569
    %v572 = vsel %vm450, %v570, 0
    %v575 = vsel %vm466, %v512, 0
    %577 = vmatprep.subr.bf16.mxu0 0
    %578 = vmatpush1.bf16.msra.mxu0 %v575
    %579 = vmatprep.subr.bf16.mxu0 0
    %580 = vmatpush1.bf16.msra.mxu0 0
    %581 = vmatprep.subr.bf16.mxu0 0
    %582 = vmatpush1.bf16.msra.mxu0 0
    %583 = vmatprep.subr.bf16.mxu0 0
    %584 = vmatpush1.bf16.msra.mxu0 0
    %585 = vmatprep.subr.bf16.mxu0 0
    %586 = vmatpush1.bf16.msra.mxu0 0
    %587 = vmatprep.subr.bf16.mxu0 0
    %588 = vmatpush1.bf16.msra.mxu0 0
    %589 = vmatprep.subr.bf16.mxu0 0
    %590 = vmatpush1.bf16.msra.mxu0 0
    %591 = vmatprep.subr.bf16.mxu0 0
    %592 = vmatpush1.bf16.msra.mxu0 0
    %593 = vmatprep.subr.bf16.mxu0 0
    %594 = vmatpush1.bf16.msra.mxu0 0
    %595 = vmatprep.subr.bf16.mxu0 0
    %596 = vmatpush1.bf16.msra.mxu0 0
    %597 = vmatprep.subr.bf16.mxu0 0
    %598 = vmatpush1.bf16.msra.mxu0 0
    %599 = vmatprep.subr.bf16.mxu0 0
    %600 = vmatpush1.bf16.msra.mxu0 0
    %601 = vmatprep.subr.bf16.mxu0 0
    %602 = vmatpush1.bf16.msra.mxu0 0
    %603 = vmatprep.subr.bf16.mxu0 0
    %604 = vmatpush1.bf16.msra.mxu0 0
    %605 = vmatprep.subr.bf16.mxu0 0
    %606 = vmatpush1.bf16.msra.mxu0 0
    %607 = vmatprep.subr.bf16.mxu0 0
    %608 = vmatpush1.bf16.msra.mxu0 0
    %609 = vmatprep.mubr.bf16.mxu0 0
    %610 = vmatmul.mubr.bf16.gmra.mrb[0].mxu0 %v572
    %v611 = vpop.f32.mrb[0].mxu0
    %v612 = vadd.f32 0.0, %v611
    %v613 = vpop.f32.mrb[0].mxu0
    %v614 = vpop.f32.mrb[0].mxu0
    %v615 = vpop.f32.mrb[0].mxu0
    %616 = vdwg.mxu0
    %618 = vrot.lane.b32.xlu0 %v612, 32
    %v619 = vpop.permute.xlu0 %618
    %v621 = vsel %vm403, %v505, %v619
    %v622 = vpack.c.bf16 %v621, %v621
    %v623 = vld [vmem:[%s2] sm:$0xf]
    %v624 = vld [vmem:[%s2 + $0x4] sm:$0xf]
    %v625 = vld [vmem:[%s2 + $0x8] sm:$0xf]
    %v626 = vld [vmem:[%s2 + $0xc] sm:$0xf]
    %v627 = vld [vmem:[%s2 + $0x10] sm:$0xf]
    %v628 = vld [vmem:[%s2 + $0x14] sm:$0xf]
    %v629 = vld [vmem:[%s2 + $0x18] sm:$0xf]
    %v630 = vld [vmem:[%s2 + $0x1c] sm:$0xf]
    %v639 = vunpack.c.l.b16 %v623
    %v640 = vunpack.c.l.b16 %v624
    %v641 = vunpack.c.l.b16 %v625
    %v642 = vunpack.c.l.b16 %v626
    %v643 = vunpack.c.l.b16 %v627
    %v644 = vunpack.c.l.b16 %v628
    %v645 = vunpack.c.l.b16 %v629
    %v646 = vunpack.c.l.b16 %v630
    %v647 = vpack.c.b16 %v640, %v639
    %v648 = vpack.c.b16 %v642, %v641
    %v649 = vpack.c.b16 %v644, %v643
    %v650 = vpack.c.b16 %v646, %v645
    %v656 = vsel %vm273, %v622, 0
    %658 = vmatprep.subr.bf16.mxu0 0
    %659 = vmatpush1.bf16.msra.mxu0 %v647
    %660 = vmatprep.subr.bf16.mxu0 0
    %661 = vmatpush1.bf16.msra.mxu0 %v648
    %662 = vmatprep.subr.bf16.mxu0 0
    %663 = vmatpush1.bf16.msra.mxu0 %v649
    %664 = vmatprep.subr.bf16.mxu0 0
    %665 = vmatpush1.bf16.msra.mxu0 %v650
    %666 = vmatprep.subr.bf16.mxu0 0
    %667 = vmatpush1.bf16.msra.mxu0 0
    %668 = vmatprep.subr.bf16.mxu0 0
    %669 = vmatpush1.bf16.msra.mxu0 0
    %670 = vmatprep.subr.bf16.mxu0 0
    %671 = vmatpush1.bf16.msra.mxu0 0
    %672 = vmatprep.subr.bf16.mxu0 0
    %673 = vmatpush1.bf16.msra.mxu0 0
    %674 = vmatprep.subr.bf16.mxu0 0
    %675 = vmatpush1.bf16.msra.mxu0 0
    %676 = vmatprep.subr.bf16.mxu0 0
    %677 = vmatpush1.bf16.msra.mxu0 0
    %678 = vmatprep.subr.bf16.mxu0 0
    %679 = vmatpush1.bf16.msra.mxu0 0
    %680 = vmatprep.subr.bf16.mxu0 0
    %681 = vmatpush1.bf16.msra.mxu0 0
    %682 = vmatprep.subr.bf16.mxu0 0
    %683 = vmatpush1.bf16.msra.mxu0 0
    %684 = vmatprep.subr.bf16.mxu0 0
    %685 = vmatpush1.bf16.msra.mxu0 0
    %686 = vmatprep.subr.bf16.mxu0 0
    %687 = vmatpush1.bf16.msra.mxu0 0
    %688 = vmatprep.subr.bf16.mxu0 0
    %689 = vmatpush1.bf16.msra.mxu0 0
    %690 = vmatprep.mubr.bf16.mxu0 0
    %691 = vmatmul.mubr.bf16.gmra.mrb[0].mxu0 %v656
    %v692 = vpop.f32.mrb[0].mxu0
    %v693 = vadd.f32 %v90, %v692
    %v694 = vpop.f32.mrb[0].mxu0
    %v695 = vpop.f32.mrb[0].mxu0
    %v696 = vpop.f32.mrb[0].mxu0
    %697 = vdwg.mxu0
    %v698 = vadd.f32 %v86, %v693
    %v699 = vsel %vm273, %v698, 0.0
    %700 = vadd.xlane.f32.xlu0 %v699
    %v701 = vpop.xlane.xlu0 %700
    %v702 = vrcp.pop 64.0
    %v703 = vmul.f32 %v701, %v702
    %v704 = vsub.f32 %v698, %v703
    %v705 = vmul.f32 %v704, %v704
    %v706 = vsel %vm273, %v705, 0.0
    %707 = vadd.xlane.f32.xlu0 %v706
    %v708 = vpop.xlane.xlu0 %707
    %v709 = vmul.f32 %v708, %v702
    %v710 = vadd.f32 %v709, 1e-05
    %v711 = vrsqrt.pop %v710
    %v712 = vmul.f32 %v704, %v711
    %v713 = vmul.f32 %v712, %v91
    %v714 = vadd.f32 %v713, %v92
    %v715 = vpack.c.bf16 %v714, %v714
    %v716 = vld [vmem:[#allocation5] sm:$0xf]
    %v717 = vld [vmem:[#allocation5 + $0x4] sm:$0xf]
    %v718 = vld [vmem:[#allocation5 + $0x8] sm:$0xf]
    %v719 = vld [vmem:[#allocation5 + $0xc] sm:$0xf]
    %v720 = vld [vmem:[#allocation5 + $0x10] sm:$0xf]
    %v721 = vld [vmem:[#allocation5 + $0x14] sm:$0xf]
    %v722 = vld [vmem:[#allocation5 + $0x18] sm:$0xf]
    %v723 = vld [vmem:[#allocation5 + $0x1c] sm:$0xf]
    %v732 = vunpack.c.l.b16 %v716
    %v733 = vunpack.c.l.b16 %v717
    %v734 = vunpack.c.l.b16 %v718
    %v735 = vunpack.c.l.b16 %v719
    %v736 = vunpack.c.l.b16 %v720
    %v737 = vunpack.c.l.b16 %v721
    %v738 = vunpack.c.l.b16 %v722
    %v739 = vunpack.c.l.b16 %v723
    %v740 = vpack.c.b16 %v733, %v732
    %v741 = vpack.c.b16 %v735, %v734
    %v742 = vpack.c.b16 %v737, %v736
    %v743 = vpack.c.b16 %v739, %v738
    %v749 = vsel %vm273, %v715, 0
    %751 = vmatprep.subr.bf16.mxu0 0
    %752 = vmatpush1.bf16.msra.mxu0 %v740
    %753 = vmatprep.subr.bf16.mxu0 0
    %754 = vmatpush1.bf16.msra.mxu0 %v741
    %755 = vmatprep.subr.bf16.mxu0 0
    %756 = vmatpush1.bf16.msra.mxu0 %v742
    %757 = vmatprep.subr.bf16.mxu0 0
    %758 = vmatpush1.bf16.msra.mxu0 %v743
    %759 = vmatprep.subr.bf16.mxu0 0
    %760 = vmatpush1.bf16.msra.mxu0 0
    %761 = vmatprep.subr.bf16.mxu0 0
    %762 = vmatpush1.bf16.msra.mxu0 0
    %763 = vmatprep.subr.bf16.mxu0 0
    %764 = vmatpush1.bf16.msra.mxu0 0
    %765 = vmatprep.subr.bf16.mxu0 0
    %766 = vmatpush1.bf16.msra.mxu0 0
    %767 = vmatprep.subr.bf16.mxu0 0
    %768 = vmatpush1.bf16.msra.mxu0 0
    %769 = vmatprep.subr.bf16.mxu0 0
    %770 = vmatpush1.bf16.msra.mxu0 0
    %771 = vmatprep.subr.bf16.mxu0 0
    %772 = vmatpush1.bf16.msra.mxu0 0
    %773 = vmatprep.subr.bf16.mxu0 0
    %774 = vmatpush1.bf16.msra.mxu0 0
    %775 = vmatprep.subr.bf16.mxu0 0
    %776 = vmatpush1.bf16.msra.mxu0 0
    %777 = vmatprep.subr.bf16.mxu0 0
    %778 = vmatpush1.bf16.msra.mxu0 0
    %779 = vmatprep.subr.bf16.mxu0 0
    %780 = vmatpush1.bf16.msra.mxu0 0
    %781 = vmatprep.subr.bf16.mxu0 0
    %782 = vmatpush1.bf16.msra.mxu0 0
    %783 = vmatprep.mubr.bf16.mxu0 0
    %784 = vmatmul.mubr.bf16.gmra.mrb[0].mxu0 %v749
    %v785 = vpop.f32.mrb[0].mxu0
    %v786 = vadd.f32 %v93, %v785
    %v787 = vpop.f32.mrb[0].mxu0
    %v788 = vpop.f32.mrb[0].mxu0
    %v789 = vpop.f32.mrb[0].mxu0
    %790 = vdwg.mxu0
    %v791 = vmax.f32 %v786, 0.0
    %v792 = vpack.c.bf16 %v791, %v791
    %v793 = vld [vmem:[%s4] sm:$0xf]
    %v794 = vld [vmem:[%s4 + $0x4] sm:$0xf]
    %v795 = vld [vmem:[%s4 + $0x8] sm:$0xf]
    %v796 = vld [vmem:[%s4 + $0xc] sm:$0xf]
    %v797 = vld [vmem:[%s4 + $0x10] sm:$0xf]
    %v798 = vld [vmem:[%s4 + $0x14] sm:$0xf]
    %v799 = vld [vmem:[%s4 + $0x18] sm:$0xf]
    %v800 = vld [vmem:[%s4 + $0x1c] sm:$0xf]
    %v801 = vld [vmem:[%s4 + $0x20] sm:$0xf]
    %v802 = vld [vmem:[%s4 + $0x24] sm:$0xf]
    %v803 = vld [vmem:[%s4 + $0x28] sm:$0xf]
    %v804 = vld [vmem:[%s4 + $0x2c] sm:$0xf]
    %v805 = vld [vmem:[%s4 + $0x30] sm:$0xf]
    %v806 = vld [vmem:[%s4 + $0x34] sm:$0xf]
    %v807 = vld [vmem:[%s4 + $0x38] sm:$0xf]
    %v808 = vld [vmem:[%s4 + $0x3c] sm:$0xf]
    %v825 = vunpack.c.l.b16 %v793
    %v826 = vunpack.c.l.b16 %v794
    %v827 = vunpack.c.l.b16 %v795
    %v828 = vunpack.c.l.b16 %v796
    %v829 = vunpack.c.l.b16 %v797
    %v830 = vunpack.c.l.b16 %v798
    %v831 = vunpack.c.l.b16 %v799
    %v832 = vunpack.c.l.b16 %v800
    %v833 = vunpack.c.l.b16 %v801
    %v834 = vunpack.c.l.b16 %v802
    %v835 = vunpack.c.l.b16 %v803
    %v836 = vunpack.c.l.b16 %v804
    %v837 = vunpack.c.l.b16 %v805
    %v838 = vunpack.c.l.b16 %v806
    %v839 = vunpack.c.l.b16 %v807
    %v840 = vunpack.c.l.b16 %v808
    %v841 = vpack.c.b16 %v826, %v825
    %v842 = vpack.c.b16 %v828, %v827
    %v843 = vpack.c.b16 %v830, %v829
    %v844 = vpack.c.b16 %v832, %v831
    %v845 = vpack.c.b16 %v834, %v833
    %v846 = vpack.c.b16 %v836, %v835
    %v847 = vpack.c.b16 %v838, %v837
    %v848 = vpack.c.b16 %v840, %v839
    %857 = vmatprep.subr.bf16.mxu0 0
    %858 = vmatpush1.bf16.msra.mxu0 %v841
    %859 = vmatprep.subr.bf16.mxu0 0
    %860 = vmatpush1.bf16.msra.mxu0 %v842
    %861 = vmatprep.subr.bf16.mxu0 0
    %862 = vmatpush1.bf16.msra.mxu0 %v843
    %863 = vmatprep.subr.bf16.mxu0 0
    %864 = vmatpush1.bf16.msra.mxu0 %v844
    %865 = vmatprep.subr.bf16.mxu0 0
    %866 = vmatpush1.bf16.msra.mxu0 %v845
    %867 = vmatprep.subr.bf16.mxu0 0
    %868 = vmatpush1.bf16.msra.mxu0 %v846
    %869 = vmatprep.subr.bf16.mxu0 0
    %870 = vmatpush1.bf16.msra.mxu0 %v847
    %871 = vmatprep.subr.bf16.mxu0 0
    %872 = vmatpush1.bf16.msra.mxu0 %v848
    %873 = vmatprep.subr.bf16.mxu0 0
    %874 = vmatpush1.bf16.msra.mxu0 0
    %875 = vmatprep.subr.bf16.mxu0 0
    %876 = vmatpush1.bf16.msra.mxu0 0
    %877 = vmatprep.subr.bf16.mxu0 0
    %878 = vmatpush1.bf16.msra.mxu0 0
    %879 = vmatprep.subr.bf16.mxu0 0
    %880 = vmatpush1.bf16.msra.mxu0 0
    %881 = vmatprep.subr.bf16.mxu0 0
    %882 = vmatpush1.bf16.msra.mxu0 0
    %883 = vmatprep.subr.bf16.mxu0 0
    %884 = vmatpush1.bf16.msra.mxu0 0
    %885 = vmatprep.subr.bf16.mxu0 0
    %886 = vmatpush1.bf16.msra.mxu0 0
    %887 = vmatprep.subr.bf16.mxu0 0
    %888 = vmatpush1.bf16.msra.mxu0 0
    %889 = vmatprep.mubr.bf16.mxu0 0
    %890 = vmatmul.mubr.bf16.gmra.mrb[0].mxu0 %v792
    %v891 = vpop.f32.mrb[0].mxu0
    %v892 = vadd.f32 %v94, %v891
    %v893 = vpop.f32.mrb[0].mxu0
    %v894 = vpop.f32.mrb[0].mxu0
    %v895 = vpop.f32.mrb[0].mxu0
    %896 = vdwg.mxu0
    %v897 = vadd.f32 %v714, %v892
    %v898 = vsel %vm273, %v897, 0.0
    %899 = vadd.xlane.f32.xlu0 %v898
    %v900 = vpop.xlane.xlu0 %899
    %v901 = vmul.f32 %v900, %v702
    %v902 = vsub.f32 %v897, %v901
    %v903 = vmul.f32 %v902, %v902
    %v904 = vsel %vm273, %v903, 0.0
    %905 = vadd.xlane.f32.xlu0 %v904
    %v906 = vpop.xlane.xlu0 %905
    %v907 = vmul.f32 %v906, %v702
    %v908 = vadd.f32 %v907, 1e-05
    %v909 = vrsqrt.pop %v908
    %v910 = vmul.f32 %v902, %v909
    %v911 = vmul.f32 %v910, %v95
    %v912 = vadd.f32 %v911, %v96
    %s913 = scalar_lea.vmem %s7, 48
    %v914 = vld [vmem:[%s913] ss:$8 sm:$0xf]
    %v915 = vld [vmem:[%s913] ss:$8 sm:$0x30]
    %v916 = vor.u32 %v914, %v915
    %v917 = vld [vmem:[%s7 + $0x31] ss:$0 sm:$0xff]
    %v918 = vld [vmem:[%s7 + $0x32] ss:$0 sm:$0xff]
    %v919 = vld [vmem:[%s7 + $0x33] ss:$0 sm:$0xff]
    %v920 = vld [vmem:[%s7 + $0x34] ss:$0 sm:$0xff]
    %v921 = vld [vmem:[%s7 + $0x35] ss:$0 sm:$0xff]
    %v922 = vld [vmem:[%s7 + $0x36] ss:$0 sm:$0xff]
    %v923 = vld [vmem:[%s7 + $0x37] ss:$0 sm:$0xff]
    %v924 = vpack.c.bf16 %v912, %v912
    %s925 = scalar_lea.vmem [#allocation2], 192
    %v926 = vld [vmem:[%s925] sm:$0xff]
    %v927 = vld [vmem:[%s925 + $0x8] sm:$0xff]
    %v928 = vld [vmem:[%s925 + $0x10] sm:$0xff]
    %v929 = vld [vmem:[%s925 + $0x18] sm:$0xff]
    %v930 = vld [vmem:[%s925 + $0x20] sm:$0xff]
    %v931 = vld [vmem:[%s925 + $0x28] sm:$0xff]
    %v932 = vld [vmem:[%s925 + $0x30] sm:$0xff]
    %v933 = vld [vmem:[%s925 + $0x38] sm:$0xff]
    %v934 = vld [vmem:[%s925 + $0x40] sm:$0xff]
    %v935 = vld [vmem:[%s925 + $0x48] sm:$0xff]
    %v936 = vld [vmem:[%s925 + $0x50] sm:$0xff]
    %v937 = vld [vmem:[%s925 + $0x58] sm:$0xff]
    %v938 = vld [vmem:[%s925 + $0x60] sm:$0xff]
    %v939 = vld [vmem:[%s925 + $0x68] sm:$0xff]
    %v940 = vld [vmem:[%s925 + $0x70] sm:$0xff]
    %v941 = vld [vmem:[%s925 + $0x78] sm:$0xff]
    %v942 = vld [vmem:[%s925 + $0x80] sm:$0xff]
    %v943 = vld [vmem:[%s925 + $0x88] sm:$0xff]
    %v944 = vld [vmem:[%s925 + $0x90] sm:$0xff]
    %v945 = vld [vmem:[%s925 + $0x98] sm:$0xff]
    %v946 = vld [vmem:[%s925 + $0xa0] sm:$0xff]
    %v947 = vld [vmem:[%s925 + $0xa8] sm:$0xff]
    %v948 = vld [vmem:[%s925 + $0xb0] sm:$0xff]
    %v949 = vld [vmem:[%s925 + $0xb8] sm:$0xff]
    %v951 = vlaneseq
    %v952 = vshrl.u32 %v951, 7
    %v953 = vsub.s32 0, %v952
    %v954 = vrot.slane %v916, %v953
    %v955 = vlaneseq
    %v956 = vshrl.u32 %v955, 7
    %v957 = vsub.s32 1, %v956
    %v958 = vrot.slane %v916, %v957
    %v959 = vlaneseq
    %v960 = vshrl.u32 %v959, 7
    %v961 = vsub.s32 2, %v960
    %v962 = vrot.slane %v916, %v961
    %v963 = vlaneseq
    %v964 = vshrl.u32 %v963, 7
    %v965 = vsub.s32 3, %v964
    %v966 = vrot.slane %v916, %v965
    %v967 = vlaneseq
    %v968 = vshrl.u32 %v967, 7
    %v969 = vsub.s32 4, %v968
    %v970 = vrot.slane %v916, %v969
    %v971 = vlaneseq
    %v972 = vshrl.u32 %v971, 7
    %v973 = vsub.s32 5, %v972
    %v974 = vrot.slane %v916, %v973
    %v1005 = vunpack.c.l.b16 %v926
    %v1006 = vunpack.c.h.b16 %v926
    %v1007 = vunpack.c.l.b16 %v927
    %v1008 = vunpack.c.h.b16 %v927
    %v1009 = vunpack.c.l.b16 %v928
    %v1010 = vunpack.c.h.b16 %v928
    %v1011 = vunpack.c.l.b16 %v929
    %v1012 = vunpack.c.h.b16 %v929
    %v1013 = vunpack.c.l.b16 %v930
    %v1014 = vunpack.c.h.b16 %v930
    %v1015 = vunpack.c.l.b16 %v931
    %v1016 = vunpack.c.h.b16 %v931
    %v1017 = vunpack.c.l.b16 %v932
    %v1018 = vunpack.c.h.b16 %v932
    %v1019 = vunpack.c.l.b16 %v933
    %v1020 = vunpack.c.h.b16 %v933
    %v1021 = vunpack.c.l.b16 %v934
    %v1022 = vunpack.c.h.b16 %v934
    %v1023 = vunpack.c.l.b16 %v935
    %v1024 = vunpack.c.h.b16 %v935
    %v1025 = vunpack.c.l.b16 %v936
    %v1026 = vunpack.c.h.b16 %v936
    %v1027 = vunpack.c.l.b16 %v937
    %v1028 = vunpack.c.h.b16 %v937
    %v1029 = vunpack.c.l.b16 %v938
    %v1030 = vunpack.c.h.b16 %v938
    %v1031 = vunpack.c.l.b16 %v939
    %v1032 = vunpack.c.h.b16 %v939
    %v1033 = vunpack.c.l.b16 %v940
    %v1034 = vunpack.c.h.b16 %v940
    %v1035 = vunpack.c.l.b16 %v941
    %v1036 = vunpack.c.h.b16 %v941
    %v1037 = vunpack.c.l.b16 %v942
    %v1038 = vunpack.c.h.b16 %v942
    %v1039 = vunpack.c.l.b16 %v943
    %v1040 = vunpack.c.h.b16 %v943
    %v1041 = vunpack.c.l.b16 %v944
    %v1042 = vunpack.c.h.b16 %v944
    %v1043 = vunpack.c.l.b16 %v945
    %v1044 = vunpack.c.h.b16 %v945
    %v1045 = vunpack.c.l.b16 %v946
    %v1046 = vunpack.c.h.b16 %v946
    %v1047 = vunpack.c.l.b16 %v947
    %v1048 = vunpack.c.h.b16 %v947
    %v1049 = vunpack.c.l.b16 %v948
    %v1050 = vunpack.c.h.b16 %v948
    %v1051 = vunpack.c.l.b16 %v949
    %v1052 = vunpack.c.h.b16 %v949
    %v1053 = vpack.c.b16 %v1011, %v1005
    %v1054 = vpack.c.b16 %v1012, %v1006
    %v1055 = vpack.c.b16 %v1013, %v1007
    %v1056 = vpack.c.b16 %v1014, %v1008
    %v1057 = vpack.c.b16 %v1015, %v1009
    %v1058 = vpack.c.b16 %v1016, %v1010
    %v1059 = vpack.c.b16 %v1023, %v1017
    %v1060 = vpack.c.b16 %v1024, %v1018
    %v1061 = vpack.c.b16 %v1025, %v1019
    %v1062 = vpack.c.b16 %v1026, %v1020
    %v1063 = vpack.c.b16 %v1027, %v1021
    %v1064 = vpack.c.b16 %v1028, %v1022
    %v1065 = vpack.c.b16 %v1035, %v1029
    %v1066 = vpack.c.b16 %v1036, %v1030
    %v1067 = vpack.c.b16 %v1037, %v1031
    %v1068 = vpack.c.b16 %v1038, %v1032
    %v1069 = vpack.c.b16 %v1039, %v1033
    %v1070 = vpack.c.b16 %v1040, %v1034
    %v1071 = vpack.c.b16 %v1047, %v1041
    %v1072 = vpack.c.b16 %v1048, %v1042
    %v1073 = vpack.c.b16 %v1049, %v1043
    %v1074 = vpack.c.b16 %v1050, %v1044
    %v1075 = vpack.c.b16 %v1051, %v1045
    %v1076 = vpack.c.b16 %v1052, %v1046
    %v1102 = vsel %vm273, %v924, 0
    %1104 = vmatprep.subr.bf16.mxu0 %v1054
    %1105 = vmatpush1.bf16.msra.mxu0 %v1053
    %1106 = vmatprep.subr.bf16.mxu0 %v1060
    %1107 = vmatpush1.bf16.msra.mxu0 %v1059
    %1108 = vmatprep.subr.bf16.mxu0 %v1066
    %1109 = vmatpush1.bf16.msra.mxu0 %v1065
    %1110 = vmatprep.subr.bf16.mxu0 %v1072
    %1111 = vmatpush1.bf16.msra.mxu0 %v1071
    %1112 = vmatprep.subr.bf16.mxu0 0
    %1113 = vmatpush1.bf16.msra.mxu0 0
    %1114 = vmatprep.subr.bf16.mxu0 0
    %1115 = vmatpush1.bf16.msra.mxu0 0
    %1116 = vmatprep.subr.bf16.mxu0 0
    %1117 = vmatpush1.bf16.msra.mxu0 0
    %1118 = vmatprep.subr.bf16.mxu0 0
    %1119 = vmatpush1.bf16.msra.mxu0 0
    %1120 = vmatprep.subr.bf16.mxu0 0
    %1121 = vmatpush1.bf16.msra.mxu0 0
    %1122 = vmatprep.subr.bf16.mxu0 0
    %1123 = vmatpush1.bf16.msra.mxu0 0
    %1124 = vmatprep.subr.bf16.mxu0 0
    %1125 = vmatpush1.bf16.msra.mxu0 0
    %1126 = vmatprep.subr.bf16.mxu0 0
    %1127 = vmatpush1.bf16.msra.mxu0 0
    %1128 = vmatprep.subr.bf16.mxu0 0
    %1129 = vmatpush1.bf16.msra.mxu0 0
    %1130 = vmatprep.subr.bf16.mxu0 0
    %1131 = vmatpush1.bf16.msra.mxu0 0
    %1132 = vmatprep.subr.bf16.mxu0 0
    %1133 = vmatpush1.bf16.msra.mxu0 0
    %1134 = vmatprep.subr.bf16.mxu0 0
    %1135 = vmatpush1.bf16.msra.mxu0 0
    %1136 = vmatprep.mubr.bf16.mxu0 0
    %1137 = vmatmul.mubr.bf16.gmra.mrb[0].mxu0 %v1102
    %v1138 = vpop.f32.mrb[0].mxu0
    %v1139 = vadd.f32 %v954, %v1138
    %v1140 = vpop.f32.mrb[0].mxu0
    %v1141 = vadd.f32 %v958, %v1140
    %v1142 = vpop.f32.mrb[0].mxu0
    %v1143 = vpop.f32.mrb[0].mxu0
    %1144 = vdwg.mxu0
    %1145 = vmatprep.subr.bf16.mxu0 %v1056
    %1146 = vmatpush1.bf16.msra.mxu0 %v1055
    %1147 = vmatprep.subr.bf16.mxu0 %v1062
    %1148 = vmatpush1.bf16.msra.mxu0 %v1061
    %1149 = vmatprep.subr.bf16.mxu0 %v1068
    %1150 = vmatpush1.bf16.msra.mxu0 %v1067
    %1151 = vmatprep.subr.bf16.mxu0 %v1074
    %1152 = vmatpush1.bf16.msra.mxu0 %v1073
    %1153 = vmatprep.subr.bf16.mxu0 0
    %1154 = vmatpush1.bf16.msra.mxu0 0
    %1155 = vmatprep.subr.bf16.mxu0 0
    %1156 = vmatpush1.bf16.msra.mxu0 0
    %1157 = vmatprep.subr.bf16.mxu0 0
    %1158 = vmatpush1.bf16.msra.mxu0 0
    %1159 = vmatprep.subr.bf16.mxu0 0
    %1160 = vmatpush1.bf16.msra.mxu0 0
    %1161 = vmatprep.subr.bf16.mxu0 0
    %1162 = vmatpush1.bf16.msra.mxu0 0
    %1163 = vmatprep.subr.bf16.mxu0 0
    %1164 = vmatpush1.bf16.msra.mxu0 0
    %1165 = vmatprep.subr.bf16.mxu0 0
    %1166 = vmatpush1.bf16.msra.mxu0 0
    %1167 = vmatprep.subr.bf16.mxu0 0
    %1168 = vmatpush1.bf16.msra.mxu0 0
    %1169 = vmatprep.subr.bf16.mxu0 0
    %1170 = vmatpush1.bf16.msra.mxu0 0
    %1171 = vmatprep.subr.bf16.mxu0 0
    %1172 = vmatpush1.bf16.msra.mxu0 0
    %1173 = vmatprep.subr.bf16.mxu0 0
    %1174 = vmatpush1.bf16.msra.mxu0 0
    %1175 = vmatprep.subr.bf16.mxu0 0
    %1176 = vmatpush1.bf16.msra.mxu0 0
    %1177 = vmatprep.mubr.bf16.mxu0 0
    %1178 = vmatmul.mubr.bf16.gmra.mrb[0].mxu0 %v1102
    %v1179 = vpop.f32.mrb[0].mxu0
    %v1180 = vadd.f32 %v962, %v1179
    %v1181 = vpop.f32.mrb[0].mxu0
    %v1182 = vadd.f32 %v966, %v1181
    %v1183 = vpop.f32.mrb[0].mxu0
    %v1184 = vpop.f32.mrb[0].mxu0
    %1185 = vdwg.mxu0
    %1186 = vmatprep.subr.bf16.mxu0 %v1058
    %1187 = vmatpush1.bf16.msra.mxu0 %v1057
    %1188 = vmatprep.subr.bf16.mxu0 %v1064
    %1189 = vmatpush1.bf16.msra.mxu0 %v1063
    %1190 = vmatprep.subr.bf16.mxu0 %v1070
    %1191 = vmatpush1.bf16.msra.mxu0 %v1069
    %1192 = vmatprep.subr.bf16.mxu0 %v1076
    %1193 = vmatpush1.bf16.msra.mxu0 %v1075
    %1194 = vmatprep.subr.bf16.mxu0 0
    %1195 = vmatpush1.bf16.msra.mxu0 0
    %1196 = vmatprep.subr.bf16.mxu0 0
    %1197 = vmatpush1.bf16.msra.mxu0 0
    %1198 = vmatprep.subr.bf16.mxu0 0
    %1199 = vmatpush1.bf16.msra.mxu0 0
    %1200 = vmatprep.subr.bf16.mxu0 0
    %1201 = vmatpush1.bf16.msra.mxu0 0
    %1202 = vmatprep.subr.bf16.mxu0 0
    %1203 = vmatpush1.bf16.msra.mxu0 0
    %1204 = vmatprep.subr.bf16.mxu0 0
    %1205 = vmatpush1.bf16.msra.mxu0 0
    %1206 = vmatprep.subr.bf16.mxu0 0
    %1207 = vmatpush1.bf16.msra.mxu0 0
    %1208 = vmatprep.subr.bf16.mxu0 0
    %1209 = vmatpush1.bf16.msra.mxu0 0
    %1210 = vmatprep.subr.bf16.mxu0 0
    %1211 = vmatpush1.bf16.msra.mxu0 0
    %1212 = vmatprep.subr.bf16.mxu0 0
    %1213 = vmatpush1.bf16.msra.mxu0 0
    %1214 = vmatprep.subr.bf16.mxu0 0
    %1215 = vmatpush1.bf16.msra.mxu0 0
    %1216 = vmatprep.subr.bf16.mxu0 0
    %1217 = vmatpush1.bf16.msra.mxu0 0
    %1218 = vmatprep.mubr.bf16.mxu0 0
    %1219 = vmatmul.mubr.bf16.gmra.mrb[0].mxu0 %v1102
    %v1220 = vpop.f32.mrb[0].mxu0
    %v1221 = vadd.f32 %v970, %v1220
    %v1222 = vpop.f32.mrb[0].mxu0
    %v1223 = vadd.f32 %v974, %v1222
    %v1224 = vpop.f32.mrb[0].mxu0
    %v1225 = vpop.f32.mrb[0].mxu0
    %1226 = vdwg.mxu0
    %v1227 = vpack.c.bf16 %v1139, %v1139
    %v1228 = vpack.c.bf16 %v1180, %v1180
    %v1229 = vpack.c.bf16 %v1221, %v1221
    %v1231 = vsel %vm403, %v1227, 0
    %v1234 = vsel %vm403, %v1228, 0
    %1236 = vmatprep.subr.bf16.mxu0 0
    %1237 = vmatpush1.bf16.xpose.msra.mxu0 %v1234
    %1238 = vmatprep.subr.bf16.mxu0 0
    %1239 = vmatpush1.bf16.xpose.msra.mxu0 0
    %1240 = vmatprep.subr.bf16.mxu0 0
    %1241 = vmatpush1.bf16.xpose.msra.mxu0 0
    %1242 = vmatprep.subr.bf16.mxu0 0
    %1243 = vmatpush1.bf16.xpose.msra.mxu0 0
    %1244 = vmatprep.subr.bf16.mxu0 0
    %1245 = vmatpush1.bf16.xpose.msra.mxu0 0
    %1246 = vmatprep.subr.bf16.mxu0 0
    %1247 = vmatpush1.bf16.xpose.msra.mxu0 0
    %1248 = vmatprep.subr.bf16.mxu0 0
    %1249 = vmatpush1.bf16.xpose.msra.mxu0 0
    %1250 = vmatprep.subr.bf16.mxu0 0
    %1251 = vmatpush1.bf16.xpose.msra.mxu0 0
    %1252 = vmatprep.subr.bf16.mxu0 0
    %1253 = vmatpush1.bf16.xpose.msra.mxu0 0
    %1254 = vmatprep.subr.bf16.mxu0 0
    %1255 = vmatpush1.bf16.xpose.msra.mxu0 0
    %1256 = vmatprep.subr.bf16.mxu0 0
    %1257 = vmatpush1.bf16.xpose.msra.mxu0 0
    %1258 = vmatprep.subr.bf16.mxu0 0
    %1259 = vmatpush1.bf16.xpose.msra.mxu0 0
    %1260 = vmatprep.subr.bf16.mxu0 0
    %1261 = vmatpush1.bf16.xpose.msra.mxu0 0
    %1262 = vmatprep.subr.bf16.mxu0 0
    %1263 = vmatpush1.bf16.xpose.msra.mxu0 0
    %1264 = vmatprep.subr.bf16.mxu0 0
    %1265 = vmatpush1.bf16.xpose.msra.mxu0 0
    %1266 = vmatprep.subr.bf16.mxu0 0
    %1267 = vmatpush1.bf16.xpose.msra.mxu0 0
    %1268 = vmatprep.mubr.bf16.mxu0 0
    %1269 = vmatmul.mubr.bf16.gmra.mrb[0].mxu0 %v1231
    %v1270 = vpop.f32.mrb[0].mxu0
    %v1271 = vadd.f32 0.0, %v1270
    %v1272 = vpop.f32.mrb[0].mxu0
    %v1273 = vpop.f32.mrb[0].mxu0
    %v1274 = vpop.f32.mrb[0].mxu0
    %1275 = vdwg.mxu0
    %v1276 = vsel %vm450, %v1271, -inf
    %1277 = vmax.xlane.f32.xlu0 %v1276
    %v1278 = vpop.xlane.xlu0 %1277
    %v1279 = vsub.f32 %v1271, %v1278
    %v1280 = vmul.f32 %v1279, 1.442695
    %v1281 = vpow.pop %v1280
    %v1282 = vsel %vm450, %v1281, 0.0
    %1283 = vadd.xlane.f32.xlu0 %v1282
    %v1284 = vpop.xlane.xlu0 %1283
    %v1285 = vrcp.pop %v1284
    %v1286 = vmul.f32 %v1281, %v1285
    %v1287 = vpack.c.bf16 %v1286, %v1286
    %v1289 = vsel %vm450, %v1287, 0
    %v1292 = vsel %vm466, %v1229, 0
    %1294 = vmatprep.subr.bf16.mxu0 0
    %1295 = vmatpush1.bf16.msra.mxu0 %v1292
    %1296 = vmatprep.subr.bf16.mxu0 0
    %1297 = vmatpush1.bf16.msra.mxu0 0
    %1298 = vmatprep.subr.bf16.mxu0 0
    %1299 = vmatpush1.bf16.msra.mxu0 0
    %1300 = vmatprep.subr.bf16.mxu0 0
    %1301 = vmatpush1.bf16.msra.mxu0 0
    %1302 = vmatprep.subr.bf16.mxu0 0
    %1303 = vmatpush1.bf16.msra.mxu0 0
    %1304 = vmatprep.subr.bf16.mxu0 0
    %1305 = vmatpush1.bf16.msra.mxu0 0
    %1306 = vmatprep.subr.bf16.mxu0 0
    %1307 = vmatpush1.bf16.msra.mxu0 0
    %1308 = vmatprep.subr.bf16.mxu0 0
    %1309 = vmatpush1.bf16.msra.mxu0 0
    %1310 = vmatprep.subr.bf16.mxu0 0
    %1311 = vmatpush1.bf16.msra.mxu0 0
    %1312 = vmatprep.subr.bf16.mxu0 0
    %1313 = vmatpush1.bf16.msra.mxu0 0
    %1314 = vmatprep.subr.bf16.mxu0 0
    %1315 = vmatpush1.bf16.msra.mxu0 0
    %1316 = vmatprep.subr.bf16.mxu0 0
    %1317 = vmatpush1.bf16.msra.mxu0 0
    %1318 = vmatprep.subr.bf16.mxu0 0
    %1319 = vmatpush1.bf16.msra.mxu0 0
    %1320 = vmatprep.subr.bf16.mxu0 0
    %1321 = vmatpush1.bf16.msra.mxu0 0
    %1322 = vmatprep.subr.bf16.mxu0 0
    %1323 = vmatpush1.bf16.msra.mxu0 0
    %1324 = vmatprep.subr.bf16.mxu0 0
    %1325 = vmatpush1.bf16.msra.mxu0 0
    %1326 = vmatprep.mubr.bf16.mxu0 0
    %1327 = vmatmul.mubr.bf16.gmra.mrb[0].mxu0 %v1289
    %v1328 = vpop.f32.mrb[0].mxu0
    %v1329 = vadd.f32 0.0, %v1328
    %v1330 = vpop.f32.mrb[0].mxu0
    %v1331 = vpop.f32.mrb[0].mxu0
    %v1332 = vpop.f32.mrb[0].mxu0
    %1333 = vdwg.mxu0
    %v1334 = vpack.c.bf16 %v1141, %v1141
    %v1335 = vpack.c.bf16 %v1182, %v1182
    %v1336 = vpack.c.bf16 %v1223, %v1223
    %v1338 = vsel %vm403, %v1334, 0
    %v1341 = vsel %vm403, %v1335, 0
    %1343 = vmatprep.subr.bf16.mxu0 0
    %1344 = vmatpush1.bf16.xpose.msra.mxu0 %v1341
    %1345 = vmatprep.subr.bf16.mxu0 0
    %1346 = vmatpush1.bf16.xpose.msra.mxu0 0
    %1347 = vmatprep.subr.bf16.mxu0 0
    %1348 = vmatpush1.bf16.xpose.msra.mxu0 0
    %1349 = vmatprep.subr.bf16.mxu0 0
    %1350 = vmatpush1.bf16.xpose.msra.mxu0 0
    %1351 = vmatprep.subr.bf16.mxu0 0
    %1352 = vmatpush1.bf16.xpose.msra.mxu0 0
    %1353 = vmatprep.subr.bf16.mxu0 0
    %1354 = vmatpush1.bf16.xpose.msra.mxu0 0
    %1355 = vmatprep.subr.bf16.mxu0 0
    %1356 = vmatpush1.bf16.xpose.msra.mxu0 0
    %1357 = vmatprep.subr.bf16.mxu0 0
    %1358 = vmatpush1.bf16.xpose.msra.mxu0 0
    %1359 = vmatprep.subr.bf16.mxu0 0
    %1360 = vmatpush1.bf16.xpose.msra.mxu0 0
    %1361 = vmatprep.subr.bf16.mxu0 0
    %1362 = vmatpush1.bf16.xpose.msra.mxu0 0
    %1363 = vmatprep.subr.bf16.mxu0 0
    %1364 = vmatpush1.bf16.xpose.msra.mxu0 0
    %1365 = vmatprep.subr.bf16.mxu0 0
    %1366 = vmatpush1.bf16.xpose.msra.mxu0 0
    %1367 = vmatprep.subr.bf16.mxu0 0
    %1368 = vmatpush1.bf16.xpose.msra.mxu0 0
    %1369 = vmatprep.subr.bf16.mxu0 0
    %1370 = vmatpush1.bf16.xpose.msra.mxu0 0
    %1371 = vmatprep.subr.bf16.mxu0 0
    %1372 = vmatpush1.bf16.xpose.msra.mxu0 0
    %1373 = vmatprep.subr.bf16.mxu0 0
    %1374 = vmatpush1.bf16.xpose.msra.mxu0 0
    %1375 = vmatprep.mubr.bf16.mxu0 0
    %1376 = vmatmul.mubr.bf16.gmra.mrb[0].mxu0 %v1338
    %v1377 = vpop.f32.mrb[0].mxu0
    %v1378 = vadd.f32 0.0, %v1377
    %v1379 = vpop.f32.mrb[0].mxu0
    %v1380 = vpop.f32.mrb[0].mxu0
    %v1381 = vpop.f32.mrb[0].mxu0
    %1382 = vdwg.mxu0
    %v1383 = vsel %vm450, %v1378, -inf
    %1384 = vmax.xlane.f32.xlu0 %v1383
    %v1385 = vpop.xlane.xlu0 %1384
    %v1386 = vsub.f32 %v1378, %v1385
    %v1387 = vmul.f32 %v1386, 1.442695
    %v1388 = vpow.pop %v1387
    %v1389 = vsel %vm450, %v1388, 0.0
    %1390 = vadd.xlane.f32.xlu0 %v1389
    %v1391 = vpop.xlane.xlu0 %1390
    %v1392 = vrcp.pop %v1391
    %v1393 = vmul.f32 %v1388, %v1392
    %v1394 = vpack.c.bf16 %v1393, %v1393
    %v1396 = vsel %vm450, %v1394, 0
    %v1399 = vsel %vm466, %v1336, 0
    %1401 = vmatprep.subr.bf16.mxu0 0
    %1402 = vmatpush1.bf16.msra.mxu0 %v1399
    %1403 = vmatprep.subr.bf16.mxu0 0
    %1404 = vmatpush1.bf16.msra.mxu0 0
    %1405 = vmatprep.subr.bf16.mxu0 0
    %1406 = vmatpush1.bf16.msra.mxu0 0
    %1407 = vmatprep.subr.bf16.mxu0 0
    %1408 = vmatpush1.bf16.msra.mxu0 0
    %1409 = vmatprep.subr.bf16.mxu0 0
    %1410 = vmatpush1.bf16.msra.mxu0 0
    %1411 = vmatprep.subr.bf16.mxu0 0
    %1412 = vmatpush1.bf16.msra.mxu0 0
    %1413 = vmatprep.subr.bf16.mxu0 0
    %1414 = vmatpush1.bf16.msra.mxu0 0
    %1415 = vmatprep.subr.bf16.mxu0 0
    %1416 = vmatpush1.bf16.msra.mxu0 0
    %1417 = vmatprep.subr.bf16.mxu0 0
    %1418 = vmatpush1.bf16.msra.mxu0 0
    %1419 = vmatprep.subr.bf16.mxu0 0
    %1420 = vmatpush1.bf16.msra.mxu0 0
    %1421 = vmatprep.subr.bf16.mxu0 0
    %1422 = vmatpush1.bf16.msra.mxu0 0
    %1423 = vmatprep.subr.bf16.mxu0 0
    %1424 = vmatpush1.bf16.msra.mxu0 0
    %1425 = vmatprep.subr.bf16.mxu0 0
    %1426 = vmatpush1.bf16.msra.mxu0 0
    %1427 = vmatprep.subr.bf16.mxu0 0
    %1428 = vmatpush1.bf16.msra.mxu0 0
    %1429 = vmatprep.subr.bf16.mxu0 0
    %1430 = vmatpush1.bf16.msra.mxu0 0
    %1431 = vmatprep.subr.bf16.mxu0 0
    %1432 = vmatpush1.bf16.msra.mxu0 0
    %1433 = vmatprep.mubr.bf16.mxu0 0
    %1434 = vmatmul.mubr.bf16.gmra.mrb[0].mxu0 %v1396
    %v1435 = vpop.f32.mrb[0].mxu0
    %v1436 = vadd.f32 0.0, %v1435
    %v1437 = vpop.f32.mrb[0].mxu0
    %v1438 = vpop.f32.mrb[0].mxu0
    %v1439 = vpop.f32.mrb[0].mxu0
    %1440 = vdwg.mxu0
    %1442 = vrot.lane.b32.xlu0 %v1436, 32
    %v1443 = vpop.permute.xlu0 %1442
    %v1445 = vsel %vm403, %v1329, %v1443
    %v1446 = vpack.c.bf16 %v1445, %v1445
    %s1447 = scalar_lea.vmem %s2, 32
    %v1448 = vld [vmem:[%s1447] sm:$0xf]
    %v1449 = vld [vmem:[%s1447 + $0x4] sm:$0xf]
    %v1450 = vld [vmem:[%s1447 + $0x8] sm:$0xf]
    %v1451 = vld [vmem:[%s1447 + $0xc] sm:$0xf]
    %v1452 = vld [vmem:[%s1447 + $0x10] sm:$0xf]
    %v1453 = vld [vmem:[%s1447 + $0x14] sm:$0xf]
    %v1454 = vld [vmem:[%s1447 + $0x18] sm:$0xf]
    %v1455 = vld [vmem:[%s1447 + $0x1c] sm:$0xf]
    %v1464 = vunpack.c.l.b16 %v1448
    %v1465 = vunpack.c.l.b16 %v1449
    %v1466 = vunpack.c.l.b16 %v1450
    %v1467 = vunpack.c.l.b16 %v1451
    %v1468 = vunpack.c.l.b16 %v1452
    %v1469 = vunpack.c.l.b16 %v1453
    %v1470 = vunpack.c.l.b16 %v1454
    %v1471 = vunpack.c.l.b16 %v1455
    %v1472 = vpack.c.b16 %v1465, %v1464
    %v1473 = vpack.c.b16 %v1467, %v1466
    %v1474 = vpack.c.b16 %v1469, %v1468
    %v1475 = vpack.c.b16 %v1471, %v1470
    %v1481 = vsel %vm273, %v1446, 0
    %1483 = vmatprep.subr.bf16.mxu0 0
    %1484 = vmatpush1.bf16.msra.mxu0 %v1472
    %1485 = vmatprep.subr.bf16.mxu0 0
    %1486 = vmatpush1.bf16.msra.mxu0 %v1473
    %1487 = vmatprep.subr.bf16.mxu0 0
    %1488 = vmatpush1.bf16.msra.mxu0 %v1474
    %1489 = vmatprep.subr.bf16.mxu0 0
    %1490 = vmatpush1.bf16.msra.mxu0 %v1475
    %1491 = vmatprep.subr.bf16.mxu0 0
    %1492 = vmatpush1.bf16.msra.mxu0 0
    %1493 = vmatprep.subr.bf16.mxu0 0
    %1494 = vmatpush1.bf16.msra.mxu0 0
    %1495 = vmatprep.subr.bf16.mxu0 0
    %1496 = vmatpush1.bf16.msra.mxu0 0
    %1497 = vmatprep.subr.bf16.mxu0 0
    %1498 = vmatpush1.bf16.msra.mxu0 0
    %1499 = vmatprep.subr.bf16.mxu0 0
    %1500 = vmatpush1.bf16.msra.mxu0 0
    %1501 = vmatprep.subr.bf16.mxu0 0
    %1502 = vmatpush1.bf16.msra.mxu0 0
    %1503 = vmatprep.subr.bf16.mxu0 0
    %1504 = vmatpush1.bf16.msra.mxu0 0
    %1505 = vmatprep.subr.bf16.mxu0 0
    %1506 = vmatpush1.bf16.msra.mxu0 0
    %1507 = vmatprep.subr.bf16.mxu0 0
    %1508 = vmatpush1.bf16.msra.mxu0 0
    %1509 = vmatprep.subr.bf16.mxu0 0
    %1510 = vmatpush1.bf16.msra.mxu0 0
    %1511 = vmatprep.subr.bf16.mxu0 0
    %1512 = vmatpush1.bf16.msra.mxu0 0
    %1513 = vmatprep.subr.bf16.mxu0 0
    %1514 = vmatpush1.bf16.msra.mxu0 0
    %1515 = vmatprep.mubr.bf16.mxu0 0
    %1516 = vmatmul.mubr.bf16.gmra.mrb[0].mxu0 %v1481
    %v1517 = vpop.f32.mrb[0].mxu0
    %v1518 = vadd.f32 %v917, %v1517
    %v1519 = vpop.f32.mrb[0].mxu0
    %v1520 = vpop.f32.mrb[0].mxu0
    %v1521 = vpop.f32.mrb[0].mxu0
    %1522 = vdwg.mxu0
    %v1523 = vadd.f32 %v912, %v1518
    %v1524 = vsel %vm273, %v1523, 0.0
    %1525 = vadd.xlane.f32.xlu0 %v1524
    %v1526 = vpop.xlane.xlu0 %1525
    %v1527 = vmul.f32 %v1526, %v702
    %v1528 = vsub.f32 %v1523, %v1527
    %v1529 = vmul.f32 %v1528, %v1528
    %v1530 = vsel %vm273, %v1529, 0.0
    %1531 = vadd.xlane.f32.xlu0 %v1530
    %v1532 = vpop.xlane.xlu0 %1531
    %v1533 = vmul.f32 %v1532, %v702
    %v1534 = vadd.f32 %v1533, 1e-05
    %v1535 = vrsqrt.pop %v1534
    %v1536 = vmul.f32 %v1528, %v1535
    %v1537 = vmul.f32 %v1536, %v918
    %v1538 = vadd.f32 %v1537, %v919
    %v1539 = vpack.c.bf16 %v1538, %v1538
    %s1540 = scalar_lea.vmem [#allocation5], 32
    %v1541 = vld [vmem:[%s1540] sm:$0xf]
    %v1542 = vld [vmem:[%s1540 + $0x4] sm:$0xf]
    %v1543 = vld [vmem:[%s1540 + $0x8] sm:$0xf]
    %v1544 = vld [vmem:[%s1540 + $0xc] sm:$0xf]
    %v1545 = vld [vmem:[%s1540 + $0x10] sm:$0xf]
    %v1546 = vld [vmem:[%s1540 + $0x14] sm:$0xf]
    %v1547 = vld [vmem:[%s1540 + $0x18] sm:$0xf]
    %v1548 = vld [vmem:[%s1540 + $0x1c] sm:$0xf]
    %v1557 = vunpack.c.l.b16 %v1541
    %v1558 = vunpack.c.l.b16 %v1542
    %v1559 = vunpack.c.l.b16 %v1543
    %v1560 = vunpack.c.l.b16 %v1544
    %v1561 = vunpack.c.l.b16 %v1545
    %v1562 = vunpack.c.l.b16 %v1546
    %v1563 = vunpack.c.l.b16 %v1547
    %v1564 = vunpack.c.l.b16 %v1548
    %v1565 = vpack.c.b16 %v1558, %v1557
    %v1566 = vpack.c.b16 %v1560, %v1559
    %v1567 = vpack.c.b16 %v1562, %v1561
    %v1568 = vpack.c.b16 %v1564, %v1563
    %v1574 = vsel %vm273, %v1539, 0
    %1576 = vmatprep.subr.bf16.mxu0 0
    %1577 = vmatpush1.bf16.msra.mxu0 %v1565
    %1578 = vmatprep.subr.bf16.mxu0 0
    %1579 = vmatpush1.bf16.msra.mxu0 %v1566
    %1580 = vmatprep.subr.bf16.mxu0 0
    %1581 = vmatpush1.bf16.msra.mxu0 %v1567
    %1582 = vmatprep.subr.bf16.mxu0 0
    %1583 = vmatpush1.bf16.msra.mxu0 %v1568
    %1584 = vmatprep.subr.bf16.mxu0 0
    %1585 = vmatpush1.bf16.msra.mxu0 0
    %1586 = vmatprep.subr.bf16.mxu0 0
    %1587 = vmatpush1.bf16.msra.mxu0 0
    %1588 = vmatprep.subr.bf16.mxu0 0
    %1589 = vmatpush1.bf16.msra.mxu0 0
    %1590 = vmatprep.subr.bf16.mxu0 0
    %1591 = vmatpush1.bf16.msra.mxu0 0
    %1592 = vmatprep.subr.bf16.mxu0 0
    %1593 = vmatpush1.bf16.msra.mxu0 0
    %1594 = vmatprep.subr.bf16.mxu0 0
    %1595 = vmatpush1.bf16.msra.mxu0 0
    %1596 = vmatprep.subr.bf16.mxu0 0
    %1597 = vmatpush1.bf16.msra.mxu0 0
    %1598 = vmatprep.subr.bf16.mxu0 0
    %1599 = vmatpush1.bf16.msra.mxu0 0
    %1600 = vmatprep.subr.bf16.mxu0 0
    %1601 = vmatpush1.bf16.msra.mxu0 0
    %1602 = vmatprep.subr.bf16.mxu0 0
    %1603 = vmatpush1.bf16.msra.mxu0 0
    %1604 = vmatprep.subr.bf16.mxu0 0
    %1605 = vmatpush1.bf16.msra.mxu0 0
    %1606 = vmatprep.subr.bf16.mxu0 0
    %1607 = vmatpush1.bf16.msra.mxu0 0
    %1608 = vmatprep.mubr.bf16.mxu0 0
    %1609 = vmatmul.mubr.bf16.gmra.mrb[0].mxu0 %v1574
    %v1610 = vpop.f32.mrb[0].mxu0
    %v1611 = vadd.f32 %v920, %v1610
    %v1612 = vpop.f32.mrb[0].mxu0
    %v1613 = vpop.f32.mrb[0].mxu0
    %v1614 = vpop.f32.mrb[0].mxu0
    %1615 = vdwg.mxu0
    %v1616 = vmax.f32 %v1611, 0.0
    %v1617 = vpack.c.bf16 %v1616, %v1616
    %s1618 = scalar_lea.vmem %s4, 64
    %v1619 = vld [vmem:[%s1618] sm:$0xf]
    %v1620 = vld [vmem:[%s1618 + $0x4] sm:$0xf]
    %v1621 = vld [vmem:[%s1618 + $0x8] sm:$0xf]
    %v1622 = vld [vmem:[%s1618 + $0xc] sm:$0xf]
    %v1623 = vld [vmem:[%s1618 + $0x10] sm:$0xf]
    %v1624 = vld [vmem:[%s1618 + $0x14] sm:$0xf]
    %v1625 = vld [vmem:[%s1618 + $0x18] sm:$0xf]
    %v1626 = vld [vmem:[%s1618 + $0x1c] sm:$0xf]
    %v1627 = vld [vmem:[%s1618 + $0x20] sm:$0xf]
    %v1628 = vld [vmem:[%s1618 + $0x24] sm:$0xf]
    %v1629 = vld [vmem:[%s1618 + $0x28] sm:$0xf]
    %v1630 = vld [vmem:[%s1618 + $0x2c] sm:$0xf]
    %v1631 = vld [vmem:[%s1618 + $0x30] sm:$0xf]
    %v1632 = vld [vmem:[%s1618 + $0x34] sm:$0xf]
    %v1633 = vld [vmem:[%s1618 + $0x38] sm:$0xf]
    %v1634 = vld [vmem:[%s1618 + $0x3c] sm:$0xf]
    %v1651 = vunpack.c.l.b16 %v1619
    %v1652 = vunpack.c.l.b16 %v1620
    %v1653 = vunpack.c.l.b16 %v1621
    %v1654 = vunpack.c.l.b16 %v1622
    %v1655 = vunpack.c.l.b16 %v1623
    %v1656 = vunpack.c.l.b16 %v1624
    %v1657 = vunpack.c.l.b16 %v1625
    %v1658 = vunpack.c.l.b16 %v1626
    %v1659 = vunpack.c.l.b16 %v1627
    %v1660 = vunpack.c.l.b16 %v1628
    %v1661 = vunpack.c.l.b16 %v1629
    %v1662 = vunpack.c.l.b16 %v1630
    %v1663 = vunpack.c.l.b16 %v1631
    %v1664 = vunpack.c.l.b16 %v1632
    %v1665 = vunpack.c.l.b16 %v1633
    %v1666 = vunpack.c.l.b16 %v1634
    %v1667 = vpack.c.b16 %v1652, %v1651
    %v1668 = vpack.c.b16 %v1654, %v1653
    %v1669 = vpack.c.b16 %v1656, %v1655
    %v1670 = vpack.c.b16 %v1658, %v1657
    %v1671 = vpack.c.b16 %v1660, %v1659
    %v1672 = vpack.c.b16 %v1662, %v1661
    %v1673 = vpack.c.b16 %v1664, %v1663
    %v1674 = vpack.c.b16 %v1666, %v1665
    %1683 = vmatprep.subr.bf16.mxu0 0
    %1684 = vmatpush1.bf16.msra.mxu0 %v1667
    %1685 = vmatprep.subr.bf16.mxu0 0
    %1686 = vmatpush1.bf16.msra.mxu0 %v1668
    %1687 = vmatprep.subr.bf16.mxu0 0
    %1688 = vmatpush1.bf16.msra.mxu0 %v1669
    %1689 = vmatprep.subr.bf16.mxu0 0
    %1690 = vmatpush1.bf16.msra.mxu0 %v1670
    %1691 = vmatprep.subr.bf16.mxu0 0
    %1692 = vmatpush1.bf16.msra.mxu0 %v1671
    %1693 = vmatprep.subr.bf16.mxu0 0
    %1694 = vmatpush1.bf16.msra.mxu0 %v1672
    %1695 = vmatprep.subr.bf16.mxu0 0
    %1696 = vmatpush1.bf16.msra.mxu0 %v1673
    %1697 = vmatprep.subr.bf16.mxu0 0
    %1698 = vmatpush1.bf16.msra.mxu0 %v1674
    %1699 = vmatprep.subr.bf16.mxu0 0
    %1700 = vmatpush1.bf16.msra.mxu0 0
    %1701 = vmatprep.subr.bf16.mxu0 0
    %1702 = vmatpush1.bf16.msra.mxu0 0
    %1703 = vmatprep.subr.bf16.mxu0 0
    %1704 = vmatpush1.bf16.msra.mxu0 0
    %1705 = vmatprep.subr.bf16.mxu0 0
    %1706 = vmatpush1.bf16.msra.mxu0 0
    %1707 = vmatprep.subr.bf16.mxu0 0
    %1708 = vmatpush1.bf16.msra.mxu0 0
    %1709 = vmatprep.subr.bf16.mxu0 0
    %1710 = vmatpush1.bf16.msra.mxu0 0
    %1711 = vmatprep.subr.bf16.mxu0 0
    %1712 = vmatpush1.bf16.msra.mxu0 0
    %1713 = vmatprep.subr.bf16.mxu0 0
    %1714 = vmatpush1.bf16.msra.mxu0 0
    %1715 = vmatprep.mubr.bf16.mxu0 0
    %1716 = vmatmul.mubr.bf16.gmra.mrb[0].mxu0 %v1617
    %v1717 = vpop.f32.mrb[0].mxu0
    %v1718 = vadd.f32 %v921, %v1717
    %v1719 = vpop.f32.mrb[0].mxu0
    %v1720 = vpop.f32.mrb[0].mxu0
    %v1721 = vpop.f32.mrb[0].mxu0
    %1722 = vdwg.mxu0
    %v1723 = vadd.f32 %v1538, %v1718
    %v1724 = vsel %vm273, %v1723, 0.0
    %1725 = vadd.xlane.f32.xlu0 %v1724
    %v1726 = vpop.xlane.xlu0 %1725
    %v1727 = vmul.f32 %v1726, %v702
    %v1728 = vsub.f32 %v1723, %v1727
    %v1729 = vmul.f32 %v1728, %v1728
    %v1730 = vsel %vm273, %v1729, 0.0
    %1731 = vadd.xlane.f32.xlu0 %v1730
    %v1732 = vpop.xlane.xlu0 %1731
    %v1733 = vmul.f32 %v1732, %v702
    %v1734 = vadd.f32 %v1733, 1e-05
    %v1735 = vrsqrt.pop %v1734
    %v1736 = vmul.f32 %v1728, %v1735
    %v1737 = vmul.f32 %v1736, %v922
    %v1738 = vadd.f32 %v1737, %v923
    %s1739 = scalar_lea.vmem %s7, 96
    %v1740 = vld [vmem:[%s1739] ss:$8 sm:$0x3]
    %s1741 = scalar_lea.vmem %s7, 97
    %v1742 = vld [vmem:[%s1741] ss:$8 sm:$0x3]
    %s1743 = scalar_lea.vmem %s7, 98
    %v1744 = vld [vmem:[%s1743] ss:$8 sm:$0x3]
    %v1745 = vld [vmem:[%s7 + $0x63] ss:$0 sm:$0xff]
    %v1746 = vpack.c.bf16 %v1738, %v1738
    %v1747 = vld [vmem:[#allocation7] sm:$0xff]
    %v1748 = vld [vmem:[#allocation7 + $0x8] sm:$0xff]
    %v1749 = vld [vmem:[#allocation7 + $0x10] sm:$0xff]
    %v1750 = vld [vmem:[#allocation7 + $0x18] sm:$0xff]
    %v1751 = vld [vmem:[#allocation7 + $0x20] sm:$0xff]
    %v1752 = vld [vmem:[#allocation7 + $0x28] sm:$0xff]
    %v1753 = vld [vmem:[#allocation7 + $0x30] sm:$0xff]
    %v1754 = vld [vmem:[#allocation7 + $0x38] sm:$0xff]
    %v1756 = vlaneseq
    %v1757 = vshrl.u32 %v1756, 7
    %v1758 = vsub.s32 0, %v1757
    %v1759 = vrot.slane %v1740, %v1758
    %v1760 = vlaneseq
    %v1761 = vshrl.u32 %v1760, 7
    %v1762 = vsub.s32 1, %v1761
    %v1763 = vrot.slane %v1740, %v1762
    %v1774 = vunpack.c.l.b16 %v1747
    %v1775 = vunpack.c.h.b16 %v1747
    %v1776 = vunpack.c.l.b16 %v1748
    %v1777 = vunpack.c.h.b16 %v1748
    %v1778 = vunpack.c.l.b16 %v1749
    %v1779 = vunpack.c.h.b16 %v1749
    %v1780 = vunpack.c.l.b16 %v1750
    %v1781 = vunpack.c.h.b16 %v1750
    %v1782 = vunpack.c.l.b16 %v1751
    %v1783 = vunpack.c.h.b16 %v1751
    %v1784 = vunpack.c.l.b16 %v1752
    %v1785 = vunpack.c.h.b16 %v1752
    %v1786 = vunpack.c.l.b16 %v1753
    %v1787 = vunpack.c.h.b16 %v1753
    %v1788 = vunpack.c.l.b16 %v1754
    %v1789 = vunpack.c.h.b16 %v1754
    %v1790 = vpack.c.b16 %v1776, %v1774
    %v1791 = vpack.c.b16 %v1777, %v1775
    %v1792 = vpack.c.b16 %v1780, %v1778
    %v1793 = vpack.c.b16 %v1781, %v1779
    %v1794 = vpack.c.b16 %v1784, %v1782
    %v1795 = vpack.c.b16 %v1785, %v1783
    %v1796 = vpack.c.b16 %v1788, %v1786
    %v1797 = vpack.c.b16 %v1789, %v1787
    %v1807 = vsel %vm273, %v1746, 0
    %1809 = vmatprep.subr.bf16.mxu0 %v1791
    %1810 = vmatpush1.bf16.msra.mxu0 %v1790
    %1811 = vmatprep.subr.bf16.mxu0 %v1793
    %1812 = vmatpush1.bf16.msra.mxu0 %v1792
    %1813 = vmatprep.subr.bf16.mxu0 %v1795
    %1814 = vmatpush1.bf16.msra.mxu0 %v1794
    %1815 = vmatprep.subr.bf16.mxu0 %v1797
    %1816 = vmatpush1.bf16.msra.mxu0 %v1796
    %1817 = vmatprep.subr.bf16.mxu0 0
    %1818 = vmatpush1.bf16.msra.mxu0 0
    %1819 = vmatprep.subr.bf16.mxu0 0
    %1820 = vmatpush1.bf16.msra.mxu0 0
    %1821 = vmatprep.subr.bf16.mxu0 0
    %1822 = vmatpush1.bf16.msra.mxu0 0
    %1823 = vmatprep.subr.bf16.mxu0 0
    %1824 = vmatpush1.bf16.msra.mxu0 0
    %1825 = vmatprep.subr.bf16.mxu0 0
    %1826 = vmatpush1.bf16.msra.mxu0 0
    %1827 = vmatprep.subr.bf16.mxu0 0
    %1828 = vmatpush1.bf16.msra.mxu0 0
    %1829 = vmatprep.subr.bf16.mxu0 0
    %1830 = vmatpush1.bf16.msra.mxu0 0
    %1831 = vmatprep.subr.bf16.mxu0 0
    %1832 = vmatpush1.bf16.msra.mxu0 0
    %1833 = vmatprep.subr.bf16.mxu0 0
    %1834 = vmatpush1.bf16.msra.mxu0 0
    %1835 = vmatprep.subr.bf16.mxu0 0
    %1836 = vmatpush1.bf16.msra.mxu0 0
    %1837 = vmatprep.subr.bf16.mxu0 0
    %1838 = vmatpush1.bf16.msra.mxu0 0
    %1839 = vmatprep.subr.bf16.mxu0 0
    %1840 = vmatpush1.bf16.msra.mxu0 0
    %1841 = vmatprep.mubr.bf16.mxu0 0
    %1842 = vmatmul.mubr.bf16.gmra.mrb[0].mxu0 %v1807
    %v1843 = vpop.f32.mrb[0].mxu0
    %v1844 = vadd.f32 %v1759, %v1843
    %v1845 = vpop.f32.mrb[0].mxu0
    %v1846 = vadd.f32 %v1763, %v1845
    %v1847 = vpop.f32.mrb[0].mxu0
    %v1848 = vpop.f32.mrb[0].mxu0
    %1849 = vdwg.mxu0
    %v1851 = vlaneseq
    %v1852 = vshrl.u32 %v1851, 7
    %v1853 = vsub.s32 0, %v1852
    %v1854 = vrot.slane %v1742, %v1853
    %v1855 = vlaneseq
    %v1856 = vshrl.u32 %v1855, 7
    %v1857 = vsub.s32 1, %v1856
    %v1858 = vrot.slane %v1742, %v1857
    %v1861 = vmul.f32 %v1844, %v1854
    %v1862 = vmul.f32 %v1846, %v1858
    %v1864 = vlaneseq
    %v1865 = vshrl.u32 %v1864, 7
    %v1866 = vsub.s32 0, %v1865
    %v1867 = vrot.slane %v1744, %v1866
    %v1868 = vlaneseq
    %v1869 = vshrl.u32 %v1868, 7
    %v1870 = vsub.s32 1, %v1869
    %v1871 = vrot.slane %v1744, %v1870
    %v1874 = vadd.f32 %v1861, %v1867
    %v1875 = vadd.f32 %v1862, %v1871
    %v1876 = vmax.f32 %v1874, 0.0
    %v1877 = vmax.f32 %v1875, 0.0
    %v1878 = vpack.c.bf16 %v1876, %v1876
    %v1879 = vpack.c.bf16 %v1877, %v1877
    %v1880 = vld [vmem:[#allocation8] sm:$0xf]
    %v1881 = vld [vmem:[#allocation8 + $0x4] sm:$0xf]
    %v1882 = vld [vmem:[#allocation8 + $0x8] sm:$0xf]
    %v1883 = vld [vmem:[#allocation8 + $0xc] sm:$0xf]
    %v1884 = vld [vmem:[#allocation8 + $0x10] sm:$0xf]
    %v1885 = vld [vmem:[#allocation8 + $0x14] sm:$0xf]
    %v1886 = vld [vmem:[#allocation8 + $0x18] sm:$0xf]
    %v1887 = vld [vmem:[#allocation8 + $0x1c] sm:$0xf]
    %v1888 = vld [vmem:[#allocation8 + $0x20] sm:$0xf]
    %v1889 = vld [vmem:[#allocation8 + $0x24] sm:$0xf]
    %v1890 = vld [vmem:[#allocation8 + $0x28] sm:$0xf]
    %v1891 = vld [vmem:[#allocation8 + $0x2c] sm:$0xf]
    %v1892 = vld [vmem:[#allocation8 + $0x30] sm:$0xf]
    %v1893 = vld [vmem:[#allocation8 + $0x34] sm:$0xf]
    %v1894 = vld [vmem:[#allocation8 + $0x38] sm:$0xf]
    %v1895 = vld [vmem:[#allocation8 + $0x3c] sm:$0xf]
    %v1896 = vld [vmem:[#allocation8 + $0x40] sm:$0xf]
    %v1897 = vld [vmem:[#allocation8 + $0x44] sm:$0xf]
    %v1898 = vld [vmem:[#allocation8 + $0x48] sm:$0xf]
    %v1899 = vld [vmem:[#allocation8 + $0x4c] sm:$0xf]
    %v1900 = vld [vmem:[#allocation8 + $0x50] sm:$0xf]
    %v1901 = vld [vmem:[#allocation8 + $0x54] sm:$0xf]
    %v1902 = vld [vmem:[#allocation8 + $0x58] sm:$0xf]
    %v1903 = vld [vmem:[#allocation8 + $0x5c] sm:$0xf]
    %v1904 = vld [vmem:[#allocation8 + $0x60] sm:$0xf]
    %v1905 = vld [vmem:[#allocation8 + $0x64] sm:$0xf]
    %v1906 = vld [vmem:[#allocation8 + $0x68] sm:$0xf]
    %v1907 = vld [vmem:[#allocation8 + $0x6c] sm:$0xf]
    %v1908 = vld [vmem:[#allocation8 + $0x70] sm:$0xf]
    %v1909 = vld [vmem:[#allocation8 + $0x74] sm:$0xf]
    %v1910 = vld [vmem:[#allocation8 + $0x78] sm:$0xf]
    %v1911 = vld [vmem:[#allocation8 + $0x7c] sm:$0xf]
    %v1944 = vunpack.c.l.b16 %v1880
    %v1945 = vunpack.c.l.b16 %v1881
    %v1946 = vunpack.c.l.b16 %v1882
    %v1947 = vunpack.c.l.b16 %v1883
    %v1948 = vunpack.c.l.b16 %v1884
    %v1949 = vunpack.c.l.b16 %v1885
    %v1950 = vunpack.c.l.b16 %v1886
    %v1951 = vunpack.c.l.b16 %v1887
    %v1952 = vunpack.c.l.b16 %v1888
    %v1953 = vunpack.c.l.b16 %v1889
    %v1954 = vunpack.c.l.b16 %v1890
    %v1955 = vunpack.c.l.b16 %v1891
    %v1956 = vunpack.c.l.b16 %v1892
    %v1957 = vunpack.c.l.b16 %v1893
    %v1958 = vunpack.c.l.b16 %v1894
    %v1959 = vunpack.c.l.b16 %v1895
    %v1960 = vunpack.c.l.b16 %v1896
    %v1961 = vunpack.c.l.b16 %v1897
    %v1962 = vunpack.c.l.b16 %v1898
    %v1963 = vunpack.c.l.b16 %v1899
    %v1964 = vunpack.c.l.b16 %v1900
    %v1965 = vunpack.c.l.b16 %v1901
    %v1966 = vunpack.c.l.b16 %v1902
    %v1967 = vunpack.c.l.b16 %v1903
    %v1968 = vunpack.c.l.b16 %v1904
    %v1969 = vunpack.c.l.b16 %v1905
    %v1970 = vunpack.c.l.b16 %v1906
    %v1971 = vunpack.c.l.b16 %v1907
    %v1972 = vunpack.c.l.b16 %v1908
    %v1973 = vunpack.c.l.b16 %v1909
    %v1974 = vunpack.c.l.b16 %v1910
    %v1975 = vunpack.c.l.b16 %v1911
    %v1976 = vpack.c.b16 %v1945, %v1944
    %v1977 = vpack.c.b16 %v1947, %v1946
    %v1978 = vpack.c.b16 %v1949, %v1948
    %v1979 = vpack.c.b16 %v1951, %v1950
    %v1980 = vpack.c.b16 %v1953, %v1952
    %v1981 = vpack.c.b16 %v1955, %v1954
    %v1982 = vpack.c.b16 %v1957, %v1956
    %v1983 = vpack.c.b16 %v1959, %v1958
    %v1984 = vpack.c.b16 %v1961, %v1960
    %v1985 = vpack.c.b16 %v1963, %v1962
    %v1986 = vpack.c.b16 %v1965, %v1964
    %v1987 = vpack.c.b16 %v1967, %v1966
    %v1988 = vpack.c.b16 %v1969, %v1968
    %v1989 = vpack.c.b16 %v1971, %v1970
    %v1990 = vpack.c.b16 %v1973, %v1972
    %v1991 = vpack.c.b16 %v1975, %v1974
    %2008 = vmatprep.subr.bf16.mxu0 0
    %2009 = vmatpush1.bf16.msra.mxu0 %v1976
    %2010 = vmatprep.subr.bf16.mxu0 0
    %2011 = vmatpush1.bf16.msra.mxu0 %v1977
    %2012 = vmatprep.subr.bf16.mxu0 0
    %2013 = vmatpush1.bf16.msra.mxu0 %v1978
    %2014 = vmatprep.subr.bf16.mxu0 0
    %2015 = vmatpush1.bf16.msra.mxu0 %v1979
    %2016 = vmatprep.subr.bf16.mxu0 0
    %2017 = vmatpush1.bf16.msra.mxu0 %v1980
    %2018 = vmatprep.subr.bf16.mxu0 0
    %2019 = vmatpush1.bf16.msra.mxu0 %v1981
    %2020 = vmatprep.subr.bf16.mxu0 0
    %2021 = vmatpush1.bf16.msra.mxu0 %v1982
    %2022 = vmatprep.subr.bf16.mxu0 0
    %2023 = vmatpush1.bf16.msra.mxu0 %v1983
    %2024 = vmatprep.subr.bf16.mxu0 0
    %2025 = vmatpush1.bf16.msra.mxu0 %v1984
    %2026 = vmatprep.subr.bf16.mxu0 0
    %2027 = vmatpush1.bf16.msra.mxu0 %v1985
    %2028 = vmatprep.subr.bf16.mxu0 0
    %2029 = vmatpush1.bf16.msra.mxu0 %v1986
    %2030 = vmatprep.subr.bf16.mxu0 0
    %2031 = vmatpush1.bf16.msra.mxu0 %v1987
    %2032 = vmatprep.subr.bf16.mxu0 0
    %2033 = vmatpush1.bf16.msra.mxu0 %v1988
    %2034 = vmatprep.subr.bf16.mxu0 0
    %2035 = vmatpush1.bf16.msra.mxu0 %v1989
    %2036 = vmatprep.subr.bf16.mxu0 0
    %2037 = vmatpush1.bf16.msra.mxu0 %v1990
    %2038 = vmatprep.subr.bf16.mxu0 0
    %2039 = vmatpush1.bf16.msra.mxu0 %v1991
    %2040 = vmatprep.mubr.bf16.mxu0 %v1879
    %2041 = vmatmul.mubr.bf16.gmra.mrb[0].mxu0 %v1878
    %v2042 = vpop.f32.mrb[0].mxu0
    %v2043 = vadd.f32 %v1745, %v2042
    %v2044 = vpop.f32.mrb[0].mxu0
    %v2045 = vpop.f32.mrb[0].mxu0
    %v2046 = vpop.f32.mrb[0].mxu0
    %2047 = vdwg.mxu0
    %2048 = vst [vmem:[#allocation10] sm:$0xff] %v2043
    %s2049 = scalar_lea.vmem %s0, 8
    %v2050 = vld [vmem:[%s2049] sm:$0xff]
    %s2051 = scalar_lea.vmem %s7, 144
    %v2052 = vld [vmem:[%s2051] ss:$8 sm:$0xf]
    %v2053 = vld [vmem:[%s2051] ss:$8 sm:$0x30]
    %v2054 = vor.u32 %v2052, %v2053
    %v2055 = vld [vmem:[%s2051 + $0x1] ss:$0 sm:$0xff]
    %v2056 = vld [vmem:[%s2051 + $0x2] ss:$0 sm:$0xff]
    %v2057 = vld [vmem:[%s2051 + $0x3] ss:$0 sm:$0xff]
    %v2058 = vld [vmem:[%s2051 + $0x4] ss:$0 sm:$0xff]
    %v2059 = vld [vmem:[%s2051 + $0x5] ss:$0 sm:$0xff]
    %v2060 = vld [vmem:[%s2051 + $0x6] ss:$0 sm:$0xff]
    %v2061 = vld [vmem:[%s2051 + $0x7] ss:$0 sm:$0xff]
    %v2062 = vpack.c.bf16 %v2050, %v2050
    %s2063 = scalar_lea.vmem [#allocation2], 384
    %v2064 = vld [vmem:[%s2063] sm:$0xff]
    %v2065 = vld [vmem:[%s2063 + $0x8] sm:$0xff]
    %v2066 = vld [vmem:[%s2063 + $0x10] sm:$0xff]
    %v2067 = vld [vmem:[%s2063 + $0x18] sm:$0xff]
    %v2068 = vld [vmem:[%s2063 + $0x20] sm:$0xff]
    %v2069 = vld [vmem:[%s2063 + $0x28] sm:$0xff]
    %v2070 = vld [vmem:[%s2063 + $0x30] sm:$0xff]
    %v2071 = vld [vmem:[%s2063 + $0x38] sm:$0xff]
    %v2072 = vld [vmem:[%s2063 + $0x40] sm:$0xff]
    %v2073 = vld [vmem:[%s2063 + $0x48] sm:$0xff]
    %v2074 = vld [vmem:[%s2063 + $0x50] sm:$0xff]
    %v2075 = vld [vmem:[%s2063 + $0x58] sm:$0xff]
    %v2076 = vld [vmem:[%s2063 + $0x60] sm:$0xff]
    %v2077 = vld [vmem:[%s2063 + $0x68] sm:$0xff]
    %v2078 = vld [vmem:[%s2063 + $0x70] sm:$0xff]
    %v2079 = vld [vmem:[%s2063 + $0x78] sm:$0xff]
    %v2080 = vld [vmem:[%s2063 + $0x80] sm:$0xff]
    %v2081 = vld [vmem:[%s2063 + $0x88] sm:$0xff]
    %v2082 = vld [vmem:[%s2063 + $0x90] sm:$0xff]
    %v2083 = vld [vmem:[%s2063 + $0x98] sm:$0xff]
    %v2084 = vld [vmem:[%s2063 + $0xa0] sm:$0xff]
    %v2085 = vld [vmem:[%s2063 + $0xa8] sm:$0xff]
    %v2086 = vld [vmem:[%s2063 + $0xb0] sm:$0xff]
    %v2087 = vld [vmem:[%s2063 + $0xb8] sm:$0xff]
    %v2089 = vlaneseq
    %v2090 = vshrl.u32 %v2089, 7
    %v2091 = vsub.s32 0, %v2090
    %v2092 = vrot.slane %v2054, %v2091
    %v2093 = vlaneseq
    %v2094 = vshrl.u32 %v2093, 7
    %v2095 = vsub.s32 1, %v2094
    %v2096 = vrot.slane %v2054, %v2095
    %v2097 = vlaneseq
    %v2098 = vshrl.u32 %v2097, 7
    %v2099 = vsub.s32 2, %v2098
    %v2100 = vrot.slane %v2054, %v2099
    %v2101 = vlaneseq
    %v2102 = vshrl.u32 %v2101, 7
    %v2103 = vsub.s32 3, %v2102
    %v2104 = vrot.slane %v2054, %v2103
    %v2105 = vlaneseq
    %v2106 = vshrl.u32 %v2105, 7
    %v2107 = vsub.s32 4, %v2106
    %v2108 = vrot.slane %v2054, %v2107
    %v2109 = vlaneseq
    %v2110 = vshrl.u32 %v2109, 7
    %v2111 = vsub.s32 5, %v2110
    %v2112 = vrot.slane %v2054, %v2111
    %v2143 = vunpack.c.l.b16 %v2064
    %v2144 = vunpack.c.h.b16 %v2064
    %v2145 = vunpack.c.l.b16 %v2065
    %v2146 = vunpack.c.h.b16 %v2065
    %v2147 = vunpack.c.l.b16 %v2066
    %v2148 = vunpack.c.h.b16 %v2066
    %v2149 = vunpack.c.l.b16 %v2067
    %v2150 = vunpack.c.h.b16 %v2067
    %v2151 = vunpack.c.l.b16 %v2068
    %v2152 = vunpack.c.h.b16 %v2068
    %v2153 = vunpack.c.l.b16 %v2069
    %v2154 = vunpack.c.h.b16 %v2069
    %v2155 = vunpack.c.l.b16 %v2070
    %v2156 = vunpack.c.h.b16 %v2070
    %v2157 = vunpack.c.l.b16 %v2071
    %v2158 = vunpack.c.h.b16 %v2071
    %v2159 = vunpack.c.l.b16 %v2072
    %v2160 = vunpack.c.h.b16 %v2072
    %v2161 = vunpack.c.l.b16 %v2073
    %v2162 = vunpack.c.h.b16 %v2073
    %v2163 = vunpack.c.l.b16 %v2074
    %v2164 = vunpack.c.h.b16 %v2074
    %v2165 = vunpack.c.l.b16 %v2075
    %v2166 = vunpack.c.h.b16 %v2075
    %v2167 = vunpack.c.l.b16 %v2076
    %v2168 = vunpack.c.h.b16 %v2076
    %v2169 = vunpack.c.l.b16 %v2077
    %v2170 = vunpack.c.h.b16 %v2077
    %v2171 = vunpack.c.l.b16 %v2078
    %v2172 = vunpack.c.h.b16 %v2078
    %v2173 = vunpack.c.l.b16 %v2079
    %v2174 = vunpack.c.h.b16 %v2079
    %v2175 = vunpack.c.l.b16 %v2080
    %v2176 = vunpack.c.h.b16 %v2080
    %v2177 = vunpack.c.l.b16 %v2081
    %v2178 = vunpack.c.h.b16 %v2081
    %v2179 = vunpack.c.l.b16 %v2082
    %v2180 = vunpack.c.h.b16 %v2082
    %v2181 = vunpack.c.l.b16 %v2083
    %v2182 = vunpack.c.h.b16 %v2083
    %v2183 = vunpack.c.l.b16 %v2084
    %v2184 = vunpack.c.h.b16 %v2084
    %v2185 = vunpack.c.l.b16 %v2085
    %v2186 = vunpack.c.h.b16 %v2085
    %v2187 = vunpack.c.l.b16 %v2086
    %v2188 = vunpack.c.h.b16 %v2086
    %v2189 = vunpack.c.l.b16 %v2087
    %v2190 = vunpack.c.h.b16 %v2087
    %v2191 = vpack.c.b16 %v2149, %v2143
    %v2192 = vpack.c.b16 %v2150, %v2144
    %v2193 = vpack.c.b16 %v2151, %v2145
    %v2194 = vpack.c.b16 %v2152, %v2146
    %v2195 = vpack.c.b16 %v2153, %v2147
    %v2196 = vpack.c.b16 %v2154, %v2148
    %v2197 = vpack.c.b16 %v2161, %v2155
    %v2198 = vpack.c.b16 %v2162, %v2156
    %v2199 = vpack.c.b16 %v2163, %v2157
    %v2200 = vpack.c.b16 %v2164, %v2158
    %v2201 = vpack.c.b16 %v2165, %v2159
    %v2202 = vpack.c.b16 %v2166, %v2160
    %v2203 = vpack.c.b16 %v2173, %v2167
    %v2204 = vpack.c.b16 %v2174, %v2168
    %v2205 = vpack.c.b16 %v2175, %v2169
    %v2206 = vpack.c.b16 %v2176, %v2170
    %v2207 = vpack.c.b16 %v2177, %v2171
    %v2208 = vpack.c.b16 %v2178, %v2172
    %v2209 = vpack.c.b16 %v2185, %v2179
    %v2210 = vpack.c.b16 %v2186, %v2180
    %v2211 = vpack.c.b16 %v2187, %v2181
    %v2212 = vpack.c.b16 %v2188, %v2182
    %v2213 = vpack.c.b16 %v2189, %v2183
    %v2214 = vpack.c.b16 %v2190, %v2184
    %v2240 = vsel %vm273, %v2062, 0
    %2242 = vmatprep.subr.bf16.mxu0 %v2192
    %2243 = vmatpush1.bf16.msra.mxu0 %v2191
    %2244 = vmatprep.subr.bf16.mxu0 %v2198
    %2245 = vmatpush1.bf16.msra.mxu0 %v2197
    %2246 = vmatprep.subr.bf16.mxu0 %v2204
    %2247 = vmatpush1.bf16.msra.mxu0 %v2203
    %2248 = vmatprep.subr.bf16.mxu0 %v2210
    %2249 = vmatpush1.bf16.msra.mxu0 %v2209
    %2250 = vmatprep.subr.bf16.mxu0 0
    %2251 = vmatpush1.bf16.msra.mxu0 0
    %2252 = vmatprep.subr.bf16.mxu0 0
    %2253 = vmatpush1.bf16.msra.mxu0 0
    %2254 = vmatprep.subr.bf16.mxu0 0
    %2255 = vmatpush1.bf16.msra.mxu0 0
    %2256 = vmatprep.subr.bf16.mxu0 0
    %2257 = vmatpush1.bf16.msra.mxu0 0
    %2258 = vmatprep.subr.bf16.mxu0 0
    %2259 = vmatpush1.bf16.msra.mxu0 0
    %2260 = vmatprep.subr.bf16.mxu0 0
    %2261 = vmatpush1.bf16.msra.mxu0 0
    %2262 = vmatprep.subr.bf16.mxu0 0
    %2263 = vmatpush1.bf16.msra.mxu0 0
    %2264 = vmatprep.subr.bf16.mxu0 0
    %2265 = vmatpush1.bf16.msra.mxu0 0
    %2266 = vmatprep.subr.bf16.mxu0 0
    %2267 = vmatpush1.bf16.msra.mxu0 0
    %2268 = vmatprep.subr.bf16.mxu0 0
    %2269 = vmatpush1.bf16.msra.mxu0 0
    %2270 = vmatprep.subr.bf16.mxu0 0
    %2271 = vmatpush1.bf16.msra.mxu0 0
    %2272 = vmatprep.subr.bf16.mxu0 0
    %2273 = vmatpush1.bf16.msra.mxu0 0
    %2274 = vmatprep.mubr.bf16.mxu0 0
    %2275 = vmatmul.mubr.bf16.gmra.mrb[0].mxu0 %v2240
    %v2276 = vpop.f32.mrb[0].mxu0
    %v2277 = vadd.f32 %v2092, %v2276
    %v2278 = vpop.f32.mrb[0].mxu0
    %v2279 = vadd.f32 %v2096, %v2278
    %v2280 = vpop.f32.mrb[0].mxu0
    %v2281 = vpop.f32.mrb[0].mxu0
    %2282 = vdwg.mxu0
    %2283 = vmatprep.subr.bf16.mxu0 %v2194
    %2284 = vmatpush1.bf16.msra.mxu0 %v2193
    %2285 = vmatprep.subr.bf16.mxu0 %v2200
    %2286 = vmatpush1.bf16.msra.mxu0 %v2199
    %2287 = vmatprep.subr.bf16.mxu0 %v2206
    %2288 = vmatpush1.bf16.msra.mxu0 %v2205
    %2289 = vmatprep.subr.bf16.mxu0 %v2212
    %2290 = vmatpush1.bf16.msra.mxu0 %v2211
    %2291 = vmatprep.subr.bf16.mxu0 0
    %2292 = vmatpush1.bf16.msra.mxu0 0
    %2293 = vmatprep.subr.bf16.mxu0 0
    %2294 = vmatpush1.bf16.msra.mxu0 0
    %2295 = vmatprep.subr.bf16.mxu0 0
    %2296 = vmatpush1.bf16.msra.mxu0 0
    %2297 = vmatprep.subr.bf16.mxu0 0
    %2298 = vmatpush1.bf16.msra.mxu0 0
    %2299 = vmatprep.subr.bf16.mxu0 0
    %2300 = vmatpush1.bf16.msra.mxu0 0
    %2301 = vmatprep.subr.bf16.mxu0 0
    %2302 = vmatpush1.bf16.msra.mxu0 0
    %2303 = vmatprep.subr.bf16.mxu0 0
    %2304 = vmatpush1.bf16.msra.mxu0 0
    %2305 = vmatprep.subr.bf16.mxu0 0
    %2306 = vmatpush1.bf16.msra.mxu0 0
    %2307 = vmatprep.subr.bf16.mxu0 0
    %2308 = vmatpush1.bf16.msra.mxu0 0
    %2309 = vmatprep.subr.bf16.mxu0 0
    %2310 = vmatpush1.bf16.msra.mxu0 0
    %2311 = vmatprep.subr.bf16.mxu0 0
    %2312 = vmatpush1.bf16.msra.mxu0 0
    %2313 = vmatprep.subr.bf16.mxu0 0
    %2314 = vmatpush1.bf16.msra.mxu0 0
    %2315 = vmatprep.mubr.bf16.mxu0 0
    %2316 = vmatmul.mubr.bf16.gmra.mrb[0].mxu0 %v2240
    %v2317 = vpop.f32.mrb[0].mxu0
    %v2318 = vadd.f32 %v2100, %v2317
    %v2319 = vpop.f32.mrb[0].mxu0
    %v2320 = vadd.f32 %v2104, %v2319
    %v2321 = vpop.f32.mrb[0].mxu0
    %v2322 = vpop.f32.mrb[0].mxu0
    %2323 = vdwg.mxu0
    %2324 = vmatprep.subr.bf16.mxu0 %v2196
    %2325 = vmatpush1.bf16.msra.mxu0 %v2195
    %2326 = vmatprep.subr.bf16.mxu0 %v2202
    %2327 = vmatpush1.bf16.msra.mxu0 %v2201
    %2328 = vmatprep.subr.bf16.mxu0 %v2208
    %2329 = vmatpush1.bf16.msra.mxu0 %v2207
    %2330 = vmatprep.subr.bf16.mxu0 %v2214
    %2331 = vmatpush1.bf16.msra.mxu0 %v2213
    %2332 = vmatprep.subr.bf16.mxu0 0
    %2333 = vmatpush1.bf16.msra.mxu0 0
    %2334 = vmatprep.subr.bf16.mxu0 0
    %2335 = vmatpush1.bf16.msra.mxu0 0
    %2336 = vmatprep.subr.bf16.mxu0 0
    %2337 = vmatpush1.bf16.msra.mxu0 0
    %2338 = vmatprep.subr.bf16.mxu0 0
    %2339 = vmatpush1.bf16.msra.mxu0 0
    %2340 = vmatprep.subr.bf16.mxu0 0
    %2341 = vmatpush1.bf16.msra.mxu0 0
    %2342 = vmatprep.subr.bf16.mxu0 0
    %2343 = vmatpush1.bf16.msra.mxu0 0
    %2344 = vmatprep.subr.bf16.mxu0 0
    %2345 = vmatpush1.bf16.msra.mxu0 0
    %2346 = vmatprep.subr.bf16.mxu0 0
    %2347 = vmatpush1.bf16.msra.mxu0 0
    %2348 = vmatprep.subr.bf16.mxu0 0
    %2349 = vmatpush1.bf16.msra.mxu0 0
    %2350 = vmatprep.subr.bf16.mxu0 0
    %2351 = vmatpush1.bf16.msra.mxu0 0
    %2352 = vmatprep.subr.bf16.mxu0 0
    %2353 = vmatpush1.bf16.msra.mxu0 0
    %2354 = vmatprep.subr.bf16.mxu0 0
    %2355 = vmatpush1.bf16.msra.mxu0 0
    %2356 = vmatprep.mubr.bf16.mxu0 0
    %2357 = vmatmul.mubr.bf16.gmra.mrb[0].mxu0 %v2240
    %v2358 = vpop.f32.mrb[0].mxu0
    %v2359 = vadd.f32 %v2108, %v2358
    %v2360 = vpop.f32.mrb[0].mxu0
    %v2361 = vadd.f32 %v2112, %v2360
    %v2362 = vpop.f32.mrb[0].mxu0
    %v2363 = vpop.f32.mrb[0].mxu0
    %2364 = vdwg.mxu0
    %v2365 = vpack.c.bf16 %v2277, %v2277
    %v2366 = vpack.c.bf16 %v2318, %v2318
    %v2367 = vpack.c.bf16 %v2359, %v2359
    %v2369 = vsel %vm403, %v2365, 0
    %v2372 = vsel %vm403, %v2366, 0
    %2374 = vmatprep.subr.bf16.mxu0 0
    %2375 = vmatpush1.bf16.xpose.msra.mxu0 %v2372
    %2376 = vmatprep.subr.bf16.mxu0 0
    %2377 = vmatpush1.bf16.xpose.msra.mxu0 0
    %2378 = vmatprep.subr.bf16.mxu0 0
    %2379 = vmatpush1.bf16.xpose.msra.mxu0 0
    %2380 = vmatprep.subr.bf16.mxu0 0
    %2381 = vmatpush1.bf16.xpose.msra.mxu0 0
    %2382 = vmatprep.subr.bf16.mxu0 0
    %2383 = vmatpush1.bf16.xpose.msra.mxu0 0
    %2384 = vmatprep.subr.bf16.mxu0 0
    %2385 = vmatpush1.bf16.xpose.msra.mxu0 0
    %2386 = vmatprep.subr.bf16.mxu0 0
    %2387 = vmatpush1.bf16.xpose.msra.mxu0 0
    %2388 = vmatprep.subr.bf16.mxu0 0
    %2389 = vmatpush1.bf16.xpose.msra.mxu0 0
    %2390 = vmatprep.subr.bf16.mxu0 0
    %2391 = vmatpush1.bf16.xpose.msra.mxu0 0
    %2392 = vmatprep.subr.bf16.mxu0 0
    %2393 = vmatpush1.bf16.xpose.msra.mxu0 0
    %2394 = vmatprep.subr.bf16.mxu0 0
    %2395 = vmatpush1.bf16.xpose.msra.mxu0 0
    %2396 = vmatprep.subr.bf16.mxu0 0
    %2397 = vmatpush1.bf16.xpose.msra.mxu0 0
    %2398 = vmatprep.subr.bf16.mxu0 0
    %2399 = vmatpush1.bf16.xpose.msra.mxu0 0
    %2400 = vmatprep.subr.bf16.mxu0 0
    %2401 = vmatpush1.bf16.xpose.msra.mxu0 0
    %2402 = vmatprep.subr.bf16.mxu0 0
    %2403 = vmatpush1.bf16.xpose.msra.mxu0 0
    %2404 = vmatprep.subr.bf16.mxu0 0
    %2405 = vmatpush1.bf16.xpose.msra.mxu0 0
    %2406 = vmatprep.mubr.bf16.mxu0 0
    %2407 = vmatmul.mubr.bf16.gmra.mrb[0].mxu0 %v2369
    %v2408 = vpop.f32.mrb[0].mxu0
    %v2409 = vadd.f32 0.0, %v2408
    %v2410 = vpop.f32.mrb[0].mxu0
    %v2411 = vpop.f32.mrb[0].mxu0
    %v2412 = vpop.f32.mrb[0].mxu0
    %2413 = vdwg.mxu0
    %v2414 = vsel %vm450, %v2409, -inf
    %2415 = vmax.xlane.f32.xlu0 %v2414
    %v2416 = vpop.xlane.xlu0 %2415
    %v2417 = vsub.f32 %v2409, %v2416
    %v2418 = vmul.f32 %v2417, 1.442695
    %v2419 = vpow.pop %v2418
    %v2420 = vsel %vm450, %v2419, 0.0
    %2421 = vadd.xlane.f32.xlu0 %v2420
    %v2422 = vpop.xlane.xlu0 %2421
    %v2423 = vrcp.pop %v2422
    %v2424 = vmul.f32 %v2419, %v2423
    %v2425 = vpack.c.bf16 %v2424, %v2424
    %v2427 = vsel %vm450, %v2425, 0
    %v2430 = vsel %vm466, %v2367, 0
    %2432 = vmatprep.subr.bf16.mxu0 0
    %2433 = vmatpush1.bf16.msra.mxu0 %v2430
    %2434 = vmatprep.subr.bf16.mxu0 0
    %2435 = vmatpush1.bf16.msra.mxu0 0
    %2436 = vmatprep.subr.bf16.mxu0 0
    %2437 = vmatpush1.bf16.msra.mxu0 0
    %2438 = vmatprep.subr.bf16.mxu0 0
    %2439 = vmatpush1.bf16.msra.mxu0 0
    %2440 = vmatprep.subr.bf16.mxu0 0
    %2441 = vmatpush1.bf16.msra.mxu0 0
    %2442 = vmatprep.subr.bf16.mxu0 0
    %2443 = vmatpush1.bf16.msra.mxu0 0
    %2444 = vmatprep.subr.bf16.mxu0 0
    %2445 = vmatpush1.bf16.msra.mxu0 0
    %2446 = vmatprep.subr.bf16.mxu0 0
    %2447 = vmatpush1.bf16.msra.mxu0 0
    %2448 = vmatprep.subr.bf16.mxu0 0
    %2449 = vmatpush1.bf16.msra.mxu0 0
    %2450 = vmatprep.subr.bf16.mxu0 0
    %2451 = vmatpush1.bf16.msra.mxu0 0
    %2452 = vmatprep.subr.bf16.mxu0 0
    %2453 = vmatpush1.bf16.msra.mxu0 0
    %2454 = vmatprep.subr.bf16.mxu0 0
    %2455 = vmatpush1.bf16.msra.mxu0 0
    %2456 = vmatprep.subr.bf16.mxu0 0
    %2457 = vmatpush1.bf16.msra.mxu0 0
    %2458 = vmatprep.subr.bf16.mxu0 0
    %2459 = vmatpush1.bf16.msra.mxu0 0
    %2460 = vmatprep.subr.bf16.mxu0 0
    %2461 = vmatpush1.bf16.msra.mxu0 0
    %2462 = vmatprep.subr.bf16.mxu0 0
    %2463 = vmatpush1.bf16.msra.mxu0 0
    %2464 = vmatprep.mubr.bf16.mxu0 0
    %2465 = vmatmul.mubr.bf16.gmra.mrb[0].mxu0 %v2427
    %v2466 = vpop.f32.mrb[0].mxu0
    %v2467 = vadd.f32 0.0, %v2466
    %v2468 = vpop.f32.mrb[0].mxu0
    %v2469 = vpop.f32.mrb[0].mxu0
    %v2470 = vpop.f32.mrb[0].mxu0
    %2471 = vdwg.mxu0
    %v2472 = vpack.c.bf16 %v2279, %v2279
    %v2473 = vpack.c.bf16 %v2320, %v2320
    %v2474 = vpack.c.bf16 %v2361, %v2361
    %v2476 = vsel %vm403, %v2472, 0
    %v2479 = vsel %vm403, %v2473, 0
    %2481 = vmatprep.subr.bf16.mxu0 0
    %2482 = vmatpush1.bf16.xpose.msra.mxu0 %v2479
    %2483 = vmatprep.subr.bf16.mxu0 0
    %2484 = vmatpush1.bf16.xpose.msra.mxu0 0
    %2485 = vmatprep.subr.bf16.mxu0 0
    %2486 = vmatpush1.bf16.xpose.msra.mxu0 0
    %2487 = vmatprep.subr.bf16.mxu0 0
    %2488 = vmatpush1.bf16.xpose.msra.mxu0 0
    %2489 = vmatprep.subr.bf16.mxu0 0
    %2490 = vmatpush1.bf16.xpose.msra.mxu0 0
    %2491 = vmatprep.subr.bf16.mxu0 0
    %2492 = vmatpush1.bf16.xpose.msra.mxu0 0
    %2493 = vmatprep.subr.bf16.mxu0 0
    %2494 = vmatpush1.bf16.xpose.msra.mxu0 0
    %2495 = vmatprep.subr.bf16.mxu0 0
    %2496 = vmatpush1.bf16.xpose.msra.mxu0 0
    %2497 = vmatprep.subr.bf16.mxu0 0
    %2498 = vmatpush1.bf16.xpose.msra.mxu0 0
    %2499 = vmatprep.subr.bf16.mxu0 0
    %2500 = vmatpush1.bf16.xpose.msra.mxu0 0
    %2501 = vmatprep.subr.bf16.mxu0 0
    %2502 = vmatpush1.bf16.xpose.msra.mxu0 0
    %2503 = vmatprep.subr.bf16.mxu0 0
    %2504 = vmatpush1.bf16.xpose.msra.mxu0 0
    %2505 = vmatprep.subr.bf16.mxu0 0
    %2506 = vmatpush1.bf16.xpose.msra.mxu0 0
    %2507 = vmatprep.subr.bf16.mxu0 0
    %2508 = vmatpush1.bf16.xpose.msra.mxu0 0
    %2509 = vmatprep.subr.bf16.mxu0 0
    %2510 = vmatpush1.bf16.xpose.msra.mxu0 0
    %2511 = vmatprep.subr.bf16.mxu0 0
    %2512 = vmatpush1.bf16.xpose.msra.mxu0 0
    %2513 = vmatprep.mubr.bf16.mxu0 0
    %2514 = vmatmul.mubr.bf16.gmra.mrb[0].mxu0 %v2476
    %v2515 = vpop.f32.mrb[0].mxu0
    %v2516 = vadd.f32 0.0, %v2515
    %v2517 = vpop.f32.mrb[0].mxu0
    %v2518 = vpop.f32.mrb[0].mxu0
    %v2519 = vpop.f32.mrb[0].mxu0
    %2520 = vdwg.mxu0
    %v2521 = vsel %vm450, %v2516, -inf
    %2522 = vmax.xlane.f32.xlu0 %v2521
    %v2523 = vpop.xlane.xlu0 %2522
    %v2524 = vsub.f32 %v2516, %v2523
    %v2525 = vmul.f32 %v2524, 1.442695
    %v2526 = vpow.pop %v2525
    %v2527 = vsel %vm450, %v2526, 0.0
    %2528 = vadd.xlane.f32.xlu0 %v2527
    %v2529 = vpop.xlane.xlu0 %2528
    %v2530 = vrcp.pop %v2529
    %v2531 = vmul.f32 %v2526, %v2530
    %v2532 = vpack.c.bf16 %v2531, %v2531
    %v2534 = vsel %vm450, %v2532, 0
    %v2537 = vsel %vm466, %v2474, 0
    %2539 = vmatprep.subr.bf16.mxu0 0
    %2540 = vmatpush1.bf16.msra.mxu0 %v2537
    %2541 = vmatprep.subr.bf16.mxu0 0
    %2542 = vmatpush1.bf16.msra.mxu0 0
    %2543 = vmatprep.subr.bf16.mxu0 0
    %2544 = vmatpush1.bf16.msra.mxu0 0
    %2545 = vmatprep.subr.bf16.mxu0 0
    %2546 = vmatpush1.bf16.msra.mxu0 0
    %2547 = vmatprep.subr.bf16.mxu0 0
    %2548 = vmatpush1.bf16.msra.mxu0 0
    %2549 = vmatprep.subr.bf16.mxu0 0
    %2550 = vmatpush1.bf16.msra.mxu0 0
    %2551 = vmatprep.subr.bf16.mxu0 0
    %2552 = vmatpush1.bf16.msra.mxu0 0
    %2553 = vmatprep.subr.bf16.mxu0 0
    %2554 = vmatpush1.bf16.msra.mxu0 0
    %2555 = vmatprep.subr.bf16.mxu0 0
    %2556 = vmatpush1.bf16.msra.mxu0 0
    %2557 = vmatprep.subr.bf16.mxu0 0
    %2558 = vmatpush1.bf16.msra.mxu0 0
    %2559 = vmatprep.subr.bf16.mxu0 0
    %2560 = vmatpush1.bf16.msra.mxu0 0
    %2561 = vmatprep.subr.bf16.mxu0 0
    %2562 = vmatpush1.bf16.msra.mxu0 0
    %2563 = vmatprep.subr.bf16.mxu0 0
    %2564 = vmatpush1.bf16.msra.mxu0 0
    %2565 = vmatprep.subr.bf16.mxu0 0
    %2566 = vmatpush1.bf16.msra.mxu0 0
    %2567 = vmatprep.subr.bf16.mxu0 0
    %2568 = vmatpush1.bf16.msra.mxu0 0
    %2569 = vmatprep.subr.bf16.mxu0 0
    %2570 = vmatpush1.bf16.msra.mxu0 0
    %2571 = vmatprep.mubr.bf16.mxu0 0
    %2572 = vmatmul.mubr.bf16.gmra.mrb[0].mxu0 %v2534
    %v2573 = vpop.f32.mrb[0].mxu0
    %v2574 = vadd.f32 0.0, %v2573
    %v2575 = vpop.f32.mrb[0].mxu0
    %v2576 = vpop.f32.mrb[0].mxu0
    %v2577 = vpop.f32.mrb[0].mxu0
    %2578 = vdwg.mxu0
    %2580 = vrot.lane.b32.xlu0 %v2574, 32
    %v2581 = vpop.permute.xlu0 %2580
    %v2583 = vsel %vm403, %v2467, %v2581
    %v2584 = vpack.c.bf16 %v2583, %v2583
    %s2585 = scalar_lea.vmem %s2, 64
    %v2586 = vld [vmem:[%s2585] sm:$0xf]
    %v2587 = vld [vmem:[%s2585 + $0x4] sm:$0xf]
    %v2588 = vld [vmem:[%s2585 + $0x8] sm:$0xf]
    %v2589 = vld [vmem:[%s2585 + $0xc] sm:$0xf]
    %v2590 = vld [vmem:[%s2585 + $0x10] sm:$0xf]
    %v2591 = vld [vmem:[%s2585 + $0x14] sm:$0xf]
    %v2592 = vld [vmem:[%s2585 + $0x18] sm:$0xf]
    %v2593 = vld [vmem:[%s2585 + $0x1c] sm:$0xf]
    %v2602 = vunpack.c.l.b16 %v2586
    %v2603 = vunpack.c.l.b16 %v2587
    %v2604 = vunpack.c.l.b16 %v2588
    %v2605 = vunpack.c.l.b16 %v2589
    %v2606 = vunpack.c.l.b16 %v2590
    %v2607 = vunpack.c.l.b16 %v2591
    %v2608 = vunpack.c.l.b16 %v2592
    %v2609 = vunpack.c.l.b16 %v2593
    %v2610 = vpack.c.b16 %v2603, %v2602
    %v2611 = vpack.c.b16 %v2605, %v2604
    %v2612 = vpack.c.b16 %v2607, %v2606
    %v2613 = vpack.c.b16 %v2609, %v2608
    %v2619 = vsel %vm273, %v2584, 0
    %2621 = vmatprep.subr.bf16.mxu0 0
    %2622 = vmatpush1.bf16.msra.mxu0 %v2610
    %2623 = vmatprep.subr.bf16.mxu0 0
    %2624 = vmatpush1.bf16.msra.mxu0 %v2611
    %2625 = vmatprep.subr.bf16.mxu0 0
    %2626 = vmatpush1.bf16.msra.mxu0 %v2612
    %2627 = vmatprep.subr.bf16.mxu0 0
    %2628 = vmatpush1.bf16.msra.mxu0 %v2613
    %2629 = vmatprep.subr.bf16.mxu0 0
    %2630 = vmatpush1.bf16.msra.mxu0 0
    %2631 = vmatprep.subr.bf16.mxu0 0
    %2632 = vmatpush1.bf16.msra.mxu0 0
    %2633 = vmatprep.subr.bf16.mxu0 0
    %2634 = vmatpush1.bf16.msra.mxu0 0
    %2635 = vmatprep.subr.bf16.mxu0 0
    %2636 = vmatpush1.bf16.msra.mxu0 0
    %2637 = vmatprep.subr.bf16.mxu0 0
    %2638 = vmatpush1.bf16.msra.mxu0 0
    %2639 = vmatprep.subr.bf16.mxu0 0
    %2640 = vmatpush1.bf16.msra.mxu0 0
    %2641 = vmatprep.subr.bf16.mxu0 0
    %2642 = vmatpush1.bf16.msra.mxu0 0
    %2643 = vmatprep.subr.bf16.mxu0 0
    %2644 = vmatpush1.bf16.msra.mxu0 0
    %2645 = vmatprep.subr.bf16.mxu0 0
    %2646 = vmatpush1.bf16.msra.mxu0 0
    %2647 = vmatprep.subr.bf16.mxu0 0
    %2648 = vmatpush1.bf16.msra.mxu0 0
    %2649 = vmatprep.subr.bf16.mxu0 0
    %2650 = vmatpush1.bf16.msra.mxu0 0
    %2651 = vmatprep.subr.bf16.mxu0 0
    %2652 = vmatpush1.bf16.msra.mxu0 0
    %2653 = vmatprep.mubr.bf16.mxu0 0
    %2654 = vmatmul.mubr.bf16.gmra.mrb[0].mxu0 %v2619
    %v2655 = vpop.f32.mrb[0].mxu0
    %v2656 = vadd.f32 %v2055, %v2655
    %v2657 = vpop.f32.mrb[0].mxu0
    %v2658 = vpop.f32.mrb[0].mxu0
    %v2659 = vpop.f32.mrb[0].mxu0
    %2660 = vdwg.mxu0
    %v2661 = vadd.f32 %v2050, %v2656
    %v2662 = vsel %vm273, %v2661, 0.0
    %2663 = vadd.xlane.f32.xlu0 %v2662
    %v2664 = vpop.xlane.xlu0 %2663
    %v2665 = vmul.f32 %v2664, %v702
    %v2666 = vsub.f32 %v2661, %v2665
    %v2667 = vmul.f32 %v2666, %v2666
    %v2668 = vsel %vm273, %v2667, 0.0
    %2669 = vadd.xlane.f32.xlu0 %v2668
    %v2670 = vpop.xlane.xlu0 %2669
    %v2671 = vmul.f32 %v2670, %v702
    %v2672 = vadd.f32 %v2671, 1e-05
    %v2673 = vrsqrt.pop %v2672
    %v2674 = vmul.f32 %v2666, %v2673
    %v2675 = vmul.f32 %v2674, %v2056
    %v2676 = vadd.f32 %v2675, %v2057
    %v2677 = vpack.c.bf16 %v2676, %v2676
    %s2678 = scalar_lea.vmem [#allocation5], 64
    %v2679 = vld [vmem:[%s2678] sm:$0xf]
    %v2680 = vld [vmem:[%s2678 + $0x4] sm:$0xf]
    %v2681 = vld [vmem:[%s2678 + $0x8] sm:$0xf]
    %v2682 = vld [vmem:[%s2678 + $0xc] sm:$0xf]
    %v2683 = vld [vmem:[%s2678 + $0x10] sm:$0xf]
    %v2684 = vld [vmem:[%s2678 + $0x14] sm:$0xf]
    %v2685 = vld [vmem:[%s2678 + $0x18] sm:$0xf]
    %v2686 = vld [vmem:[%s2678 + $0x1c] sm:$0xf]
    %v2695 = vunpack.c.l.b16 %v2679
    %v2696 = vunpack.c.l.b16 %v2680
    %v2697 = vunpack.c.l.b16 %v2681
    %v2698 = vunpack.c.l.b16 %v2682
    %v2699 = vunpack.c.l.b16 %v2683
    %v2700 = vunpack.c.l.b16 %v2684
    %v2701 = vunpack.c.l.b16 %v2685
    %v2702 = vunpack.c.l.b16 %v2686
    %v2703 = vpack.c.b16 %v2696, %v2695
    %v2704 = vpack.c.b16 %v2698, %v2697
    %v2705 = vpack.c.b16 %v2700, %v2699
    %v2706 = vpack.c.b16 %v2702, %v2701
    %v2712 = vsel %vm273, %v2677, 0
    %2714 = vmatprep.subr.bf16.mxu0 0
    %2715 = vmatpush1.bf16.msra.mxu0 %v2703
    %2716 = vmatprep.subr.bf16.mxu0 0
    %2717 = vmatpush1.bf16.msra.mxu0 %v2704
    %2718 = vmatprep.subr.bf16.mxu0 0
    %2719 = vmatpush1.bf16.msra.mxu0 %v2705
    %2720 = vmatprep.subr.bf16.mxu0 0
    %2721 = vmatpush1.bf16.msra.mxu0 %v2706
    %2722 = vmatprep.subr.bf16.mxu0 0
    %2723 = vmatpush1.bf16.msra.mxu0 0
    %2724 = vmatprep.subr.bf16.mxu0 0
    %2725 = vmatpush1.bf16.msra.mxu0 0
    %2726 = vmatprep.subr.bf16.mxu0 0
    %2727 = vmatpush1.bf16.msra.mxu0 0
    %2728 = vmatprep.subr.bf16.mxu0 0
    %2729 = vmatpush1.bf16.msra.mxu0 0
    %2730 = vmatprep.subr.bf16.mxu0 0
    %2731 = vmatpush1.bf16.msra.mxu0 0
    %2732 = vmatprep.subr.bf16.mxu0 0
    %2733 = vmatpush1.bf16.msra.mxu0 0
    %2734 = vmatprep.subr.bf16.mxu0 0
    %2735 = vmatpush1.bf16.msra.mxu0 0
    %2736 = vmatprep.subr.bf16.mxu0 0
    %2737 = vmatpush1.bf16.msra.mxu0 0
    %2738 = vmatprep.subr.bf16.mxu0 0
    %2739 = vmatpush1.bf16.msra.mxu0 0
    %2740 = vmatprep.subr.bf16.mxu0 0
    %2741 = vmatpush1.bf16.msra.mxu0 0
    %2742 = vmatprep.subr.bf16.mxu0 0
    %2743 = vmatpush1.bf16.msra.mxu0 0
    %2744 = vmatprep.subr.bf16.mxu0 0
    %2745 = vmatpush1.bf16.msra.mxu0 0
    %2746 = vmatprep.mubr.bf16.mxu0 0
    %2747 = vmatmul.mubr.bf16.gmra.mrb[0].mxu0 %v2712
    %v2748 = vpop.f32.mrb[0].mxu0
    %v2749 = vadd.f32 %v2058, %v2748
    %v2750 = vpop.f32.mrb[0].mxu0
    %v2751 = vpop.f32.mrb[0].mxu0
    %v2752 = vpop.f32.mrb[0].mxu0
    %2753 = vdwg.mxu0
    %v2754 = vmax.f32 %v2749, 0.0
    %v2755 = vpack.c.bf16 %v2754, %v2754
    %s2756 = scalar_lea.vmem %s4, 128
    %v2757 = vld [vmem:[%s2756] sm:$0xf]
    %v2758 = vld [vmem:[%s2756 + $0x4] sm:$0xf]
    %v2759 = vld [vmem:[%s2756 + $0x8] sm:$0xf]
    %v2760 = vld [vmem:[%s2756 + $0xc] sm:$0xf]
    %v2761 = vld [vmem:[%s2756 + $0x10] sm:$0xf]
    %v2762 = vld [vmem:[%s2756 + $0x14] sm:$0xf]
    %v2763 = vld [vmem:[%s2756 + $0x18] sm:$0xf]
    %v2764 = vld [vmem:[%s2756 + $0x1c] sm:$0xf]
    %v2765 = vld [vmem:[%s2756 + $0x20] sm:$0xf]
    %v2766 = vld [vmem:[%s2756 + $0x24] sm:$0xf]
    %v2767 = vld [vmem:[%s2756 + $0x28] sm:$0xf]
    %v2768 = vld [vmem:[%s2756 + $0x2c] sm:$0xf]
    %v2769 = vld [vmem:[%s2756 + $0x30] sm:$0xf]
    %v2770 = vld [vmem:[%s2756 + $0x34] sm:$0xf]
    %v2771 = vld [vmem:[%s2756 + $0x38] sm:$0xf]
    %v2772 = vld [vmem:[%s2756 + $0x3c] sm:$0xf]
    %v2789 = vunpack.c.l.b16 %v2757
    %v2790 = vunpack.c.l.b16 %v2758
    %v2791 = vunpack.c.l.b16 %v2759
    %v2792 = vunpack.c.l.b16 %v2760
    %v2793 = vunpack.c.l.b16 %v2761
    %v2794 = vunpack.c.l.b16 %v2762
    %v2795 = vunpack.c.l.b16 %v2763
    %v2796 = vunpack.c.l.b16 %v2764
    %v2797 = vunpack.c.l.b16 %v2765
    %v2798 = vunpack.c.l.b16 %v2766
    %v2799 = vunpack.c.l.b16 %v2767
    %v2800 = vunpack.c.l.b16 %v2768
    %v2801 = vunpack.c.l.b16 %v2769
    %v2802 = vunpack.c.l.b16 %v2770
    %v2803 = vunpack.c.l.b16 %v2771
    %v2804 = vunpack.c.l.b16 %v2772
    %v2805 = vpack.c.b16 %v2790, %v2789
    %v2806 = vpack.c.b16 %v2792, %v2791
    %v2807 = vpack.c.b16 %v2794, %v2793
    %v2808 = vpack.c.b16 %v2796, %v2795
    %v2809 = vpack.c.b16 %v2798, %v2797
    %v2810 = vpack.c.b16 %v2800, %v2799
    %v2811 = vpack.c.b16 %v2802, %v2801
    %v2812 = vpack.c.b16 %v2804, %v2803
    %2821 = vmatprep.subr.bf16.mxu0 0
    %2822 = vmatpush1.bf16.msra.mxu0 %v2805
    %2823 = vmatprep.subr.bf16.mxu0 0
    %2824 = vmatpush1.bf16.msra.mxu0 %v2806
    %2825 = vmatprep.subr.bf16.mxu0 0
    %2826 = vmatpush1.bf16.msra.mxu0 %v2807
    %2827 = vmatprep.subr.bf16.mxu0 0
    %2828 = vmatpush1.bf16.msra.mxu0 %v2808
    %2829 = vmatprep.subr.bf16.mxu0 0
    %2830 = vmatpush1.bf16.msra.mxu0 %v2809
    %2831 = vmatprep.subr.bf16.mxu0 0
    %2832 = vmatpush1.bf16.msra.mxu0 %v2810
    %2833 = vmatprep.subr.bf16.mxu0 0
    %2834 = vmatpush1.bf16.msra.mxu0 %v2811
    %2835 = vmatprep.subr.bf16.mxu0 0
    %2836 = vmatpush1.bf16.msra.mxu0 %v2812
    %2837 = vmatprep.subr.bf16.mxu0 0
    %2838 = vmatpush1.bf16.msra.mxu0 0
    %2839 = vmatprep.subr.bf16.mxu0 0
    %2840 = vmatpush1.bf16.msra.mxu0 0
    %2841 = vmatprep.subr.bf16.mxu0 0
    %2842 = vmatpush1.bf16.msra.mxu0 0
    %2843 = vmatprep.subr.bf16.mxu0 0
    %2844 = vmatpush1.bf16.msra.mxu0 0
    %2845 = vmatprep.subr.bf16.mxu0 0
    %2846 = vmatpush1.bf16.msra.mxu0 0
    %2847 = vmatprep.subr.bf16.mxu0 0
    %2848 = vmatpush1.bf16.msra.mxu0 0
    %2849 = vmatprep.subr.bf16.mxu0 0
    %2850 = vmatpush1.bf16.msra.mxu0 0
    %2851 = vmatprep.subr.bf16.mxu0 0
    %2852 = vmatpush1.bf16.msra.mxu0 0
    %2853 = vmatprep.mubr.bf16.mxu0 0
    %2854 = vmatmul.mubr.bf16.gmra.mrb[0].mxu0 %v2755
    %v2855 = vpop.f32.mrb[0].mxu0
    %v2856 = vadd.f32 %v2059, %v2855
    %v2857 = vpop.f32.mrb[0].mxu0
    %v2858 = vpop.f32.mrb[0].mxu0
    %v2859 = vpop.f32.mrb[0].mxu0
    %2860 = vdwg.mxu0
    %v2861 = vadd.f32 %v2676, %v2856
    %v2862 = vsel %vm273, %v2861, 0.0
    %2863 = vadd.xlane.f32.xlu0 %v2862
    %v2864 = vpop.xlane.xlu0 %2863
    %v2865 = vmul.f32 %v2864, %v702
    %v2866 = vsub.f32 %v2861, %v2865
    %v2867 = vmul.f32 %v2866, %v2866
    %v2868 = vsel %vm273, %v2867, 0.0
    %2869 = vadd.xlane.f32.xlu0 %v2868
    %v2870 = vpop.xlane.xlu0 %2869
    %v2871 = vmul.f32 %v2870, %v702
    %v2872 = vadd.f32 %v2871, 1e-05
    %v2873 = vrsqrt.pop %v2872
    %v2874 = vmul.f32 %v2866, %v2873
    %v2875 = vmul.f32 %v2874, %v2060
    %v2876 = vadd.f32 %v2875, %v2061
    %s2877 = scalar_lea.vmem %s2051, 48
    %v2878 = vld [vmem:[%s2877] ss:$8 sm:$0xf]
    %v2879 = vld [vmem:[%s2877] ss:$8 sm:$0x30]
    %v2880 = vor.u32 %v2878, %v2879
    %v2881 = vld [vmem:[%s2051 + $0x31] ss:$0 sm:$0xff]
    %v2882 = vld [vmem:[%s2051 + $0x32] ss:$0 sm:$0xff]
    %v2883 = vld [vmem:[%s2051 + $0x33] ss:$0 sm:$0xff]
    %v2884 = vld [vmem:[%s2051 + $0x34] ss:$0 sm:$0xff]
    %v2885 = vld [vmem:[%s2051 + $0x35] ss:$0 sm:$0xff]
    %v2886 = vld [vmem:[%s2051 + $0x36] ss:$0 sm:$0xff]
    %v2887 = vld [vmem:[%s2051 + $0x37] ss:$0 sm:$0xff]
    %v2888 = vpack.c.bf16 %v2876, %v2876
    %s2889 = scalar_lea.vmem [#allocation2], 576
    %v2890 = vld [vmem:[%s2889] sm:$0xff]
    %v2891 = vld [vmem:[%s2889 + $0x8] sm:$0xff]
    %v2892 = vld [vmem:[%s2889 + $0x10] sm:$0xff]
    %v2893 = vld [vmem:[%s2889 + $0x18] sm:$0xff]
    %v2894 = vld [vmem:[%s2889 + $0x20] sm:$0xff]
    %v2895 = vld [vmem:[%s2889 + $0x28] sm:$0xff]
    %v2896 = vld [vmem:[%s2889 + $0x30] sm:$0xff]
    %v2897 = vld [vmem:[%s2889 + $0x38] sm:$0xff]
    %v2898 = vld [vmem:[%s2889 + $0x40] sm:$0xff]
    %v2899 = vld [vmem:[%s2889 + $0x48] sm:$0xff]
    %v2900 = vld [vmem:[%s2889 + $0x50] sm:$0xff]
    %v2901 = vld [vmem:[%s2889 + $0x58] sm:$0xff]
    %v2902 = vld [vmem:[%s2889 + $0x60] sm:$0xff]
    %v2903 = vld [vmem:[%s2889 + $0x68] sm:$0xff]
    %v2904 = vld [vmem:[%s2889 + $0x70] sm:$0xff]
    %v2905 = vld [vmem:[%s2889 + $0x78] sm:$0xff]
    %v2906 = vld [vmem:[%s2889 + $0x80] sm:$0xff]
    %v2907 = vld [vmem:[%s2889 + $0x88] sm:$0xff]
    %v2908 = vld [vmem:[%s2889 + $0x90] sm:$0xff]
    %v2909 = vld [vmem:[%s2889 + $0x98] sm:$0xff]
    %v2910 = vld [vmem:[%s2889 + $0xa0] sm:$0xff]
    %v2911 = vld [vmem:[%s2889 + $0xa8] sm:$0xff]
    %v2912 = vld [vmem:[%s2889 + $0xb0] sm:$0xff]
    %v2913 = vld [vmem:[%s2889 + $0xb8] sm:$0xff]
    %v2915 = vlaneseq
    %v2916 = vshrl.u32 %v2915, 7
    %v2917 = vsub.s32 0, %v2916
    %v2918 = vrot.slane %v2880, %v2917
    %v2919 = vlaneseq
    %v2920 = vshrl.u32 %v2919, 7
    %v2921 = vsub.s32 1, %v2920
    %v2922 = vrot.slane %v2880, %v2921
    %v2923 = vlaneseq
    %v2924 = vshrl.u32 %v2923, 7
    %v2925 = vsub.s32 2, %v2924
    %v2926 = vrot.slane %v2880, %v2925
    %v2927 = vlaneseq
    %v2928 = vshrl.u32 %v2927, 7
    %v2929 = vsub.s32 3, %v2928
    %v2930 = vrot.slane %v2880, %v2929
    %v2931 = vlaneseq
    %v2932 = vshrl.u32 %v2931, 7
    %v2933 = vsub.s32 4, %v2932
    %v2934 = vrot.slane %v2880, %v2933
    %v2935 = vlaneseq
    %v2936 = vshrl.u32 %v2935, 7
    %v2937 = vsub.s32 5, %v2936
    %v2938 = vrot.slane %v2880, %v2937
    %v2969 = vunpack.c.l.b16 %v2890
    %v2970 = vunpack.c.h.b16 %v2890
    %v2971 = vunpack.c.l.b16 %v2891
    %v2972 = vunpack.c.h.b16 %v2891
    %v2973 = vunpack.c.l.b16 %v2892
    %v2974 = vunpack.c.h.b16 %v2892
    %v2975 = vunpack.c.l.b16 %v2893
    %v2976 = vunpack.c.h.b16 %v2893
    %v2977 = vunpack.c.l.b16 %v2894
    %v2978 = vunpack.c.h.b16 %v2894
    %v2979 = vunpack.c.l.b16 %v2895
    %v2980 = vunpack.c.h.b16 %v2895
    %v2981 = vunpack.c.l.b16 %v2896
    %v2982 = vunpack.c.h.b16 %v2896
    %v2983 = vunpack.c.l.b16 %v2897
    %v2984 = vunpack.c.h.b16 %v2897
    %v2985 = vunpack.c.l.b16 %v2898
    %v2986 = vunpack.c.h.b16 %v2898
    %v2987 = vunpack.c.l.b16 %v2899
    %v2988 = vunpack.c.h.b16 %v2899
    %v2989 = vunpack.c.l.b16 %v2900
    %v2990 = vunpack.c.h.b16 %v2900
    %v2991 = vunpack.c.l.b16 %v2901
    %v2992 = vunpack.c.h.b16 %v2901
    %v2993 = vunpack.c.l.b16 %v2902
    %v2994 = vunpack.c.h.b16 %v2902
    %v2995 = vunpack.c.l.b16 %v2903
    %v2996 = vunpack.c.h.b16 %v2903
    %v2997 = vunpack.c.l.b16 %v2904
    %v2998 = vunpack.c.h.b16 %v2904
    %v2999 = vunpack.c.l.b16 %v2905
    %v3000 = vunpack.c.h.b16 %v2905
    %v3001 = vunpack.c.l.b16 %v2906
    %v3002 = vunpack.c.h.b16 %v2906
    %v3003 = vunpack.c.l.b16 %v2907
    %v3004 = vunpack.c.h.b16 %v2907
    %v3005 = vunpack.c.l.b16 %v2908
    %v3006 = vunpack.c.h.b16 %v2908
    %v3007 = vunpack.c.l.b16 %v2909
    %v3008 = vunpack.c.h.b16 %v2909
    %v3009 = vunpack.c.l.b16 %v2910
    %v3010 = vunpack.c.h.b16 %v2910
    %v3011 = vunpack.c.l.b16 %v2911
    %v3012 = vunpack.c.h.b16 %v2911
    %v3013 = vunpack.c.l.b16 %v2912
    %v3014 = vunpack.c.h.b16 %v2912
    %v3015 = vunpack.c.l.b16 %v2913
    %v3016 = vunpack.c.h.b16 %v2913
    %v3017 = vpack.c.b16 %v2975, %v2969
    %v3018 = vpack.c.b16 %v2976, %v2970
    %v3019 = vpack.c.b16 %v2977, %v2971
    %v3020 = vpack.c.b16 %v2978, %v2972
    %v3021 = vpack.c.b16 %v2979, %v2973
    %v3022 = vpack.c.b16 %v2980, %v2974
    %v3023 = vpack.c.b16 %v2987, %v2981
    %v3024 = vpack.c.b16 %v2988, %v2982
    %v3025 = vpack.c.b16 %v2989, %v2983
    %v3026 = vpack.c.b16 %v2990, %v2984
    %v3027 = vpack.c.b16 %v2991, %v2985
    %v3028 = vpack.c.b16 %v2992, %v2986
    %v3029 = vpack.c.b16 %v2999, %v2993
    %v3030 = vpack.c.b16 %v3000, %v2994
    %v3031 = vpack.c.b16 %v3001, %v2995
    %v3032 = vpack.c.b16 %v3002, %v2996
    %v3033 = vpack.c.b16 %v3003, %v2997
    %v3034 = vpack.c.b16 %v3004, %v2998
    %v3035 = vpack.c.b16 %v3011, %v3005
    %v3036 = vpack.c.b16 %v3012, %v3006
    %v3037 = vpack.c.b16 %v3013, %v3007
    %v3038 = vpack.c.b16 %v3014, %v3008
    %v3039 = vpack.c.b16 %v3015, %v3009
    %v3040 = vpack.c.b16 %v3016, %v3010
    %v3066 = vsel %vm273, %v2888, 0
    %3068 = vmatprep.subr.bf16.mxu0 %v3018
    %3069 = vmatpush1.bf16.msra.mxu0 %v3017
    %3070 = vmatprep.subr.bf16.mxu0 %v3024
    %3071 = vmatpush1.bf16.msra.mxu0 %v3023
    %3072 = vmatprep.subr.bf16.mxu0 %v3030
    %3073 = vmatpush1.bf16.msra.mxu0 %v3029
    %3074 = vmatprep.subr.bf16.mxu0 %v3036
    %3075 = vmatpush1.bf16.msra.mxu0 %v3035
    %3076 = vmatprep.subr.bf16.mxu0 0
    %3077 = vmatpush1.bf16.msra.mxu0 0
    %3078 = vmatprep.subr.bf16.mxu0 0
    %3079 = vmatpush1.bf16.msra.mxu0 0
    %3080 = vmatprep.subr.bf16.mxu0 0
    %3081 = vmatpush1.bf16.msra.mxu0 0
    %3082 = vmatprep.subr.bf16.mxu0 0
    %3083 = vmatpush1.bf16.msra.mxu0 0
    %3084 = vmatprep.subr.bf16.mxu0 0
    %3085 = vmatpush1.bf16.msra.mxu0 0
    %3086 = vmatprep.subr.bf16.mxu0 0
    %3087 = vmatpush1.bf16.msra.mxu0 0
    %3088 = vmatprep.subr.bf16.mxu0 0
    %3089 = vmatpush1.bf16.msra.mxu0 0
    %3090 = vmatprep.subr.bf16.mxu0 0
    %3091 = vmatpush1.bf16.msra.mxu0 0
    %3092 = vmatprep.subr.bf16.mxu0 0
    %3093 = vmatpush1.bf16.msra.mxu0 0
    %3094 = vmatprep.subr.bf16.mxu0 0
    %3095 = vmatpush1.bf16.msra.mxu0 0
    %3096 = vmatprep.subr.bf16.mxu0 0
    %3097 = vmatpush1.bf16.msra.mxu0 0
    %3098 = vmatprep.subr.bf16.mxu0 0
    %3099 = vmatpush1.bf16.msra.mxu0 0
    %3100 = vmatprep.mubr.bf16.mxu0 0
    %3101 = vmatmul.mubr.bf16.gmra.mrb[0].mxu0 %v3066
    %v3102 = vpop.f32.mrb[0].mxu0
    %v3103 = vadd.f32 %v2918, %v3102
    %v3104 = vpop.f32.mrb[0].mxu0
    %v3105 = vadd.f32 %v2922, %v3104
    %v3106 = vpop.f32.mrb[0].mxu0
    %v3107 = vpop.f32.mrb[0].mxu0
    %3108 = vdwg.mxu0
    %3109 = vmatprep.subr.bf16.mxu0 %v3020
    %3110 = vmatpush1.bf16.msra.mxu0 %v3019
    %3111 = vmatprep.subr.bf16.mxu0 %v3026
    %3112 = vmatpush1.bf16.msra.mxu0 %v3025
    %3113 = vmatprep.subr.bf16.mxu0 %v3032
    %3114 = vmatpush1.bf16.msra.mxu0 %v3031
    %3115 = vmatprep.subr.bf16.mxu0 %v3038
    %3116 = vmatpush1.bf16.msra.mxu0 %v3037
    %3117 = vmatprep.subr.bf16.mxu0 0
    %3118 = vmatpush1.bf16.msra.mxu0 0
    %3119 = vmatprep.subr.bf16.mxu0 0
    %3120 = vmatpush1.bf16.msra.mxu0 0
    %3121 = vmatprep.subr.bf16.mxu0 0
    %3122 = vmatpush1.bf16.msra.mxu0 0
    %3123 = vmatprep.subr.bf16.mxu0 0
    %3124 = vmatpush1.bf16.msra.mxu0 0
    %3125 = vmatprep.subr.bf16.mxu0 0
    %3126 = vmatpush1.bf16.msra.mxu0 0
    %3127 = vmatprep.subr.bf16.mxu0 0
    %3128 = vmatpush1.bf16.msra.mxu0 0
    %3129 = vmatprep.subr.bf16.mxu0 0
    %3130 = vmatpush1.bf16.msra.mxu0 0
    %3131 = vmatprep.subr.bf16.mxu0 0
    %3132 = vmatpush1.bf16.msra.mxu0 0
    %3133 = vmatprep.subr.bf16.mxu0 0
    %3134 = vmatpush1.bf16.msra.mxu0 0
    %3135 = vmatprep.subr.bf16.mxu0 0
    %3136 = vmatpush1.bf16.msra.mxu0 0
    %3137 = vmatprep.subr.bf16.mxu0 0
    %3138 = vmatpush1.bf16.msra.mxu0 0
    %3139 = vmatprep.subr.bf16.mxu0 0
    %3140 = vmatpush1.bf16.msra.mxu0 0
    %3141 = vmatprep.mubr.bf16.mxu0 0
    %3142 = vmatmul.mubr.bf16.gmra.mrb[0].mxu0 %v3066
    %v3143 = vpop.f32.mrb[0].mxu0
    %v3144 = vadd.f32 %v2926, %v3143
    %v3145 = vpop.f32.mrb[0].mxu0
    %v3146 = vadd.f32 %v2930, %v3145
    %v3147 = vpop.f32.mrb[0].mxu0
    %v3148 = vpop.f32.mrb[0].mxu0
    %3149 = vdwg.mxu0
    %3150 = vmatprep.subr.bf16.mxu0 %v3022
    %3151 = vmatpush1.bf16.msra.mxu0 %v3021
    %3152 = vmatprep.subr.bf16.mxu0 %v3028
    %3153 = vmatpush1.bf16.msra.mxu0 %v3027
    %3154 = vmatprep.subr.bf16.mxu0 %v3034
    %3155 = vmatpush1.bf16.msra.mxu0 %v3033
    %3156 = vmatprep.subr.bf16.mxu0 %v3040
    %3157 = vmatpush1.bf16.msra.mxu0 %v3039
    %3158 = vmatprep.subr.bf16.mxu0 0
    %3159 = vmatpush1.bf16.msra.mxu0 0
    %3160 = vmatprep.subr.bf16.mxu0 0
    %3161 = vmatpush1.bf16.msra.mxu0 0
    %3162 = vmatprep.subr.bf16.mxu0 0
    %3163 = vmatpush1.bf16.msra.mxu0 0
    %3164 = vmatprep.subr.bf16.mxu0 0
    %3165 = vmatpush1.bf16.msra.mxu0 0
    %3166 = vmatprep.subr.bf16.mxu0 0
    %3167 = vmatpush1.bf16.msra.mxu0 0
    %3168 = vmatprep.subr.bf16.mxu0 0
    %3169 = vmatpush1.bf16.msra.mxu0 0
    %3170 = vmatprep.subr.bf16.mxu0 0
    %3171 = vmatpush1.bf16.msra.mxu0 0
    %3172 = vmatprep.subr.bf16.mxu0 0
    %3173 = vmatpush1.bf16.msra.mxu0 0
    %3174 = vmatprep.subr.bf16.mxu0 0
    %3175 = vmatpush1.bf16.msra.mxu0 0
    %3176 = vmatprep.subr.bf16.mxu0 0
    %3177 = vmatpush1.bf16.msra.mxu0 0
    %3178 = vmatprep.subr.bf16.mxu0 0
    %3179 = vmatpush1.bf16.msra.mxu0 0
    %3180 = vmatprep.subr.bf16.mxu0 0
    %3181 = vmatpush1.bf16.msra.mxu0 0
    %3182 = vmatprep.mubr.bf16.mxu0 0
    %3183 = vmatmul.mubr.bf16.gmra.mrb[0].mxu0 %v3066
    %v3184 = vpop.f32.mrb[0].mxu0
    %v3185 = vadd.f32 %v2934, %v3184
    %v3186 = vpop.f32.mrb[0].mxu0
    %v3187 = vadd.f32 %v2938, %v3186
    %v3188 = vpop.f32.mrb[0].mxu0
    %v3189 = vpop.f32.mrb[0].mxu0
    %3190 = vdwg.mxu0
    %v3191 = vpack.c.bf16 %v3103, %v3103
    %v3192 = vpack.c.bf16 %v3144, %v3144
    %v3193 = vpack.c.bf16 %v3185, %v3185
    %v3195 = vsel %vm403, %v3191, 0
    %v3198 = vsel %vm403, %v3192, 0
    %3200 = vmatprep.subr.bf16.mxu0 0
    %3201 = vmatpush1.bf16.xpose.msra.mxu0 %v3198
    %3202 = vmatprep.subr.bf16.mxu0 0
    %3203 = vmatpush1.bf16.xpose.msra.mxu0 0
    %3204 = vmatprep.subr.bf16.mxu0 0
    %3205 = vmatpush1.bf16.xpose.msra.mxu0 0
    %3206 = vmatprep.subr.bf16.mxu0 0
    %3207 = vmatpush1.bf16.xpose.msra.mxu0 0
    %3208 = vmatprep.subr.bf16.mxu0 0
    %3209 = vmatpush1.bf16.xpose.msra.mxu0 0
    %3210 = vmatprep.subr.bf16.mxu0 0
    %3211 = vmatpush1.bf16.xpose.msra.mxu0 0
    %3212 = vmatprep.subr.bf16.mxu0 0
    %3213 = vmatpush1.bf16.xpose.msra.mxu0 0
    %3214 = vmatprep.subr.bf16.mxu0 0
    %3215 = vmatpush1.bf16.xpose.msra.mxu0 0
    %3216 = vmatprep.subr.bf16.mxu0 0
    %3217 = vmatpush1.bf16.xpose.msra.mxu0 0
    %3218 = vmatprep.subr.bf16.mxu0 0
    %3219 = vmatpush1.bf16.xpose.msra.mxu0 0
    %3220 = vmatprep.subr.bf16.mxu0 0
    %3221 = vmatpush1.bf16.xpose.msra.mxu0 0
    %3222 = vmatprep.subr.bf16.mxu0 0
    %3223 = vmatpush1.bf16.xpose.msra.mxu0 0
    %3224 = vmatprep.subr.bf16.mxu0 0
    %3225 = vmatpush1.bf16.xpose.msra.mxu0 0
    %3226 = vmatprep.subr.bf16.mxu0 0
    %3227 = vmatpush1.bf16.xpose.msra.mxu0 0
    %3228 = vmatprep.subr.bf16.mxu0 0
    %3229 = vmatpush1.bf16.xpose.msra.mxu0 0
    %3230 = vmatprep.subr.bf16.mxu0 0
    %3231 = vmatpush1.bf16.xpose.msra.mxu0 0
    %3232 = vmatprep.mubr.bf16.mxu0 0
    %3233 = vmatmul.mubr.bf16.gmra.mrb[0].mxu0 %v3195
    %v3234 = vpop.f32.mrb[0].mxu0
    %v3235 = vadd.f32 0.0, %v3234
    %v3236 = vpop.f32.mrb[0].mxu0
    %v3237 = vpop.f32.mrb[0].mxu0
    %v3238 = vpop.f32.mrb[0].mxu0
    %3239 = vdwg.mxu0
    %v3240 = vsel %vm450, %v3235, -inf
    %3241 = vmax.xlane.f32.xlu0 %v3240
    %v3242 = vpop.xlane.xlu0 %3241
    %v3243 = vsub.f32 %v3235, %v3242
    %v3244 = vmul.f32 %v3243, 1.442695
    %v3245 = vpow.pop %v3244
    %v3246 = vsel %vm450, %v3245, 0.0
    %3247 = vadd.xlane.f32.xlu0 %v3246
    %v3248 = vpop.xlane.xlu0 %3247
    %v3249 = vrcp.pop %v3248
    %v3250 = vmul.f32 %v3245, %v3249
    %v3251 = vpack.c.bf16 %v3250, %v3250
    %v3253 = vsel %vm450, %v3251, 0
    %v3256 = vsel %vm466, %v3193, 0
    %3258 = vmatprep.subr.bf16.mxu0 0
    %3259 = vmatpush1.bf16.msra.mxu0 %v3256
    %3260 = vmatprep.subr.bf16.mxu0 0
    %3261 = vmatpush1.bf16.msra.mxu0 0
    %3262 = vmatprep.subr.bf16.mxu0 0
    %3263 = vmatpush1.bf16.msra.mxu0 0
    %3264 = vmatprep.subr.bf16.mxu0 0
    %3265 = vmatpush1.bf16.msra.mxu0 0
    %3266 = vmatprep.subr.bf16.mxu0 0
    %3267 = vmatpush1.bf16.msra.mxu0 0
    %3268 = vmatprep.subr.bf16.mxu0 0
    %3269 = vmatpush1.bf16.msra.mxu0 0
    %3270 = vmatprep.subr.bf16.mxu0 0
    %3271 = vmatpush1.bf16.msra.mxu0 0
    %3272 = vmatprep.subr.bf16.mxu0 0
    %3273 = vmatpush1.bf16.msra.mxu0 0
    %3274 = vmatprep.subr.bf16.mxu0 0
    %3275 = vmatpush1.bf16.msra.mxu0 0
    %3276 = vmatprep.subr.bf16.mxu0 0
    %3277 = vmatpush1.bf16.msra.mxu0 0
    %3278 = vmatprep.subr.bf16.mxu0 0
    %3279 = vmatpush1.bf16.msra.mxu0 0
    %3280 = vmatprep.subr.bf16.mxu0 0
    %3281 = vmatpush1.bf16.msra.mxu0 0
    %3282 = vmatprep.subr.bf16.mxu0 0
    %3283 = vmatpush1.bf16.msra.mxu0 0
    %3284 = vmatprep.subr.bf16.mxu0 0
    %3285 = vmatpush1.bf16.msra.mxu0 0
    %3286 = vmatprep.subr.bf16.mxu0 0
    %3287 = vmatpush1.bf16.msra.mxu0 0
    %3288 = vmatprep.subr.bf16.mxu0 0
    %3289 = vmatpush1.bf16.msra.mxu0 0
    %3290 = vmatprep.mubr.bf16.mxu0 0
    %3291 = vmatmul.mubr.bf16.gmra.mrb[0].mxu0 %v3253
    %v3292 = vpop.f32.mrb[0].mxu0
    %v3293 = vadd.f32 0.0, %v3292
    %v3294 = vpop.f32.mrb[0].mxu0
    %v3295 = vpop.f32.mrb[0].mxu0
    %v3296 = vpop.f32.mrb[0].mxu0
    %3297 = vdwg.mxu0
    %v3298 = vpack.c.bf16 %v3105, %v3105
    %v3299 = vpack.c.bf16 %v3146, %v3146
    %v3300 = vpack.c.bf16 %v3187, %v3187
    %v3302 = vsel %vm403, %v3298, 0
    %v3305 = vsel %vm403, %v3299, 0
    %3307 = vmatprep.subr.bf16.mxu0 0
    %3308 = vmatpush1.bf16.xpose.msra.mxu0 %v3305
    %3309 = vmatprep.subr.bf16.mxu0 0
    %3310 = vmatpush1.bf16.xpose.msra.mxu0 0
    %3311 = vmatprep.subr.bf16.mxu0 0
    %3312 = vmatpush1.bf16.xpose.msra.mxu0 0
    %3313 = vmatprep.subr.bf16.mxu0 0
    %3314 = vmatpush1.bf16.xpose.msra.mxu0 0
    %3315 = vmatprep.subr.bf16.mxu0 0
    %3316 = vmatpush1.bf16.xpose.msra.mxu0 0
    %3317 = vmatprep.subr.bf16.mxu0 0
    %3318 = vmatpush1.bf16.xpose.msra.mxu0 0
    %3319 = vmatprep.subr.bf16.mxu0 0
    %3320 = vmatpush1.bf16.xpose.msra.mxu0 0
    %3321 = vmatprep.subr.bf16.mxu0 0
    %3322 = vmatpush1.bf16.xpose.msra.mxu0 0
    %3323 = vmatprep.subr.bf16.mxu0 0
    %3324 = vmatpush1.bf16.xpose.msra.mxu0 0
    %3325 = vmatprep.subr.bf16.mxu0 0
    %3326 = vmatpush1.bf16.xpose.msra.mxu0 0
    %3327 = vmatprep.subr.bf16.mxu0 0
    %3328 = vmatpush1.bf16.xpose.msra.mxu0 0
    %3329 = vmatprep.subr.bf16.mxu0 0
    %3330 = vmatpush1.bf16.xpose.msra.mxu0 0
    %3331 = vmatprep.subr.bf16.mxu0 0
    %3332 = vmatpush1.bf16.xpose.msra.mxu0 0
    %3333 = vmatprep.subr.bf16.mxu0 0
    %3334 = vmatpush1.bf16.xpose.msra.mxu0 0
    %3335 = vmatprep.subr.bf16.mxu0 0
    %3336 = vmatpush1.bf16.xpose.msra.mxu0 0
    %3337 = vmatprep.subr.bf16.mxu0 0
    %3338 = vmatpush1.bf16.xpose.msra.mxu0 0
    %3339 = vmatprep.mubr.bf16.mxu0 0
    %3340 = vmatmul.mubr.bf16.gmra.mrb[0].mxu0 %v3302
    %v3341 = vpop.f32.mrb[0].mxu0
    %v3342 = vadd.f32 0.0, %v3341
    %v3343 = vpop.f32.mrb[0].mxu0
    %v3344 = vpop.f32.mrb[0].mxu0
    %v3345 = vpop.f32.mrb[0].mxu0
    %3346 = vdwg.mxu0
    %v3347 = vsel %vm450, %v3342, -inf
    %3348 = vmax.xlane.f32.xlu0 %v3347
    %v3349 = vpop.xlane.xlu0 %3348
    %v3350 = vsub.f32 %v3342, %v3349
    %v3351 = vmul.f32 %v3350, 1.442695
    %v3352 = vpow.pop %v3351
    %v3353 = vsel %vm450, %v3352, 0.0
    %3354 = vadd.xlane.f32.xlu0 %v3353
    %v3355 = vpop.xlane.xlu0 %3354
    %v3356 = vrcp.pop %v3355
    %v3357 = vmul.f32 %v3352, %v3356
    %v3358 = vpack.c.bf16 %v3357, %v3357
    %v3360 = vsel %vm450, %v3358, 0
    %v3363 = vsel %vm466, %v3300, 0
    %3365 = vmatprep.subr.bf16.mxu0 0
    %3366 = vmatpush1.bf16.msra.mxu0 %v3363
    %3367 = vmatprep.subr.bf16.mxu0 0
    %3368 = vmatpush1.bf16.msra.mxu0 0
    %3369 = vmatprep.subr.bf16.mxu0 0
    %3370 = vmatpush1.bf16.msra.mxu0 0
    %3371 = vmatprep.subr.bf16.mxu0 0
    %3372 = vmatpush1.bf16.msra.mxu0 0
    %3373 = vmatprep.subr.bf16.mxu0 0
    %3374 = vmatpush1.bf16.msra.mxu0 0
    %3375 = vmatprep.subr.bf16.mxu0 0
    %3376 = vmatpush1.bf16.msra.mxu0 0
    %3377 = vmatprep.subr.bf16.mxu0 0
    %3378 = vmatpush1.bf16.msra.mxu0 0
    %3379 = vmatprep.subr.bf16.mxu0 0
    %3380 = vmatpush1.bf16.msra.mxu0 0
    %3381 = vmatprep.subr.bf16.mxu0 0
    %3382 = vmatpush1.bf16.msra.mxu0 0
    %3383 = vmatprep.subr.bf16.mxu0 0
    %3384 = vmatpush1.bf16.msra.mxu0 0
    %3385 = vmatprep.subr.bf16.mxu0 0
    %3386 = vmatpush1.bf16.msra.mxu0 0
    %3387 = vmatprep.subr.bf16.mxu0 0
    %3388 = vmatpush1.bf16.msra.mxu0 0
    %3389 = vmatprep.subr.bf16.mxu0 0
    %3390 = vmatpush1.bf16.msra.mxu0 0
    %3391 = vmatprep.subr.bf16.mxu0 0
    %3392 = vmatpush1.bf16.msra.mxu0 0
    %3393 = vmatprep.subr.bf16.mxu0 0
    %3394 = vmatpush1.bf16.msra.mxu0 0
    %3395 = vmatprep.subr.bf16.mxu0 0
    %3396 = vmatpush1.bf16.msra.mxu0 0
    %3397 = vmatprep.mubr.bf16.mxu0 0
    %3398 = vmatmul.mubr.bf16.gmra.mrb[0].mxu0 %v3360
    %v3399 = vpop.f32.mrb[0].mxu0
    %v3400 = vadd.f32 0.0, %v3399
    %v3401 = vpop.f32.mrb[0].mxu0
    %v3402 = vpop.f32.mrb[0].mxu0
    %v3403 = vpop.f32.mrb[0].mxu0
    %3404 = vdwg.mxu0
    %3406 = vrot.lane.b32.xlu0 %v3400, 32
    %v3407 = vpop.permute.xlu0 %3406
    %v3409 = vsel %vm403, %v3293, %v3407
    %v3410 = vpack.c.bf16 %v3409, %v3409
    %s3411 = scalar_lea.vmem %s2, 96
    %v3412 = vld [vmem:[%s3411] sm:$0xf]
    %v3413 = vld [vmem:[%s3411 + $0x4] sm:$0xf]
    %v3414 = vld [vmem:[%s3411 + $0x8] sm:$0xf]
    %v3415 = vld [vmem:[%s3411 + $0xc] sm:$0xf]
    %v3416 = vld [vmem:[%s3411 + $0x10] sm:$0xf]
    %v3417 = vld [vmem:[%s3411 + $0x14] sm:$0xf]
    %v3418 = vld [vmem:[%s3411 + $0x18] sm:$0xf]
    %v3419 = vld [vmem:[%s3411 + $0x1c] sm:$0xf]
    %v3428 = vunpack.c.l.b16 %v3412
    %v3429 = vunpack.c.l.b16 %v3413
    %v3430 = vunpack.c.l.b16 %v3414
    %v3431 = vunpack.c.l.b16 %v3415
    %v3432 = vunpack.c.l.b16 %v3416
    %v3433 = vunpack.c.l.b16 %v3417
    %v3434 = vunpack.c.l.b16 %v3418
    %v3435 = vunpack.c.l.b16 %v3419
    %v3436 = vpack.c.b16 %v3429, %v3428
    %v3437 = vpack.c.b16 %v3431, %v3430
    %v3438 = vpack.c.b16 %v3433, %v3432
    %v3439 = vpack.c.b16 %v3435, %v3434
    %v3445 = vsel %vm273, %v3410, 0
    %3447 = vmatprep.subr.bf16.mxu0 0
    %3448 = vmatpush1.bf16.msra.mxu0 %v3436
    %3449 = vmatprep.subr.bf16.mxu0 0
    %3450 = vmatpush1.bf16.msra.mxu0 %v3437
    %3451 = vmatprep.subr.bf16.mxu0 0
    %3452 = vmatpush1.bf16.msra.mxu0 %v3438
    %3453 = vmatprep.subr.bf16.mxu0 0
    %3454 = vmatpush1.bf16.msra.mxu0 %v3439
    %3455 = vmatprep.subr.bf16.mxu0 0
    %3456 = vmatpush1.bf16.msra.mxu0 0
    %3457 = vmatprep.subr.bf16.mxu0 0
    %3458 = vmatpush1.bf16.msra.mxu0 0
    %3459 = vmatprep.subr.bf16.mxu0 0
    %3460 = vmatpush1.bf16.msra.mxu0 0
    %3461 = vmatprep.subr.bf16.mxu0 0
    %3462 = vmatpush1.bf16.msra.mxu0 0
    %3463 = vmatprep.subr.bf16.mxu0 0
    %3464 = vmatpush1.bf16.msra.mxu0 0
    %3465 = vmatprep.subr.bf16.mxu0 0
    %3466 = vmatpush1.bf16.msra.mxu0 0
    %3467 = vmatprep.subr.bf16.mxu0 0
    %3468 = vmatpush1.bf16.msra.mxu0 0
    %3469 = vmatprep.subr.bf16.mxu0 0
    %3470 = vmatpush1.bf16.msra.mxu0 0
    %3471 = vmatprep.subr.bf16.mxu0 0
    %3472 = vmatpush1.bf16.msra.mxu0 0
    %3473 = vmatprep.subr.bf16.mxu0 0
    %3474 = vmatpush1.bf16.msra.mxu0 0
    %3475 = vmatprep.subr.bf16.mxu0 0
    %3476 = vmatpush1.bf16.msra.mxu0 0
    %3477 = vmatprep.subr.bf16.mxu0 0
    %3478 = vmatpush1.bf16.msra.mxu0 0
    %3479 = vmatprep.mubr.bf16.mxu0 0
    %3480 = vmatmul.mubr.bf16.gmra.mrb[0].mxu0 %v3445
    %v3481 = vpop.f32.mrb[0].mxu0
    %v3482 = vadd.f32 %v2881, %v3481
    %v3483 = vpop.f32.mrb[0].mxu0
    %v3484 = vpop.f32.mrb[0].mxu0
    %v3485 = vpop.f32.mrb[0].mxu0
    %3486 = vdwg.mxu0
    %v3487 = vadd.f32 %v2876, %v3482
    %v3488 = vsel %vm273, %v3487, 0.0
    %3489 = vadd.xlane.f32.xlu0 %v3488
    %v3490 = vpop.xlane.xlu0 %3489
    %v3491 = vmul.f32 %v3490, %v702
    %v3492 = vsub.f32 %v3487, %v3491
    %v3493 = vmul.f32 %v3492, %v3492
    %v3494 = vsel %vm273, %v3493, 0.0
    %3495 = vadd.xlane.f32.xlu0 %v3494
    %v3496 = vpop.xlane.xlu0 %3495
    %v3497 = vmul.f32 %v3496, %v702
    %v3498 = vadd.f32 %v3497, 1e-05
    %v3499 = vrsqrt.pop %v3498
    %v3500 = vmul.f32 %v3492, %v3499
    %v3501 = vmul.f32 %v3500, %v2882
    %v3502 = vadd.f32 %v3501, %v2883
    %v3503 = vpack.c.bf16 %v3502, %v3502
    %s3504 = scalar_lea.vmem [#allocation5], 96
    %v3505 = vld [vmem:[%s3504] sm:$0xf]
    %v3506 = vld [vmem:[%s3504 + $0x4] sm:$0xf]
    %v3507 = vld [vmem:[%s3504 + $0x8] sm:$0xf]
    %v3508 = vld [vmem:[%s3504 + $0xc] sm:$0xf]
    %v3509 = vld [vmem:[%s3504 + $0x10] sm:$0xf]
    %v3510 = vld [vmem:[%s3504 + $0x14] sm:$0xf]
    %v3511 = vld [vmem:[%s3504 + $0x18] sm:$0xf]
    %v3512 = vld [vmem:[%s3504 + $0x1c] sm:$0xf]
    %v3521 = vunpack.c.l.b16 %v3505
    %v3522 = vunpack.c.l.b16 %v3506
    %v3523 = vunpack.c.l.b16 %v3507
    %v3524 = vunpack.c.l.b16 %v3508
    %v3525 = vunpack.c.l.b16 %v3509
    %v3526 = vunpack.c.l.b16 %v3510
    %v3527 = vunpack.c.l.b16 %v3511
    %v3528 = vunpack.c.l.b16 %v3512
    %v3529 = vpack.c.b16 %v3522, %v3521
    %v3530 = vpack.c.b16 %v3524, %v3523
    %v3531 = vpack.c.b16 %v3526, %v3525
    %v3532 = vpack.c.b16 %v3528, %v3527
    %v3538 = vsel %vm273, %v3503, 0
    %3540 = vmatprep.subr.bf16.mxu0 0
    %3541 = vmatpush1.bf16.msra.mxu0 %v3529
    %3542 = vmatprep.subr.bf16.mxu0 0
    %3543 = vmatpush1.bf16.msra.mxu0 %v3530
    %3544 = vmatprep.subr.bf16.mxu0 0
    %3545 = vmatpush1.bf16.msra.mxu0 %v3531
    %3546 = vmatprep.subr.bf16.mxu0 0
    %3547 = vmatpush1.bf16.msra.mxu0 %v3532
    %3548 = vmatprep.subr.bf16.mxu0 0
    %3549 = vmatpush1.bf16.msra.mxu0 0
    %3550 = vmatprep.subr.bf16.mxu0 0
    %3551 = vmatpush1.bf16.msra.mxu0 0
    %3552 = vmatprep.subr.bf16.mxu0 0
    %3553 = vmatpush1.bf16.msra.mxu0 0
    %3554 = vmatprep.subr.bf16.mxu0 0
    %3555 = vmatpush1.bf16.msra.mxu0 0
    %3556 = vmatprep.subr.bf16.mxu0 0
    %3557 = vmatpush1.bf16.msra.mxu0 0
    %3558 = vmatprep.subr.bf16.mxu0 0
    %3559 = vmatpush1.bf16.msra.mxu0 0
    %3560 = vmatprep.subr.bf16.mxu0 0
    %3561 = vmatpush1.bf16.msra.mxu0 0
    %3562 = vmatprep.subr.bf16.mxu0 0
    %3563 = vmatpush1.bf16.msra.mxu0 0
    %3564 = vmatprep.subr.bf16.mxu0 0
    %3565 = vmatpush1.bf16.msra.mxu0 0
    %3566 = vmatprep.subr.bf16.mxu0 0
    %3567 = vmatpush1.bf16.msra.mxu0 0
    %3568 = vmatprep.subr.bf16.mxu0 0
    %3569 = vmatpush1.bf16.msra.mxu0 0
    %3570 = vmatprep.subr.bf16.mxu0 0
    %3571 = vmatpush1.bf16.msra.mxu0 0
    %3572 = vmatprep.mubr.bf16.mxu0 0
    %3573 = vmatmul.mubr.bf16.gmra.mrb[0].mxu0 %v3538
    %v3574 = vpop.f32.mrb[0].mxu0
    %v3575 = vadd.f32 %v2884, %v3574
    %v3576 = vpop.f32.mrb[0].mxu0
    %v3577 = vpop.f32.mrb[0].mxu0
    %v3578 = vpop.f32.mrb[0].mxu0
    %3579 = vdwg.mxu0
    %v3580 = vmax.f32 %v3575, 0.0
    %v3581 = vpack.c.bf16 %v3580, %v3580
    %s3582 = scalar_lea.vmem %s4, 192
    %v3583 = vld [vmem:[%s3582] sm:$0xf]
    %v3584 = vld [vmem:[%s3582 + $0x4] sm:$0xf]
    %v3585 = vld [vmem:[%s3582 + $0x8] sm:$0xf]
    %v3586 = vld [vmem:[%s3582 + $0xc] sm:$0xf]
    %v3587 = vld [vmem:[%s3582 + $0x10] sm:$0xf]
    %v3588 = vld [vmem:[%s3582 + $0x14] sm:$0xf]
    %v3589 = vld [vmem:[%s3582 + $0x18] sm:$0xf]
    %v3590 = vld [vmem:[%s3582 + $0x1c] sm:$0xf]
    %v3591 = vld [vmem:[%s3582 + $0x20] sm:$0xf]
    %v3592 = vld [vmem:[%s3582 + $0x24] sm:$0xf]
    %v3593 = vld [vmem:[%s3582 + $0x28] sm:$0xf]
    %v3594 = vld [vmem:[%s3582 + $0x2c] sm:$0xf]
    %v3595 = vld [vmem:[%s3582 + $0x30] sm:$0xf]
    %v3596 = vld [vmem:[%s3582 + $0x34] sm:$0xf]
    %v3597 = vld [vmem:[%s3582 + $0x38] sm:$0xf]
    %v3598 = vld [vmem:[%s3582 + $0x3c] sm:$0xf]
    %v3615 = vunpack.c.l.b16 %v3583
    %v3616 = vunpack.c.l.b16 %v3584
    %v3617 = vunpack.c.l.b16 %v3585
    %v3618 = vunpack.c.l.b16 %v3586
    %v3619 = vunpack.c.l.b16 %v3587
    %v3620 = vunpack.c.l.b16 %v3588
    %v3621 = vunpack.c.l.b16 %v3589
    %v3622 = vunpack.c.l.b16 %v3590
    %v3623 = vunpack.c.l.b16 %v3591
    %v3624 = vunpack.c.l.b16 %v3592
    %v3625 = vunpack.c.l.b16 %v3593
    %v3626 = vunpack.c.l.b16 %v3594
    %v3627 = vunpack.c.l.b16 %v3595
    %v3628 = vunpack.c.l.b16 %v3596
    %v3629 = vunpack.c.l.b16 %v3597
    %v3630 = vunpack.c.l.b16 %v3598
    %v3631 = vpack.c.b16 %v3616, %v3615
    %v3632 = vpack.c.b16 %v3618, %v3617
    %v3633 = vpack.c.b16 %v3620, %v3619
    %v3634 = vpack.c.b16 %v3622, %v3621
    %v3635 = vpack.c.b16 %v3624, %v3623
    %v3636 = vpack.c.b16 %v3626, %v3625
    %v3637 = vpack.c.b16 %v3628, %v3627
    %v3638 = vpack.c.b16 %v3630, %v3629
    %3647 = vmatprep.subr.bf16.mxu0 0
    %3648 = vmatpush1.bf16.msra.mxu0 %v3631
    %3649 = vmatprep.subr.bf16.mxu0 0
    %3650 = vmatpush1.bf16.msra.mxu0 %v3632
    %3651 = vmatprep.subr.bf16.mxu0 0
    %3652 = vmatpush1.bf16.msra.mxu0 %v3633
    %3653 = vmatprep.subr.bf16.mxu0 0
    %3654 = vmatpush1.bf16.msra.mxu0 %v3634
    %3655 = vmatprep.subr.bf16.mxu0 0
    %3656 = vmatpush1.bf16.msra.mxu0 %v3635
    %3657 = vmatprep.subr.bf16.mxu0 0
    %3658 = vmatpush1.bf16.msra.mxu0 %v3636
    %3659 = vmatprep.subr.bf16.mxu0 0
    %3660 = vmatpush1.bf16.msra.mxu0 %v3637
    %3661 = vmatprep.subr.bf16.mxu0 0
    %3662 = vmatpush1.bf16.msra.mxu0 %v3638
    %3663 = vmatprep.subr.bf16.mxu0 0
    %3664 = vmatpush1.bf16.msra.mxu0 0
    %3665 = vmatprep.subr.bf16.mxu0 0
    %3666 = vmatpush1.bf16.msra.mxu0 0
    %3667 = vmatprep.subr.bf16.mxu0 0
    %3668 = vmatpush1.bf16.msra.mxu0 0
    %3669 = vmatprep.subr.bf16.mxu0 0
    %3670 = vmatpush1.bf16.msra.mxu0 0
    %3671 = vmatprep.subr.bf16.mxu0 0
    %3672 = vmatpush1.bf16.msra.mxu0 0
    %3673 = vmatprep.subr.bf16.mxu0 0
    %3674 = vmatpush1.bf16.msra.mxu0 0
    %3675 = vmatprep.subr.bf16.mxu0 0
    %3676 = vmatpush1.bf16.msra.mxu0 0
    %3677 = vmatprep.subr.bf16.mxu0 0
    %3678 = vmatpush1.bf16.msra.mxu0 0
    %3679 = vmatprep.mubr.bf16.mxu0 0
    %3680 = vmatmul.mubr.bf16.gmra.mrb[0].mxu0 %v3581
    %v3681 = vpop.f32.mrb[0].mxu0
    %v3682 = vadd.f32 %v2885, %v3681
    %v3683 = vpop.f32.mrb[0].mxu0
    %v3684 = vpop.f32.mrb[0].mxu0
    %v3685 = vpop.f32.mrb[0].mxu0
    %3686 = vdwg.mxu0
    %v3687 = vadd.f32 %v3502, %v3682
    %v3688 = vsel %vm273, %v3687, 0.0
    %3689 = vadd.xlane.f32.xlu0 %v3688
    %v3690 = vpop.xlane.xlu0 %3689
    %v3691 = vmul.f32 %v3690, %v702
    %v3692 = vsub.f32 %v3687, %v3691
    %v3693 = vmul.f32 %v3692, %v3692
    %v3694 = vsel %vm273, %v3693, 0.0
    %3695 = vadd.xlane.f32.xlu0 %v3694
    %v3696 = vpop.xlane.xlu0 %3695
    %v3697 = vmul.f32 %v3696, %v702
    %v3698 = vadd.f32 %v3697, 1e-05
    %v3699 = vrsqrt.pop %v3698
    %v3700 = vmul.f32 %v3692, %v3699
    %v3701 = vmul.f32 %v3700, %v2886
    %v3702 = vadd.f32 %v3701, %v2887
    %s3703 = scalar_lea.vmem %s2051, 96
    %v3704 = vld [vmem:[%s3703] ss:$8 sm:$0x3]
    %s3705 = scalar_lea.vmem %s2051, 97
    %v3706 = vld [vmem:[%s3705] ss:$8 sm:$0x3]
    %s3707 = scalar_lea.vmem %s2051, 98
    %v3708 = vld [vmem:[%s3707] ss:$8 sm:$0x3]
    %v3709 = vld [vmem:[%s2051 + $0x63] ss:$0 sm:$0xff]
    %v3710 = vpack.c.bf16 %v3702, %v3702
    %s3711 = scalar_lea.vmem [#allocation7], 64
    %v3712 = vld [vmem:[%s3711] sm:$0xff]
    %v3713 = vld [vmem:[%s3711 + $0x8] sm:$0xff]
    %v3714 = vld [vmem:[%s3711 + $0x10] sm:$0xff]
    %v3715 = vld [vmem:[%s3711 + $0x18] sm:$0xff]
    %v3716 = vld [vmem:[%s3711 + $0x20] sm:$0xff]
    %v3717 = vld [vmem:[%s3711 + $0x28] sm:$0xff]
    %v3718 = vld [vmem:[%s3711 + $0x30] sm:$0xff]
    %v3719 = vld [vmem:[%s3711 + $0x38] sm:$0xff]
    %v3721 = vlaneseq
    %v3722 = vshrl.u32 %v3721, 7
    %v3723 = vsub.s32 0, %v3722
    %v3724 = vrot.slane %v3704, %v3723
    %v3725 = vlaneseq
    %v3726 = vshrl.u32 %v3725, 7
    %v3727 = vsub.s32 1, %v3726
    %v3728 = vrot.slane %v3704, %v3727
    %v3739 = vunpack.c.l.b16 %v3712
    %v3740 = vunpack.c.h.b16 %v3712
    %v3741 = vunpack.c.l.b16 %v3713
    %v3742 = vunpack.c.h.b16 %v3713
    %v3743 = vunpack.c.l.b16 %v3714
    %v3744 = vunpack.c.h.b16 %v3714
    %v3745 = vunpack.c.l.b16 %v3715
    %v3746 = vunpack.c.h.b16 %v3715
    %v3747 = vunpack.c.l.b16 %v3716
    %v3748 = vunpack.c.h.b16 %v3716
    %v3749 = vunpack.c.l.b16 %v3717
    %v3750 = vunpack.c.h.b16 %v3717
    %v3751 = vunpack.c.l.b16 %v3718
    %v3752 = vunpack.c.h.b16 %v3718
    %v3753 = vunpack.c.l.b16 %v3719
    %v3754 = vunpack.c.h.b16 %v3719
    %v3755 = vpack.c.b16 %v3741, %v3739
    %v3756 = vpack.c.b16 %v3742, %v3740
    %v3757 = vpack.c.b16 %v3745, %v3743
    %v3758 = vpack.c.b16 %v3746, %v3744
    %v3759 = vpack.c.b16 %v3749, %v3747
    %v3760 = vpack.c.b16 %v3750, %v3748
    %v3761 = vpack.c.b16 %v3753, %v3751
    %v3762 = vpack.c.b16 %v3754, %v3752
    %v3772 = vsel %vm273, %v3710, 0
    %3774 = vmatprep.subr.bf16.mxu0 %v3756
    %3775 = vmatpush1.bf16.msra.mxu0 %v3755
    %3776 = vmatprep.subr.bf16.mxu0 %v3758
    %3777 = vmatpush1.bf16.msra.mxu0 %v3757
    %3778 = vmatprep.subr.bf16.mxu0 %v3760
    %3779 = vmatpush1.bf16.msra.mxu0 %v3759
    %3780 = vmatprep.subr.bf16.mxu0 %v3762
    %3781 = vmatpush1.bf16.msra.mxu0 %v3761
    %3782 = vmatprep.subr.bf16.mxu0 0
    %3783 = vmatpush1.bf16.msra.mxu0 0
    %3784 = vmatprep.subr.bf16.mxu0 0
    %3785 = vmatpush1.bf16.msra.mxu0 0
    %3786 = vmatprep.subr.bf16.mxu0 0
    %3787 = vmatpush1.bf16.msra.mxu0 0
    %3788 = vmatprep.subr.bf16.mxu0 0
    %3789 = vmatpush1.bf16.msra.mxu0 0
    %3790 = vmatprep.subr.bf16.mxu0 0
    %3791 = vmatpush1.bf16.msra.mxu0 0
    %3792 = vmatprep.subr.bf16.mxu0 0
    %3793 = vmatpush1.bf16.msra.mxu0 0
    %3794 = vmatprep.subr.bf16.mxu0 0
    %3795 = vmatpush1.bf16.msra.mxu0 0
    %3796 = vmatprep.subr.bf16.mxu0 0
    %3797 = vmatpush1.bf16.msra.mxu0 0
    %3798 = vmatprep.subr.bf16.mxu0 0
    %3799 = vmatpush1.bf16.msra.mxu0 0
    %3800 = vmatprep.subr.bf16.mxu0 0
    %3801 = vmatpush1.bf16.msra.mxu0 0
    %3802 = vmatprep.subr.bf16.mxu0 0
    %3803 = vmatpush1.bf16.msra.mxu0 0
    %3804 = vmatprep.subr.bf16.mxu0 0
    %3805 = vmatpush1.bf16.msra.mxu0 0
    %3806 = vmatprep.mubr.bf16.mxu0 0
    %3807 = vmatmul.mubr.bf16.gmra.mrb[0].mxu0 %v3772
    %v3808 = vpop.f32.mrb[0].mxu0
    %v3809 = vadd.f32 %v3724, %v3808
    %v3810 = vpop.f32.mrb[0].mxu0
    %v3811 = vadd.f32 %v3728, %v3810
    %v3812 = vpop.f32.mrb[0].mxu0
    %v3813 = vpop.f32.mrb[0].mxu0
    %3814 = vdwg.mxu0
    %v3816 = vlaneseq
    %v3817 = vshrl.u32 %v3816, 7
    %v3818 = vsub.s32 0, %v3817
    %v3819 = vrot.slane %v3706, %v3818
    %v3820 = vlaneseq
    %v3821 = vshrl.u32 %v3820, 7
    %v3822 = vsub.s32 1, %v3821
    %v3823 = vrot.slane %v3706, %v3822
    %v3826 = vmul.f32 %v3809, %v3819
    %v3827 = vmul.f32 %v3811, %v3823
    %v3829 = vlaneseq
    %v3830 = vshrl.u32 %v3829, 7
    %v3831 = vsub.s32 0, %v3830
    %v3832 = vrot.slane %v3708, %v3831
    %v3833 = vlaneseq
    %v3834 = vshrl.u32 %v3833, 7
    %v3835 = vsub.s32 1, %v3834
    %v3836 = vrot.slane %v3708, %v3835
    %v3839 = vadd.f32 %v3826, %v3832
    %v3840 = vadd.f32 %v3827, %v3836
    %v3841 = vmax.f32 %v3839, 0.0
    %v3842 = vmax.f32 %v3840, 0.0
    %v3843 = vpack.c.bf16 %v3841, %v3841
    %v3844 = vpack.c.bf16 %v3842, %v3842
    %s3845 = scalar_lea.vmem [#allocation8], 128
    %v3846 = vld [vmem:[%s3845] sm:$0xf]
    %v3847 = vld [vmem:[%s3845 + $0x4] sm:$0xf]
    %v3848 = vld [vmem:[%s3845 + $0x8] sm:$0xf]
    %v3849 = vld [vmem:[%s3845 + $0xc] sm:$0xf]
    %v3850 = vld [vmem:[%s3845 + $0x10] sm:$0xf]
    %v3851 = vld [vmem:[%s3845 + $0x14] sm:$0xf]
    %v3852 = vld [vmem:[%s3845 + $0x18] sm:$0xf]
    %v3853 = vld [vmem:[%s3845 + $0x1c] sm:$0xf]
    %v3854 = vld [vmem:[%s3845 + $0x20] sm:$0xf]
    %v3855 = vld [vmem:[%s3845 + $0x24] sm:$0xf]
    %v3856 = vld [vmem:[%s3845 + $0x28] sm:$0xf]
    %v3857 = vld [vmem:[%s3845 + $0x2c] sm:$0xf]
    %v3858 = vld [vmem:[%s3845 + $0x30] sm:$0xf]
    %v3859 = vld [vmem:[%s3845 + $0x34] sm:$0xf]
    %v3860 = vld [vmem:[%s3845 + $0x38] sm:$0xf]
    %v3861 = vld [vmem:[%s3845 + $0x3c] sm:$0xf]
    %v3862 = vld [vmem:[%s3845 + $0x40] sm:$0xf]
    %v3863 = vld [vmem:[%s3845 + $0x44] sm:$0xf]
    %v3864 = vld [vmem:[%s3845 + $0x48] sm:$0xf]
    %v3865 = vld [vmem:[%s3845 + $0x4c] sm:$0xf]
    %v3866 = vld [vmem:[%s3845 + $0x50] sm:$0xf]
    %v3867 = vld [vmem:[%s3845 + $0x54] sm:$0xf]
    %v3868 = vld [vmem:[%s3845 + $0x58] sm:$0xf]
    %v3869 = vld [vmem:[%s3845 + $0x5c] sm:$0xf]
    %v3870 = vld [vmem:[%s3845 + $0x60] sm:$0xf]
    %v3871 = vld [vmem:[%s3845 + $0x64] sm:$0xf]
    %v3872 = vld [vmem:[%s3845 + $0x68] sm:$0xf]
    %v3873 = vld [vmem:[%s3845 + $0x6c] sm:$0xf]
    %v3874 = vld [vmem:[%s3845 + $0x70] sm:$0xf]
    %v3875 = vld [vmem:[%s3845 + $0x74] sm:$0xf]
    %v3876 = vld [vmem:[%s3845 + $0x78] sm:$0xf]
    %v3877 = vld [vmem:[%s3845 + $0x7c] sm:$0xf]
    %v3910 = vunpack.c.l.b16 %v3846
    %v3911 = vunpack.c.l.b16 %v3847
    %v3912 = vunpack.c.l.b16 %v3848
    %v3913 = vunpack.c.l.b16 %v3849
    %v3914 = vunpack.c.l.b16 %v3850
    %v3915 = vunpack.c.l.b16 %v3851
    %v3916 = vunpack.c.l.b16 %v3852
    %v3917 = vunpack.c.l.b16 %v3853
    %v3918 = vunpack.c.l.b16 %v3854
    %v3919 = vunpack.c.l.b16 %v3855
    %v3920 = vunpack.c.l.b16 %v3856
    %v3921 = vunpack.c.l.b16 %v3857
    %v3922 = vunpack.c.l.b16 %v3858
    %v3923 = vunpack.c.l.b16 %v3859
    %v3924 = vunpack.c.l.b16 %v3860
    %v3925 = vunpack.c.l.b16 %v3861
    %v3926 = vunpack.c.l.b16 %v3862
    %v3927 = vunpack.c.l.b16 %v3863
    %v3928 = vunpack.c.l.b16 %v3864
    %v3929 = vunpack.c.l.b16 %v3865
    %v3930 = vunpack.c.l.b16 %v3866
    %v3931 = vunpack.c.l.b16 %v3867
    %v3932 = vunpack.c.l.b16 %v3868
    %v3933 = vunpack.c.l.b16 %v3869
    %v3934 = vunpack.c.l.b16 %v3870
    %v3935 = vunpack.c.l.b16 %v3871
    %v3936 = vunpack.c.l.b16 %v3872
    %v3937 = vunpack.c.l.b16 %v3873
    %v3938 = vunpack.c.l.b16 %v3874
    %v3939 = vunpack.c.l.b16 %v3875
    %v3940 = vunpack.c.l.b16 %v3876
    %v3941 = vunpack.c.l.b16 %v3877
    %v3942 = vpack.c.b16 %v3911, %v3910
    %v3943 = vpack.c.b16 %v3913, %v3912
    %v3944 = vpack.c.b16 %v3915, %v3914
    %v3945 = vpack.c.b16 %v3917, %v3916
    %v3946 = vpack.c.b16 %v3919, %v3918
    %v3947 = vpack.c.b16 %v3921, %v3920
    %v3948 = vpack.c.b16 %v3923, %v3922
    %v3949 = vpack.c.b16 %v3925, %v3924
    %v3950 = vpack.c.b16 %v3927, %v3926
    %v3951 = vpack.c.b16 %v3929, %v3928
    %v3952 = vpack.c.b16 %v3931, %v3930
    %v3953 = vpack.c.b16 %v3933, %v3932
    %v3954 = vpack.c.b16 %v3935, %v3934
    %v3955 = vpack.c.b16 %v3937, %v3936
    %v3956 = vpack.c.b16 %v3939, %v3938
    %v3957 = vpack.c.b16 %v3941, %v3940
    %3974 = vmatprep.subr.bf16.mxu0 0
    %3975 = vmatpush1.bf16.msra.mxu0 %v3942
    %3976 = vmatprep.subr.bf16.mxu0 0
    %3977 = vmatpush1.bf16.msra.mxu0 %v3943
    %3978 = vmatprep.subr.bf16.mxu0 0
    %3979 = vmatpush1.bf16.msra.mxu0 %v3944
    %3980 = vmatprep.subr.bf16.mxu0 0
    %3981 = vmatpush1.bf16.msra.mxu0 %v3945
    %3982 = vmatprep.subr.bf16.mxu0 0
    %3983 = vmatpush1.bf16.msra.mxu0 %v3946
    %3984 = vmatprep.subr.bf16.mxu0 0
    %3985 = vmatpush1.bf16.msra.mxu0 %v3947
    %3986 = vmatprep.subr.bf16.mxu0 0
    %3987 = vmatpush1.bf16.msra.mxu0 %v3948
    %3988 = vmatprep.subr.bf16.mxu0 0
    %3989 = vmatpush1.bf16.msra.mxu0 %v3949
    %3990 = vmatprep.subr.bf16.mxu0 0
    %3991 = vmatpush1.bf16.msra.mxu0 %v3950
    %3992 = vmatprep.subr.bf16.mxu0 0
    %3993 = vmatpush1.bf16.msra.mxu0 %v3951
    %3994 = vmatprep.subr.bf16.mxu0 0
    %3995 = vmatpush1.bf16.msra.mxu0 %v3952
    %3996 = vmatprep.subr.bf16.mxu0 0
    %3997 = vmatpush1.bf16.msra.mxu0 %v3953
    %3998 = vmatprep.subr.bf16.mxu0 0
    %3999 = vmatpush1.bf16.msra.mxu0 %v3954
    %4000 = vmatprep.subr.bf16.mxu0 0
    %4001 = vmatpush1.bf16.msra.mxu0 %v3955
    %4002 = vmatprep.subr.bf16.mxu0 0
    %4003 = vmatpush1.bf16.msra.mxu0 %v3956
    %4004 = vmatprep.subr.bf16.mxu0 0
    %4005 = vmatpush1.bf16.msra.mxu0 %v3957
    %4006 = vmatprep.mubr.bf16.mxu0 %v3844
    %4007 = vmatmul.mubr.bf16.gmra.mrb[0].mxu0 %v3843
    %v4008 = vpop.f32.mrb[0].mxu0
    %v4009 = vadd.f32 %v3709, %v4008
    %v4010 = vpop.f32.mrb[0].mxu0
    %v4011 = vpop.f32.mrb[0].mxu0
    %v4012 = vpop.f32.mrb[0].mxu0
    %4013 = vdwg.mxu0
    %4014 = vst [vmem:[#allocation10 + $0x8] sm:$0xff] %v4009
    // Predicated region
    $region50: #{tfc_forward.1} parent=1 // pred_check
      _
    $region51: #{tfc_forward.1} parent=1 // pred_check_branch
      %4016 = sbr.rel (0) target = $region53
    $region52: #{tfc_forward.1} parent=1 // pred_region
      %s4018 = ssub.s32 256, 256
      %4019 = vsyncadd [#allocation4], %s4018
      %s4021 = sshll.u32 [#allocation10], 4
      %s4022 = int_to_ptr.vmem [resolvable:$true] %s4021
      %4024 = dma.vmem_to_hbm [thread:$0]  %s4022, 256, %s8, [#allocation4]
    $region53: #{tfc_forward.1} parent=1 // pred_fallthru
      _
    // Predicated region
    $region54: #{tfc_forward.1} parent=1 // pred_check
      _
    $region55: #{tfc_forward.1} parent=1 // pred_check_branch
      %4026 = sbr.rel (0) target = $region57
    $region56: #{tfc_forward.1} parent=1 // pred_region
      %4027 = dma.done [#allocation4], 256
    $region57: #{tfc_forward.1} parent=1 // pred_fallthru
      _
    %4028 = vsyncpa [#allocation3], 1
    %4029 = vsyncpa [#allocation6], 1
    %4030 = vsyncpa [#allocation9], 1
    %4031 = vsyncpa [#allocation4], 1

</llo_original>
